<compile_context>
chip_gen: v5e
topology: v5e:2x2
jax: 0.10.0
libtpu: 0.0.40
codegen_flags: <defaults>
</compile_context>

<pallas_src>
from functools import partial

import numpy as np
import jax
import jax.numpy as jnp
from jax.experimental import pallas as pl
from jax.experimental.pallas import tpu as pltpu

Q_DIM = 4
HID = 512
OFF_DIM = Q_DIM * (Q_DIM - 1) // 2          # strict lower-triangular count
P_DIM = Q_DIM + OFF_DIM                     # packed [diag | off] width


def _sig(x):
    # sigmoid with the divide on the EUP (exp already lives there).
    return pl.reciprocal(1.0 + jnp.exp(-x), approx=True)


def _sig_ref(x):
    return 1.0 / (1.0 + jnp.exp(-x))


# --------------------------------------------------------------------------
# Pallas kernel: packed L-net + g-net forward, fused Jacobian, tau algebra,
# batched over a tile of `block_b` samples.
# --------------------------------------------------------------------------
def lagnet_kernel(q_ref, qd_ref, qdd_ref,
                  w_in_ref, b_in_ref,
                  w2_ref, b2_ref,
                  w3_ref, b3_ref,
                  w_head_ref, b_head_ref,
                  wg2_ref, bg2_ref,
                  wg3_ref, bg3_ref,
                  wm_ref, pos_ref, wmT_ref, posT_ref,
                  out_ref):
    f32, bf16 = jnp.float32, jnp.bfloat16
    bt = q_ref.shape[0]                     # batch tile (multiple of 8)

    def rdot(a, b):
        return jnp.dot(a, b, preferred_element_type=f32)

    def contract_q(coef, blocks):
        # Per-sample contraction over the q index:
        #   out[b, p] = sum_j coef[b, j] * blocks[j][b, p]
        acc = coef[:, 0:1] * blocks[0]
        for j in range(1, Q_DIM):
            acc = acc + coef[:, j:j + 1] * blocks[j]
        return acc

    q = q_ref[...]                          # (bt, Q)
    qd = qd_ref[...]                        # (bt, Q)   q_t
    qdd = qdd_ref[...]                      # (bt, Q)   q_tt

    # ---- packed input layer: [L_net_fc1 | g_net_fc1] ----
    a_in = _sig(rdot(q, w_in_ref[...]) + b_in_ref[...])        # (bt, 2H)
    h1 = a_in[:, :HID]
    g1 = a_in[:, HID:]
    s1 = h1 * (1.0 - h1)
    w1t = w_in_ref[:, :HID]                                     # (Q, H)
    # Jacobian rows, Q-major: row j*bt + b = d h1[b] / d q_j (transposed)
    u1 = jnp.concatenate([w1t[j:j + 1, :] * s1 for j in range(Q_DIM)], axis=0)

    # ---- layer 2: forward rows + Q*bt Jacobian rows in ONE bf16 matmul ----
    x2 = jnp.concatenate([h1, u1], axis=0).astype(bf16)         # ((1+Q)bt, H)
    z2 = rdot(x2, w2_ref[...])                                  # f32 acc
    h2 = _sig(z2[:bt] + b2_ref[...])
    s2 = h2 * (1.0 - h2)
    u2 = z2[bt:] * jnp.concatenate([s2] * Q_DIM, axis=0)

    # ---- g-net layers 2 / 3 ----
    g2 = _sig(rdot(g1.astype(bf16), wg2_ref[...]) + bg2_ref[...])
    g_row = rdot(g2.astype(bf16), wg3_ref[...]) + bg3_ref[...]  # (bt, Q)

    # ---- layer 3, fused forward + Jacobian ----
    x3 = jnp.concatenate([h2, u2], axis=0).astype(bf16)
    z3 = rdot(x3, w3_ref[...])
    h3 = _sig(z3[:bt] + b3_ref[...])
    s3 = h3 * (1.0 - h3)
    u3 = z3[bt:] * jnp.concatenate([s3] * Q_DIM, axis=0)

    # ---- merged heads [diag | off], fused with their Jacobian rows ----
    x4 = jnp.concatenate([h3, u3], axis=0).astype(bf16)
    z4 = rdot(x4, w_head_ref[...])                              # ((1+Q)bt, P)
    head = z4[:bt] + b_head_ref[...]
    lane = jax.lax.broadcasted_iota(jnp.int32, (bt, P_DIM), 1)
    is_diag = lane < Q_DIM
    exp_head = jnp.exp(jnp.where(is_diag, head, 0.0))           # exp only on diag lanes
    l_vec = jnp.where(is_diag, exp_head, head)                  # (bt, P) = [l_diag | l_off]
    scale = jnp.where(is_diag, l_vec, 1.0)                      # exp chain-rule factor
    dl_t = z4[bt:] * jnp.concatenate([scale] * Q_DIM, axis=0)   # (Q*bt, P) = dl_dq^T
    dl_blocks = [dl_t[j * bt:(j + 1) * bt, :] for j in range(Q_DIM)]

    # ---- Lagrangian algebra, factored through constant scatter maps ----
    # fill(x) = Wm @ diag(x) @ Pos places x into the lower-tri pattern, so
    #   y @ fill(x)   = ((y @ Wm)    * x) @ Pos
    #   y @ fill(x)^T = ((y @ Pos^T) * x) @ Wm^T
    wm, pos = wm_ref[...], pos_ref[...]
    wmT, posT = wmT_ref[...], posT_ref[...]

    wr = rdot(jnp.concatenate([qd, qdd], axis=0), wm)           # (2bt, P)
    w_row, qdd_wm = wr[:bt], wr[bt:]                            # w_row[b,p] = qd[b,row(p)]
    v_a = contract_q(qd, dl_blocks)                             # (bt, P): A = fill(v_a)

    st_pos = jnp.concatenate([w_row * l_vec,
                              w_row * v_a,
                              qdd_wm * l_vec], axis=0)          # (3bt, P)
    r_pos = rdot(st_pos, pos)                                   # (3bt, Q)
    ltqd = r_pos[:bt]                                           # (L^T qd)^T
    atqd = r_pos[bt:2 * bt]                                     # (A^T qd)^T
    ltqdd = r_pos[2 * bt:]                                      # (L^T qdd)^T

    # comp4 = ltqd @ B^T  with  B^T = (dl_t * w_row) @ Pos
    t_row = contract_q(ltqd, dl_blocks)                         # (bt, P)
    comp4 = rdot(t_row * w_row, pos)                            # (bt, Q)

    st_posT = jnp.concatenate([ltqdd, atqd, ltqd], axis=0)      # (3bt, Q)
    st_scale = jnp.concatenate([l_vec, l_vec, v_a], axis=0)     # (3bt, P)
    r_wmT = rdot(rdot(st_posT, posT) * st_scale, wmT)           # (3bt, Q)
    comp1 = r_wmT[:bt]                                          # (L L^T qdd)^T
    comp2 = r_wmT[bt:2 * bt]                                    # (L A^T qd)^T
    comp3 = r_wmT[2 * bt:]                                      # (A L^T qd)^T
    comp5 = comp3                                               # (A L^T) qd == A (L^T qd)

    tau = comp1 + comp2 + comp3 - 0.5 * comp4 - 0.5 * comp5 + g_row
    out_ref[...] = tau.astype(out_ref.dtype)


def lagnet_core(q, qd, qdd, kparams, consts, *, block_b):
    B = q.shape[0]
    assert B % block_b == 0 and block_b % 8 == 0
    weights = tuple(kparams) + tuple(consts)

    data_spec = lambda: pl.BlockSpec((block_b, Q_DIM), lambda i: (i, 0))
    const_map = lambda i: (0, 0)            # weights resident across grid steps
    weight_specs = [pl.BlockSpec(w.shape, const_map) for w in weights]

    return pl.pallas_call(
        lagnet_kernel,
        out_shape=jax.ShapeDtypeStruct((B, Q_DIM), jnp.float32),
        grid=(B // block_b,),
        in_specs=[data_spec(), data_spec(), data_spec()] + weight_specs,
        out_specs=pl.BlockSpec((block_b, Q_DIM), lambda i: (i, 0)),
        compiler_params=pltpu.CompilerParams(
            dimension_semantics=("parallel",)),     # v7x: split batch across TCs
    )(q, qd, qdd, *weights)


@partial(jax.jit, static_argnames=("block_b",))
def lagnet_forward(q, q_t, q_tt, kparams, consts, block_b=8):
    """Batched forward: q/q_t/q_tt are (B, Q_DIM); returns tau (B, Q_DIM)."""
    B = q.shape[0]
    Bp = ((B + block_b - 1) // block_b) * block_b
    if Bp != B:
        pad = ((0, Bp - B), (0, 0))
        q, q_t, q_tt = jnp.pad(q, pad), jnp.pad(q_t, pad), jnp.pad(q_tt, pad)
    out = lagnet_core(q, q_t, q_tt, kparams, consts, block_b=block_b)
    return out[:B]


# --------------------------------------------------------------------------
# Constant scatter maps for the lower-triangular fill pattern of get_L_mat:
# diag first, then the strict lower triangle filled row-major.
# Wm[i, p] = 1 iff l_vec[p] lands in row i of L; Pos[p, j] = 1 iff column j.
# --------------------------------------------------------------------------
def build_fill_maps(q_dim):
    off = q_dim * (q_dim - 1) // 2
    p_dim = q_dim + off
    rows = np.zeros(p_dim, np.int32)
    cols = np.zeros(p_dim, np.int32)
    for i in range(q_dim):
        rows[i], cols[i] = i, i
    k = q_dim
    for r in range(1, q_dim):
        for c in range(r):
            rows[k], cols[k] = r, c
            k += 1
    wm = np.zeros((q_dim, p_dim), np.float32)
    pos = np.zeros((p_dim, q_dim), np.float32)
    for p in range(p_dim):
        wm[rows[p], p] = 1.0
        pos[p, cols[p]] = 1.0
    return (jnp.asarray(wm), jnp.asarray(pos),
            jnp.asarray(wm.T), jnp.asarray(pos.T))


# --------------------------------------------------------------------------
# Parameter init: torch-layout params for the reference + packed kernel params
# --------------------------------------------------------------------------
def init_params(key):
    dims = [(Q_DIM, HID), (HID, HID), (HID, HID),        # L_net_fc1..3
            (HID, Q_DIM), (HID, OFF_DIM),                # L_net_diag / off_diag
            (Q_DIM, HID), (HID, HID), (HID, Q_DIM)]      # g_net_fc1..3
    torch_params = []
    for fin, fout in dims:
        key, kw, kb = jax.random.split(key, 3)
        bound = 1.0 / np.sqrt(fin)
        W = jax.random.uniform(kw, (fout, fin), jnp.float32, -bound, bound)
        b = jax.random.uniform(kb, (fout,), jnp.float32, -bound, bound)
        torch_params.append((W, b))

    (W1, b1), (W2, b2), (W3, b3), (Wd, bd), (Wo, bo), \
        (Wg1, bg1), (Wg2, bg2), (Wg3, bg3) = torch_params
    bf16 = jnp.bfloat16
    kparams = (
        jnp.concatenate([W1.T, Wg1.T], axis=1),              # w_in   (Q, 2H) f32
        jnp.concatenate([b1, bg1]).reshape(1, -1),           # b_in   (1, 2H)
        W2.T.astype(bf16),                                   # w2     (H, H) bf16
        b2.reshape(1, -1),                                   # b2
        W3.T.astype(bf16),                                   # w3     (H, H) bf16
        b3.reshape(1, -1),                                   # b3
        jnp.concatenate([Wd.T, Wo.T], axis=1).astype(bf16),  # w_head (H, P) bf16
        jnp.concatenate([bd, bo]).reshape(1, -1),            # b_head (1, P)
        Wg2.T.astype(bf16),                                  # wg2    (H, H) bf16
        bg2.reshape(1, -1),                                  # bg2
        Wg3.T.astype(bf16),                                  # wg3    (H, Q) bf16
        bg3.reshape(1, -1),                                  # bg3
    )
    return torch_params, kparams, key


# --------------------------------------------------------------------------
# Pure-JAX reference mirroring the PyTorch code literally (for verification)
# --------------------------------------------------------------------------
def get_L_mat_ref(l_diag, l_off_diag, q_dim):
    L = jnp.zeros((q_dim, q_dim), jnp.float32)
    for i in range(q_dim):
        L = L.at[i, i].set(l_diag[0, i])
    L = L.at[1, 0].set(l_off_diag[0, 0])
    for i in range(1, l_off_diag.shape[1]):
        r, last_r, inc, last_inc = 0, 0, 1, 0
        while i >= r:
            last_r, last_inc = r, inc
            r += inc
            inc += 1
        L = L.at[last_inc, i - last_r].set(l_off_diag[0, i])
    return L


def get_dL_dq_mat_ref(dl_dq, q_dim):
    dl_diag = dl_dq[0:q_dim, :]
    dl_off = dl_dq[q_dim:, :]
    mats = []
    for k in range(q_dim):
        mats.append(get_L_mat_ref(dl_diag[:, k].reshape(1, -1),
                                  dl_off[:, k].reshape(1, -1), q_dim))
    return jnp.stack(mats, axis=2)


def lagnet_reference(q, q_t, q_tt, torch_params, q_dim):
    (W1, b1), (W2, b2), (W3, b3), (Wd, bd), (Wo, bo), \
        (Wg1, bg1), (Wg2, bg2), (Wg3, bg3) = torch_params
    h1 = _sig_ref(q @ W1.T + b1)
    h2 = _sig_ref(h1 @ W2.T + b2)
    h3 = _sig_ref(h2 @ W3.T + b3)
    l_diag = jnp.exp(h3 @ Wd.T + bd)
    l_off = h3 @ Wo.T + bo
    L = get_L_mat_ref(l_diag, l_off, q_dim)
    dh1 = jnp.diag((h1 * (1 - h1)).reshape(-1)) @ W1
    dh2 = jnp.diag((h2 * (1 - h2)).reshape(-1)) @ W2
    dh3 = jnp.diag((h3 * (1 - h3)).reshape(-1)) @ W3
    dh4 = jnp.concatenate([jnp.diag(l_diag.reshape(-1)) @ Wd, Wo], axis=0)
    dl_dq = dh4 @ (dh3 @ (dh2 @ dh1))
    dL_dq = get_dL_dq_mat_ref(dl_dq, q_dim)

    comp_1 = L @ (L.T @ q_tt.T)
    comp_2 = jnp.matmul(jnp.transpose(dL_dq, (1, 0, 2)), q_t.T).squeeze(2)
    comp_2 = L @ (comp_2 @ q_t.T)
    comp_3_1 = jnp.matmul(dL_dq, q_t.T).squeeze(2)
    comp_3 = comp_3_1 @ (L.T @ q_t.T)
    comp_4_1 = jnp.matmul(q_t, jnp.transpose(dL_dq, (1, 0, 2)))
    comp_4_1 = jnp.transpose(comp_4_1, (1, 0, 2)).squeeze(0)
    comp_4 = comp_4_1 @ (L.T @ q_t.T)
    comp_5 = jnp.matmul(jnp.transpose(dL_dq, (1, 0, 2)), q_t.T).squeeze(2)
    comp_5 = (q_t @ (L @ comp_5)).T
    g1 = _sig_ref(q @ Wg1.T + bg1)
    g2 = _sig_ref(g1 @ Wg2.T + bg2)
    g = (g2 @ Wg3.T + bg3).reshape(q_dim, 1)
    tau = comp_1 + comp_2 + comp_3 - 0.5 * comp_4 - 0.5 * comp_5 + g
    return tau.T


if __name__ == "__main__":
    key = jax.random.PRNGKey(0)
    torch_params, kparams, key = init_params(key)
    consts = build_fill_maps(Q_DIM)

    B = 8                                   # small demo batch (one tile)
    key, kq, kqt, kqtt = jax.random.split(key, 4)
    q = jax.random.normal(kq, (B, Q_DIM), jnp.float32)
    q_t = jax.random.normal(kqt, (B, Q_DIM), jnp.float32)
    q_tt = jax.random.normal(kqtt, (B, Q_DIM), jnp.float32)

    tau = lagnet_forward(q, q_t, q_tt, kparams, consts, block_b=8)
    tau = jax.block_until_ready(tau)

    tau_ref = jnp.concatenate(
        [lagnet_reference(q[b:b + 1], q_t[b:b + 1], q_tt[b:b + 1],
                          torch_params, Q_DIM) for b in range(B)], axis=0)
    # bf16 MXU operands (default TPU matmul precision) -> few-% tolerance.
    np.testing.assert_allclose(np.asarray(tau), np.asarray(tau_ref),
                               rtol=5e-2, atol=5e-2)
    assert tau.shape == (B, Q_DIM)
    print("KERNEL_OK")
</pallas_src>

<mosaic_0001>
module attributes {stable_mosaic.version = 11 : i64} {
  func.func @lagnet_kernel(%arg0: i32, %arg1: memref<8x4xf32, #tpu.memory_space<vmem>>, %arg2: memref<8x4xf32, #tpu.memory_space<vmem>>, %arg3: memref<8x4xf32, #tpu.memory_space<vmem>>, %arg4: memref<4x1024xf32, #tpu.memory_space<vmem>>, %arg5: memref<1x1024xf32, #tpu.memory_space<vmem>>, %arg6: memref<512x512xbf16, #tpu.memory_space<vmem>>, %arg7: memref<1x512xf32, #tpu.memory_space<vmem>>, %arg8: memref<512x512xbf16, #tpu.memory_space<vmem>>, %arg9: memref<1x512xf32, #tpu.memory_space<vmem>>, %arg10: memref<512x10xbf16, #tpu.memory_space<vmem>>, %arg11: memref<1x10xf32, #tpu.memory_space<vmem>>, %arg12: memref<512x512xbf16, #tpu.memory_space<vmem>>, %arg13: memref<1x512xf32, #tpu.memory_space<vmem>>, %arg14: memref<512x4xbf16, #tpu.memory_space<vmem>>, %arg15: memref<1x4xf32, #tpu.memory_space<vmem>>, %arg16: memref<4x10xf32, #tpu.memory_space<vmem>>, %arg17: memref<10x4xf32, #tpu.memory_space<vmem>>, %arg18: memref<10x4xf32, #tpu.memory_space<vmem>>, %arg19: memref<4x10xf32, #tpu.memory_space<vmem>>, %arg20: memref<8x4xf32, #tpu.memory_space<vmem>>) attributes {dimension_semantics = [#tpu.dimension_semantics<parallel>], iteration_bounds = array<i64: 1>, scalar_prefetch = 0 : i64, scratch_operands = 0 : i64, tpu.core_type = #tpu.core_type<tc>, window_params = [{transform_indices = @transform_0, window_bounds = array<i64: 8, 4>}, {transform_indices = @transform_1, window_bounds = array<i64: 8, 4>}, {transform_indices = @transform_2, window_bounds = array<i64: 8, 4>}, {pipeline_mode = #tpu.pipeline_mode<synchronous>, transform_indices = @transform_3, window_bounds = array<i64: 4, 1024>}, {pipeline_mode = #tpu.pipeline_mode<synchronous>, transform_indices = @transform_4, window_bounds = array<i64: 1, 1024>}, {pipeline_mode = #tpu.pipeline_mode<synchronous>, transform_indices = @transform_5, window_bounds = array<i64: 512, 512>}, {pipeline_mode = #tpu.pipeline_mode<synchronous>, transform_indices = @transform_6, window_bounds = array<i64: 1, 512>}, {pipeline_mode = #tpu.pipeline_mode<synchronous>, transform_indices = @transform_7, window_bounds = array<i64: 512, 512>}, {pipeline_mode = #tpu.pipeline_mode<synchronous>, transform_indices = @transform_8, window_bounds = array<i64: 1, 512>}, {pipeline_mode = #tpu.pipeline_mode<synchronous>, transform_indices = @transform_9, window_bounds = array<i64: 512, 10>}, {pipeline_mode = #tpu.pipeline_mode<synchronous>, transform_indices = @transform_10, window_bounds = array<i64: 1, 10>}, {pipeline_mode = #tpu.pipeline_mode<synchronous>, transform_indices = @transform_11, window_bounds = array<i64: 512, 512>}, {pipeline_mode = #tpu.pipeline_mode<synchronous>, transform_indices = @transform_12, window_bounds = array<i64: 1, 512>}, {pipeline_mode = #tpu.pipeline_mode<synchronous>, transform_indices = @transform_13, window_bounds = array<i64: 512, 4>}, {pipeline_mode = #tpu.pipeline_mode<synchronous>, transform_indices = @transform_14, window_bounds = array<i64: 1, 4>}, {pipeline_mode = #tpu.pipeline_mode<synchronous>, transform_indices = @transform_15, window_bounds = array<i64: 4, 10>}, {pipeline_mode = #tpu.pipeline_mode<synchronous>, transform_indices = @transform_16, window_bounds = array<i64: 10, 4>}, {pipeline_mode = #tpu.pipeline_mode<synchronous>, transform_indices = @transform_17, window_bounds = array<i64: 10, 4>}, {pipeline_mode = #tpu.pipeline_mode<synchronous>, transform_indices = @transform_18, window_bounds = array<i64: 4, 10>}, {transform_indices = @transform_19, window_bounds = array<i64: 8, 4>}]} {
    %c0 = arith.constant 0 : index
    %c0_0 = arith.constant 0 : index
    %0 = vector.load %arg1[%c0, %c0_0] : memref<8x4xf32, #tpu.memory_space<vmem>>, vector<8x4xf32>
    %c0_1 = arith.constant 0 : index
    %c0_2 = arith.constant 0 : index
    %1 = vector.load %arg2[%c0_1, %c0_2] : memref<8x4xf32, #tpu.memory_space<vmem>>, vector<8x4xf32>
    %c0_3 = arith.constant 0 : index
    %c0_4 = arith.constant 0 : index
    %2 = vector.load %arg3[%c0_3, %c0_4] : memref<8x4xf32, #tpu.memory_space<vmem>>, vector<8x4xf32>
    %c0_5 = arith.constant 0 : index
    %c0_6 = arith.constant 0 : index
    %3 = vector.load %arg4[%c0_5, %c0_6] : memref<4x1024xf32, #tpu.memory_space<vmem>>, vector<4x1024xf32>
    %cst = arith.constant dense<0.000000e+00> : vector<8x1024xf32>
    %4 = tpu.matmul %0, %3, %cst {dimension_numbers = #tpu.dot_dimension_numbers<[1], [0], [0], [1], [0, 0, 1, 1], [], []>} : vector<8x4xf32>, vector<4x1024xf32>, vector<8x1024xf32> -> vector<8x1024xf32>
    %c0_7 = arith.constant 0 : index
    %c0_8 = arith.constant 0 : index
    %5 = vector.load %arg5[%c0_7, %c0_8] : memref<1x1024xf32, #tpu.memory_space<vmem>>, vector<1x1024xf32>
    %6 = vector.broadcast %5 : vector<1x1024xf32> to vector<8x1024xf32>
    %7 = arith.addf %4, %6 : vector<8x1024xf32>
    %cst_9 = arith.constant 0.000000e+00 : f32
    %8 = vector.broadcast %cst_9 : f32 to vector<8x1024xf32>
    %9 = arith.subf %8, %7 : vector<8x1024xf32>
    %10 = math.exp %9 : vector<8x1024xf32>
    %cst_10 = arith.constant 1.000000e+00 : f32
    %11 = vector.broadcast %cst_10 : f32 to vector<8x1024xf32>
    %12 = arith.addf %11, %10 : vector<8x1024xf32>
    %13 = tpu.reciprocal %12 {approx = true} : vector<8x1024xf32> -> vector<8x1024xf32>
    %14 = vector.extract_strided_slice %13 {offsets = [0, 0], sizes = [8, 512], strides = [1, 1]} : vector<8x1024xf32> to vector<8x512xf32>
    %15 = vector.extract_strided_slice %13 {offsets = [0, 512], sizes = [8, 512], strides = [1, 1]} : vector<8x1024xf32> to vector<8x512xf32>
    %cst_11 = arith.constant 1.000000e+00 : f32
    %16 = vector.broadcast %cst_11 : f32 to vector<8x512xf32>
    %17 = arith.subf %16, %14 : vector<8x512xf32>
    %18 = arith.mulf %14, %17 : vector<8x512xf32>
    %c0_12 = arith.constant 0 : index
    %c0_13 = arith.constant 0 : index
    %19 = vector.load %arg4[%c0_12, %c0_13] : memref<4x1024xf32, #tpu.memory_space<vmem>>, vector<4x512xf32>
    %20 = vector.extract_strided_slice %19 {offsets = [0, 0], sizes = [1, 512], strides = [1, 1]} : vector<4x512xf32> to vector<1x512xf32>
    %21 = vector.broadcast %20 : vector<1x512xf32> to vector<8x512xf32>
    %22 = arith.mulf %21, %18 : vector<8x512xf32>
    %23 = vector.extract_strided_slice %19 {offsets = [1, 0], sizes = [1, 512], strides = [1, 1]} : vector<4x512xf32> to vector<1x512xf32>
    %24 = vector.broadcast %23 : vector<1x512xf32> to vector<8x512xf32>
    %25 = arith.mulf %24, %18 : vector<8x512xf32>
    %26 = vector.extract_strided_slice %19 {offsets = [2, 0], sizes = [1, 512], strides = [1, 1]} : vector<4x512xf32> to vector<1x512xf32>
    %27 = vector.broadcast %26 : vector<1x512xf32> to vector<8x512xf32>
    %28 = arith.mulf %27, %18 : vector<8x512xf32>
    %29 = vector.extract_strided_slice %19 {offsets = [3, 0], sizes = [1, 512], strides = [1, 1]} : vector<4x512xf32> to vector<1x512xf32>
    %30 = vector.broadcast %29 : vector<1x512xf32> to vector<8x512xf32>
    %31 = arith.mulf %30, %18 : vector<8x512xf32>
    %32 = tpu.concatenate %22, %25, %28, %31 in 0 : vector<8x512xf32>, vector<8x512xf32>, vector<8x512xf32>, vector<8x512xf32> -> vector<32x512xf32>
    %33 = tpu.concatenate %14, %32 in 0 : vector<8x512xf32>, vector<32x512xf32> -> vector<40x512xf32>
    %34 = arith.truncf %33 : vector<40x512xf32> to vector<40x512xbf16>
    %c0_14 = arith.constant 0 : index
    %c0_15 = arith.constant 0 : index
    %35 = vector.load %arg6[%c0_14, %c0_15] : memref<512x512xbf16, #tpu.memory_space<vmem>>, vector<512x512xbf16>
    %cst_16 = arith.constant dense<0.000000e+00> : vector<40x512xf32>
    %36 = tpu.matmul %34, %35, %cst_16 {dimension_numbers = #tpu.dot_dimension_numbers<[1], [0], [0], [1], [0, 0, 1, 1], [], []>} : vector<40x512xbf16>, vector<512x512xbf16>, vector<40x512xf32> -> vector<40x512xf32>
    %37 = vector.extract_strided_slice %36 {offsets = [0, 0], sizes = [8, 512], strides = [1, 1]} : vector<40x512xf32> to vector<8x512xf32>
    %c0_17 = arith.constant 0 : index
    %c0_18 = arith.constant 0 : index
    %38 = vector.load %arg7[%c0_17, %c0_18] : memref<1x512xf32, #tpu.memory_space<vmem>>, vector<1x512xf32>
    %39 = vector.broadcast %38 : vector<1x512xf32> to vector<8x512xf32>
    %40 = arith.addf %37, %39 : vector<8x512xf32>
    %cst_19 = arith.constant 0.000000e+00 : f32
    %41 = vector.broadcast %cst_19 : f32 to vector<8x512xf32>
    %42 = arith.subf %41, %40 : vector<8x512xf32>
    %43 = math.exp %42 : vector<8x512xf32>
    %cst_20 = arith.constant 1.000000e+00 : f32
    %44 = vector.broadcast %cst_20 : f32 to vector<8x512xf32>
    %45 = arith.addf %44, %43 : vector<8x512xf32>
    %46 = tpu.reciprocal %45 {approx = true} : vector<8x512xf32> -> vector<8x512xf32>
    %cst_21 = arith.constant 1.000000e+00 : f32
    %47 = vector.broadcast %cst_21 : f32 to vector<8x512xf32>
    %48 = arith.subf %47, %46 : vector<8x512xf32>
    %49 = arith.mulf %46, %48 : vector<8x512xf32>
    %50 = vector.extract_strided_slice %36 {offsets = [8, 0], sizes = [32, 512], strides = [1, 1]} : vector<40x512xf32> to vector<32x512xf32>
    %51 = tpu.concatenate %49, %49, %49, %49 in 0 : vector<8x512xf32>, vector<8x512xf32>, vector<8x512xf32>, vector<8x512xf32> -> vector<32x512xf32>
    %52 = arith.mulf %50, %51 : vector<32x512xf32>
    %53 = arith.truncf %15 : vector<8x512xf32> to vector<8x512xbf16>
    %c0_22 = arith.constant 0 : index
    %c0_23 = arith.constant 0 : index
    %54 = vector.load %arg12[%c0_22, %c0_23] : memref<512x512xbf16, #tpu.memory_space<vmem>>, vector<512x512xbf16>
    %cst_24 = arith.constant dense<0.000000e+00> : vector<8x512xf32>
    %55 = tpu.matmul %53, %54, %cst_24 {dimension_numbers = #tpu.dot_dimension_numbers<[1], [0], [0], [1], [0, 0, 1, 1], [], []>} : vector<8x512xbf16>, vector<512x512xbf16>, vector<8x512xf32> -> vector<8x512xf32>
    %c0_25 = arith.constant 0 : index
    %c0_26 = arith.constant 0 : index
    %56 = vector.load %arg13[%c0_25, %c0_26] : memref<1x512xf32, #tpu.memory_space<vmem>>, vector<1x512xf32>
    %57 = vector.broadcast %56 : vector<1x512xf32> to vector<8x512xf32>
    %58 = arith.addf %55, %57 : vector<8x512xf32>
    %cst_27 = arith.constant 0.000000e+00 : f32
    %59 = vector.broadcast %cst_27 : f32 to vector<8x512xf32>
    %60 = arith.subf %59, %58 : vector<8x512xf32>
    %61 = math.exp %60 : vector<8x512xf32>
    %cst_28 = arith.constant 1.000000e+00 : f32
    %62 = vector.broadcast %cst_28 : f32 to vector<8x512xf32>
    %63 = arith.addf %62, %61 : vector<8x512xf32>
    %64 = tpu.reciprocal %63 {approx = true} : vector<8x512xf32> -> vector<8x512xf32>
    %65 = arith.truncf %64 : vector<8x512xf32> to vector<8x512xbf16>
    %c0_29 = arith.constant 0 : index
    %c0_30 = arith.constant 0 : index
    %66 = vector.load %arg14[%c0_29, %c0_30] : memref<512x4xbf16, #tpu.memory_space<vmem>>, vector<512x4xbf16>
    %cst_31 = arith.constant dense<0.000000e+00> : vector<8x4xf32>
    %67 = tpu.matmul %65, %66, %cst_31 {dimension_numbers = #tpu.dot_dimension_numbers<[1], [0], [0], [1], [0, 0, 1, 1], [], []>} : vector<8x512xbf16>, vector<512x4xbf16>, vector<8x4xf32> -> vector<8x4xf32>
    %c0_32 = arith.constant 0 : index
    %c0_33 = arith.constant 0 : index
    %68 = vector.load %arg15[%c0_32, %c0_33] : memref<1x4xf32, #tpu.memory_space<vmem>>, vector<1x4xf32>
    %69 = vector.broadcast %68 : vector<1x4xf32> to vector<8x4xf32>
    %70 = arith.addf %67, %69 : vector<8x4xf32>
    %71 = tpu.concatenate %46, %52 in 0 : vector<8x512xf32>, vector<32x512xf32> -> vector<40x512xf32>
    %72 = arith.truncf %71 : vector<40x512xf32> to vector<40x512xbf16>
    %c0_34 = arith.constant 0 : index
    %c0_35 = arith.constant 0 : index
    %73 = vector.load %arg8[%c0_34, %c0_35] : memref<512x512xbf16, #tpu.memory_space<vmem>>, vector<512x512xbf16>
    %cst_36 = arith.constant dense<0.000000e+00> : vector<40x512xf32>
    %74 = tpu.matmul %72, %73, %cst_36 {dimension_numbers = #tpu.dot_dimension_numbers<[1], [0], [0], [1], [0, 0, 1, 1], [], []>} : vector<40x512xbf16>, vector<512x512xbf16>, vector<40x512xf32> -> vector<40x512xf32>
    %75 = vector.extract_strided_slice %74 {offsets = [0, 0], sizes = [8, 512], strides = [1, 1]} : vector<40x512xf32> to vector<8x512xf32>
    %c0_37 = arith.constant 0 : index
    %c0_38 = arith.constant 0 : index
    %76 = vector.load %arg9[%c0_37, %c0_38] : memref<1x512xf32, #tpu.memory_space<vmem>>, vector<1x512xf32>
    %77 = vector.broadcast %76 : vector<1x512xf32> to vector<8x512xf32>
    %78 = arith.addf %75, %77 : vector<8x512xf32>
    %cst_39 = arith.constant 0.000000e+00 : f32
    %79 = vector.broadcast %cst_39 : f32 to vector<8x512xf32>
    %80 = arith.subf %79, %78 : vector<8x512xf32>
    %81 = math.exp %80 : vector<8x512xf32>
    %cst_40 = arith.constant 1.000000e+00 : f32
    %82 = vector.broadcast %cst_40 : f32 to vector<8x512xf32>
    %83 = arith.addf %82, %81 : vector<8x512xf32>
    %84 = tpu.reciprocal %83 {approx = true} : vector<8x512xf32> -> vector<8x512xf32>
    %cst_41 = arith.constant 1.000000e+00 : f32
    %85 = vector.broadcast %cst_41 : f32 to vector<8x512xf32>
    %86 = arith.subf %85, %84 : vector<8x512xf32>
    %87 = arith.mulf %84, %86 : vector<8x512xf32>
    %88 = vector.extract_strided_slice %74 {offsets = [8, 0], sizes = [32, 512], strides = [1, 1]} : vector<40x512xf32> to vector<32x512xf32>
    %89 = tpu.concatenate %87, %87, %87, %87 in 0 : vector<8x512xf32>, vector<8x512xf32>, vector<8x512xf32>, vector<8x512xf32> -> vector<32x512xf32>
    %90 = arith.mulf %88, %89 : vector<32x512xf32>
    %91 = tpu.concatenate %84, %90 in 0 : vector<8x512xf32>, vector<32x512xf32> -> vector<40x512xf32>
    %92 = arith.truncf %91 : vector<40x512xf32> to vector<40x512xbf16>
    %c0_42 = arith.constant 0 : index
    %c0_43 = arith.constant 0 : index
    %93 = vector.load %arg10[%c0_42, %c0_43] : memref<512x10xbf16, #tpu.memory_space<vmem>>, vector<512x10xbf16>
    %cst_44 = arith.constant dense<0.000000e+00> : vector<40x10xf32>
    %94 = tpu.matmul %92, %93, %cst_44 {dimension_numbers = #tpu.dot_dimension_numbers<[1], [0], [0], [1], [0, 0, 1, 1], [], []>} : vector<40x512xbf16>, vector<512x10xbf16>, vector<40x10xf32> -> vector<40x10xf32>
    %95 = vector.extract_strided_slice %94 {offsets = [0, 0], sizes = [8, 10], strides = [1, 1]} : vector<40x10xf32> to vector<8x10xf32>
    %c0_45 = arith.constant 0 : index
    %c0_46 = arith.constant 0 : index
    %96 = vector.load %arg11[%c0_45, %c0_46] : memref<1x10xf32, #tpu.memory_space<vmem>>, vector<1x10xf32>
    %97 = vector.broadcast %96 : vector<1x10xf32> to vector<8x10xf32>
    %98 = arith.addf %95, %97 : vector<8x10xf32>
    %99 = tpu.iota {dimensions = array<i32: 1>} : vector<8x10xi32>
    %c4_i32 = arith.constant 4 : i32
    %100 = vector.broadcast %c4_i32 : i32 to vector<8x10xi32>
    %101 = arith.cmpi slt, %99, %100 : vector<8x10xi32>
    %cst_47 = arith.constant 0.000000e+00 : f32
    %102 = vector.broadcast %cst_47 : f32 to vector<8x10xf32>
    %103 = arith.select %101, %98, %102 : vector<8x10xi1>, vector<8x10xf32>
    %104 = math.exp %103 : vector<8x10xf32>
    %105 = arith.select %101, %104, %98 : vector<8x10xi1>, vector<8x10xf32>
    %cst_48 = arith.constant 1.000000e+00 : f32
    %106 = vector.broadcast %cst_48 : f32 to vector<8x10xf32>
    %107 = arith.select %101, %105, %106 : vector<8x10xi1>, vector<8x10xf32>
    %108 = vector.extract_strided_slice %94 {offsets = [8, 0], sizes = [32, 10], strides = [1, 1]} : vector<40x10xf32> to vector<32x10xf32>
    %109 = tpu.concatenate %107, %107, %107, %107 in 0 : vector<8x10xf32>, vector<8x10xf32>, vector<8x10xf32>, vector<8x10xf32> -> vector<32x10xf32>
    %110 = arith.mulf %108, %109 : vector<32x10xf32>
    %111 = vector.extract_strided_slice %110 {offsets = [0, 0], sizes = [8, 10], strides = [1, 1]} : vector<32x10xf32> to vector<8x10xf32>
    %112 = vector.extract_strided_slice %110 {offsets = [8, 0], sizes = [8, 10], strides = [1, 1]} : vector<32x10xf32> to vector<8x10xf32>
    %113 = vector.extract_strided_slice %110 {offsets = [16, 0], sizes = [8, 10], strides = [1, 1]} : vector<32x10xf32> to vector<8x10xf32>
    %114 = vector.extract_strided_slice %110 {offsets = [24, 0], sizes = [8, 10], strides = [1, 1]} : vector<32x10xf32> to vector<8x10xf32>
    %c0_49 = arith.constant 0 : index
    %c0_50 = arith.constant 0 : index
    %115 = vector.load %arg16[%c0_49, %c0_50] : memref<4x10xf32, #tpu.memory_space<vmem>>, vector<4x10xf32>
    %c0_51 = arith.constant 0 : index
    %c0_52 = arith.constant 0 : index
    %116 = vector.load %arg17[%c0_51, %c0_52] : memref<10x4xf32, #tpu.memory_space<vmem>>, vector<10x4xf32>
    %c0_53 = arith.constant 0 : index
    %c0_54 = arith.constant 0 : index
    %117 = vector.load %arg18[%c0_53, %c0_54] : memref<10x4xf32, #tpu.memory_space<vmem>>, vector<10x4xf32>
    %c0_55 = arith.constant 0 : index
    %c0_56 = arith.constant 0 : index
    %118 = vector.load %arg19[%c0_55, %c0_56] : memref<4x10xf32, #tpu.memory_space<vmem>>, vector<4x10xf32>
    %119 = tpu.concatenate %1, %2 in 0 : vector<8x4xf32>, vector<8x4xf32> -> vector<16x4xf32>
    %cst_57 = arith.constant dense<0.000000e+00> : vector<16x10xf32>
    %120 = tpu.matmul %119, %115, %cst_57 {dimension_numbers = #tpu.dot_dimension_numbers<[1], [0], [0], [1], [0, 0, 1, 1], [], []>} : vector<16x4xf32>, vector<4x10xf32>, vector<16x10xf32> -> vector<16x10xf32>
    %121 = vector.extract_strided_slice %120 {offsets = [0, 0], sizes = [8, 10], strides = [1, 1]} : vector<16x10xf32> to vector<8x10xf32>
    %122 = vector.extract_strided_slice %120 {offsets = [8, 0], sizes = [8, 10], strides = [1, 1]} : vector<16x10xf32> to vector<8x10xf32>
    %123 = vector.extract_strided_slice %1 {offsets = [0, 0], sizes = [8, 1], strides = [1, 1]} : vector<8x4xf32> to vector<8x1xf32>
    %124 = vector.broadcast %123 : vector<8x1xf32> to vector<8x10xf32>
    %125 = arith.mulf %124, %111 : vector<8x10xf32>
    %126 = vector.extract_strided_slice %1 {offsets = [0, 1], sizes = [8, 1], strides = [1, 1]} : vector<8x4xf32> to vector<8x1xf32>
    %127 = vector.broadcast %126 : vector<8x1xf32> to vector<8x10xf32>
    %128 = arith.mulf %127, %112 : vector<8x10xf32>
    %129 = arith.addf %125, %128 : vector<8x10xf32>
    %130 = vector.extract_strided_slice %1 {offsets = [0, 2], sizes = [8, 1], strides = [1, 1]} : vector<8x4xf32> to vector<8x1xf32>
    %131 = vector.broadcast %130 : vector<8x1xf32> to vector<8x10xf32>
    %132 = arith.mulf %131, %113 : vector<8x10xf32>
    %133 = arith.addf %129, %132 : vector<8x10xf32>
    %134 = vector.extract_strided_slice %1 {offsets = [0, 3], sizes = [8, 1], strides = [1, 1]} : vector<8x4xf32> to vector<8x1xf32>
    %135 = vector.broadcast %134 : vector<8x1xf32> to vector<8x10xf32>
    %136 = arith.mulf %135, %114 : vector<8x10xf32>
    %137 = arith.addf %133, %136 : vector<8x10xf32>
    %138 = arith.mulf %121, %105 : vector<8x10xf32>
    %139 = arith.mulf %121, %137 : vector<8x10xf32>
    %140 = arith.mulf %122, %105 : vector<8x10xf32>
    %141 = tpu.concatenate %138, %139, %140 in 0 : vector<8x10xf32>, vector<8x10xf32>, vector<8x10xf32> -> vector<24x10xf32>
    %cst_58 = arith.constant dense<0.000000e+00> : vector<24x4xf32>
    %142 = tpu.matmul %141, %116, %cst_58 {dimension_numbers = #tpu.dot_dimension_numbers<[1], [0], [0], [1], [0, 0, 1, 1], [], []>} : vector<24x10xf32>, vector<10x4xf32>, vector<24x4xf32> -> vector<24x4xf32>
    %143 = vector.extract_strided_slice %142 {offsets = [0, 0], sizes = [8, 4], strides = [1, 1]} : vector<24x4xf32> to vector<8x4xf32>
    %144 = vector.extract_strided_slice %142 {offsets = [8, 0], sizes = [8, 4], strides = [1, 1]} : vector<24x4xf32> to vector<8x4xf32>
    %145 = vector.extract_strided_slice %142 {offsets = [16, 0], sizes = [8, 4], strides = [1, 1]} : vector<24x4xf32> to vector<8x4xf32>
    %146 = vector.extract_strided_slice %143 {offsets = [0, 0], sizes = [8, 1], strides = [1, 1]} : vector<8x4xf32> to vector<8x1xf32>
    %147 = vector.broadcast %146 : vector<8x1xf32> to vector<8x10xf32>
    %148 = arith.mulf %147, %111 : vector<8x10xf32>
    %149 = vector.extract_strided_slice %143 {offsets = [0, 1], sizes = [8, 1], strides = [1, 1]} : vector<8x4xf32> to vector<8x1xf32>
    %150 = vector.broadcast %149 : vector<8x1xf32> to vector<8x10xf32>
    %151 = arith.mulf %150, %112 : vector<8x10xf32>
    %152 = arith.addf %148, %151 : vector<8x10xf32>
    %153 = vector.extract_strided_slice %143 {offsets = [0, 2], sizes = [8, 1], strides = [1, 1]} : vector<8x4xf32> to vector<8x1xf32>
    %154 = vector.broadcast %153 : vector<8x1xf32> to vector<8x10xf32>
    %155 = arith.mulf %154, %113 : vector<8x10xf32>
    %156 = arith.addf %152, %155 : vector<8x10xf32>
    %157 = vector.extract_strided_slice %143 {offsets = [0, 3], sizes = [8, 1], strides = [1, 1]} : vector<8x4xf32> to vector<8x1xf32>
    %158 = vector.broadcast %157 : vector<8x1xf32> to vector<8x10xf32>
    %159 = arith.mulf %158, %114 : vector<8x10xf32>
    %160 = arith.addf %156, %159 : vector<8x10xf32>
    %161 = arith.mulf %160, %121 : vector<8x10xf32>
    %cst_59 = arith.constant dense<0.000000e+00> : vector<8x4xf32>
    %162 = tpu.matmul %161, %116, %cst_59 {dimension_numbers = #tpu.dot_dimension_numbers<[1], [0], [0], [1], [0, 0, 1, 1], [], []>} : vector<8x10xf32>, vector<10x4xf32>, vector<8x4xf32> -> vector<8x4xf32>
    %163 = tpu.concatenate %145, %144, %143 in 0 : vector<8x4xf32>, vector<8x4xf32>, vector<8x4xf32> -> vector<24x4xf32>
    %164 = tpu.concatenate %105, %105, %137 in 0 : vector<8x10xf32>, vector<8x10xf32>, vector<8x10xf32> -> vector<24x10xf32>
    %cst_60 = arith.constant dense<0.000000e+00> : vector<24x10xf32>
    %165 = tpu.matmul %163, %118, %cst_60 {dimension_numbers = #tpu.dot_dimension_numbers<[1], [0], [0], [1], [0, 0, 1, 1], [], []>} : vector<24x4xf32>, vector<4x10xf32>, vector<24x10xf32> -> vector<24x10xf32>
    %166 = arith.mulf %165, %164 : vector<24x10xf32>
    %cst_61 = arith.constant dense<0.000000e+00> : vector<24x4xf32>
    %167 = tpu.matmul %166, %117, %cst_61 {dimension_numbers = #tpu.dot_dimension_numbers<[1], [0], [0], [1], [0, 0, 1, 1], [], []>} : vector<24x10xf32>, vector<10x4xf32>, vector<24x4xf32> -> vector<24x4xf32>
    %168 = vector.extract_strided_slice %167 {offsets = [0, 0], sizes = [8, 4], strides = [1, 1]} : vector<24x4xf32> to vector<8x4xf32>
    %169 = vector.extract_strided_slice %167 {offsets = [8, 0], sizes = [8, 4], strides = [1, 1]} : vector<24x4xf32> to vector<8x4xf32>
    %170 = vector.extract_strided_slice %167 {offsets = [16, 0], sizes = [8, 4], strides = [1, 1]} : vector<24x4xf32> to vector<8x4xf32>
    %171 = arith.addf %168, %169 : vector<8x4xf32>
    %172 = arith.addf %171, %170 : vector<8x4xf32>
    %cst_62 = arith.constant 5.000000e-01 : f32
    %173 = vector.broadcast %cst_62 : f32 to vector<8x4xf32>
    %174 = arith.mulf %173, %162 : vector<8x4xf32>
    %175 = arith.subf %172, %174 : vector<8x4xf32>
    %cst_63 = arith.constant 5.000000e-01 : f32
    %176 = vector.broadcast %cst_63 : f32 to vector<8x4xf32>
    %177 = arith.mulf %176, %170 : vector<8x4xf32>
    %178 = arith.subf %175, %177 : vector<8x4xf32>
    %179 = arith.addf %178, %70 : vector<8x4xf32>
    %c0_64 = arith.constant 0 : index
    %c0_65 = arith.constant 0 : index
    %180 = vector.load %arg20[%c0_64, %c0_65] : memref<8x4xf32, #tpu.memory_space<vmem>>, vector<8x4xf32>
    tpu.vector_store %arg20[%c0_64, %c0_65], %179 {strides = array<i32>} : memref<8x4xf32, #tpu.memory_space<vmem>>, vector<8x4xf32>,
    return
  }
  func.func @transform_0(%arg0: i32) -> (i32, i32) {
    %c0_i32 = arith.constant 0 : i32
    %c0_i32_0 = arith.constant 0 : i32
    return %arg0, %c0_i32 : i32, i32
  }
  func.func @transform_1(%arg0: i32) -> (i32, i32) {
    %c0_i32 = arith.constant 0 : i32
    %c0_i32_0 = arith.constant 0 : i32
    return %arg0, %c0_i32 : i32, i32
  }
  func.func @transform_2(%arg0: i32) -> (i32, i32) {
    %c0_i32 = arith.constant 0 : i32
    %c0_i32_0 = arith.constant 0 : i32
    return %arg0, %c0_i32 : i32, i32
  }
  func.func @transform_3(%arg0: i32) -> (i32, i32) {
    %c0_i32 = arith.constant 0 : i32
    %c0_i32_0 = arith.constant 0 : i32
    %c0_i32_1 = arith.constant 0 : i32
    return %c0_i32, %c0_i32_0 : i32, i32
  }
  func.func @transform_4(%arg0: i32) -> (i32, i32) {
    %c0_i32 = arith.constant 0 : i32
    %c0_i32_0 = arith.constant 0 : i32
    %c0_i32_1 = arith.constant 0 : i32
    return %c0_i32, %c0_i32_0 : i32, i32
  }
  func.func @transform_5(%arg0: i32) -> (i32, i32) {
    %c0_i32 = arith.constant 0 : i32
    %c0_i32_0 = arith.constant 0 : i32
    %c0_i32_1 = arith.constant 0 : i32
    return %c0_i32, %c0_i32_0 : i32, i32
  }
  func.func @transform_6(%arg0: i32) -> (i32, i32) {
    %c0_i32 = arith.constant 0 : i32
    %c0_i32_0 = arith.constant 0 : i32
    %c0_i32_1 = arith.constant 0 : i32
    return %c0_i32, %c0_i32_0 : i32, i32
  }
  func.func @transform_7(%arg0: i32) -> (i32, i32) {
    %c0_i32 = arith.constant 0 : i32
    %c0_i32_0 = arith.constant 0 : i32
    %c0_i32_1 = arith.constant 0 : i32
    return %c0_i32, %c0_i32_0 : i32, i32
  }
  func.func @transform_8(%arg0: i32) -> (i32, i32) {
    %c0_i32 = arith.constant 0 : i32
    %c0_i32_0 = arith.constant 0 : i32
    %c0_i32_1 = arith.constant 0 : i32
    return %c0_i32, %c0_i32_0 : i32, i32
  }
  func.func @transform_9(%arg0: i32) -> (i32, i32) {
    %c0_i32 = arith.constant 0 : i32
    %c0_i32_0 = arith.constant 0 : i32
    %c0_i32_1 = arith.constant 0 : i32
    return %c0_i32, %c0_i32_0 : i32, i32
  }
  func.func @transform_10(%arg0: i32) -> (i32, i32) {
    %c0_i32 = arith.constant 0 : i32
    %c0_i32_0 = arith.constant 0 : i32
    %c0_i32_1 = arith.constant 0 : i32
    return %c0_i32, %c0_i32_0 : i32, i32
  }
  func.func @transform_11(%arg0: i32) -> (i32, i32) {
    %c0_i32 = arith.constant 0 : i32
    %c0_i32_0 = arith.constant 0 : i32
    %c0_i32_1 = arith.constant 0 : i32
    return %c0_i32, %c0_i32_0 : i32, i32
  }
  func.func @transform_12(%arg0: i32) -> (i32, i32) {
    %c0_i32 = arith.constant 0 : i32
    %c0_i32_0 = arith.constant 0 : i32
    %c0_i32_1 = arith.constant 0 : i32
    return %c0_i32, %c0_i32_0 : i32, i32
  }
  func.func @transform_13(%arg0: i32) -> (i32, i32) {
    %c0_i32 = arith.constant 0 : i32
    %c0_i32_0 = arith.constant 0 : i32
    %c0_i32_1 = arith.constant 0 : i32
    return %c0_i32, %c0_i32_0 : i32, i32
  }
  func.func @transform_14(%arg0: i32) -> (i32, i32) {
    %c0_i32 = arith.constant 0 : i32
    %c0_i32_0 = arith.constant 0 : i32
    %c0_i32_1 = arith.constant 0 : i32
    return %c0_i32, %c0_i32_0 : i32, i32
  }
  func.func @transform_15(%arg0: i32) -> (i32, i32) {
    %c0_i32 = arith.constant 0 : i32
    %c0_i32_0 = arith.constant 0 : i32
    %c0_i32_1 = arith.constant 0 : i32
    return %c0_i32, %c0_i32_0 : i32, i32
  }
  func.func @transform_16(%arg0: i32) -> (i32, i32) {
    %c0_i32 = arith.constant 0 : i32
    %c0_i32_0 = arith.constant 0 : i32
    %c0_i32_1 = arith.constant 0 : i32
    return %c0_i32, %c0_i32_0 : i32, i32
  }
  func.func @transform_17(%arg0: i32) -> (i32, i32) {
    %c0_i32 = arith.constant 0 : i32
    %c0_i32_0 = arith.constant 0 : i32
    %c0_i32_1 = arith.constant 0 : i32
    return %c0_i32, %c0_i32_0 : i32, i32
  }
  func.func @transform_18(%arg0: i32) -> (i32, i32) {
    %c0_i32 = arith.constant 0 : i32
    %c0_i32_0 = arith.constant 0 : i32
    %c0_i32_1 = arith.constant 0 : i32
    return %c0_i32, %c0_i32_0 : i32, i32
  }
  func.func @transform_19(%arg0: i32) -> (i32, i32) {
    %c0_i32 = arith.constant 0 : i32
    %c0_i32_0 = arith.constant 0 : i32
    return %arg0, %c0_i32 : i32, i32
  }
}

</mosaic_0001>

<llo_original>
// kernel: lagnet_forward.1
$region0: #{lagnet_forward.1}
  #allocation0 [shape = 'u32[]', space=smem, size = 0x4, offset = 0x4, fixed_abs, tag = 'smem constant byte address 0x4 - core index']
  #allocation1 [shape = 'u32[72,128]{1,0:T(1,128)}', space=vmem, size = 0x9000, scoped, tag = 'internal scratch']
  %s0 = inlined_call_operand.vmem [shape: f32[8,4], index: 0, kind: input, shape index: {}]
  %s1 = inlined_call_operand.vmem [shape: f32[8,4], index: 1, kind: input, shape index: {}]
  %s2 = inlined_call_operand.vmem [shape: f32[8,4], index: 2, kind: input, shape index: {}]
  %s3 = inlined_call_operand.vmem [shape: f32[4,1024], index: 3, kind: input, shape index: {}]
  %s4 = inlined_call_operand.vmem [shape: f32[1,1024], index: 4, kind: input, shape index: {}]
  %s5 = inlined_call_operand.hbm [shape: bf16[512,512], index: 5, kind: input, shape index: {}]
  %s6 = inlined_call_operand.vmem [shape: f32[1,512], index: 6, kind: input, shape index: {}]
  %s7 = inlined_call_operand.hbm [shape: bf16[512,512], index: 7, kind: input, shape index: {}]
  %s8 = inlined_call_operand.vmem [shape: f32[1,512], index: 8, kind: input, shape index: {}]
  %s9 = inlined_call_operand.vmem [shape: bf16[512,10], index: 9, kind: input, shape index: {}]
  %s10 = inlined_call_operand.vmem [shape: f32[1,10], index: 10, kind: input, shape index: {}]
  %s11 = inlined_call_operand.hbm [shape: bf16[512,512], index: 11, kind: input, shape index: {}]
  %s12 = inlined_call_operand.vmem [shape: f32[1,512], index: 12, kind: input, shape index: {}]
  %s13 = inlined_call_operand.vmem [shape: bf16[512,4], index: 13, kind: input, shape index: {}]
  %s14 = inlined_call_operand.vmem [shape: f32[1,4], index: 14, kind: input, shape index: {}]
  %s15 = inlined_call_operand.vmem [shape: f32[4,10], index: 15, kind: input, shape index: {}]
  %s16 = inlined_call_operand.vmem [shape: f32[10,4], index: 16, kind: input, shape index: {}]
  %s17 = inlined_call_operand.vmem [shape: f32[10,4], index: 17, kind: input, shape index: {}]
  %s18 = inlined_call_operand.vmem [shape: f32[4,10], index: 18, kind: input, shape index: {}]
  %s19 = inlined_call_operand.vmem [shape: f32[8,4], index: 19, kind: output, shape index: {}]
  %s20 = sld [smem:[#allocation0]]
  $region98: #{lagnet_forward.1} parent=0
    _
  %s22 = ssub.s32 1, %s20
  %s23 = scalar_select 0, %s22, %s20
  $region1: #{lagnet_forward.1} parent=0
    #allocation2 [shape = 'u8[524288]{0}', space=vmem, size = 0x80000, scoped, tag = 'input window, operand 5, single buffered']
    #allocation3 [shape = 's32[1]{0}', space=sflag, size = 0x4, scoped, tag = 'scoped memory for lagnet_forward.1']
    #allocation4 [shape = 'u8[524288]{0}', space=vmem, size = 0x80000, scoped, tag = 'input window, operand 7, single buffered']
    #allocation5 [shape = 's32[1]{0}', space=sflag, size = 0x4, scoped, tag = 'scoped memory for lagnet_forward.1']
    #allocation6 [shape = 'u8[524288]{0}', space=vmem, size = 0x80000, scoped, tag = 'input window, operand 11, single buffered']
    %24 = vsyncpa [#allocation3], 0
    %25 = vsyncpa [#allocation5], 0
    // Predicated region
    $region2: #{lagnet_forward.1} parent=1 // pred_check
      _
    $region3: #{lagnet_forward.1} parent=1 // pred_check_branch
      %27 = sbr.rel (0) target = $region5
    $region4: #{lagnet_forward.1} parent=1 // pred_region
      _
    $region5: #{lagnet_forward.1} parent=1 // pred_fallthru
      _
    // Predicated region
    $region6: #{lagnet_forward.1} parent=1 // pred_check
      _
    $region7: #{lagnet_forward.1} parent=1 // pred_check_branch
      %29 = sbr.rel (0) target = $region9
    $region8: #{lagnet_forward.1} parent=1 // pred_region
      _
    $region9: #{lagnet_forward.1} parent=1 // pred_fallthru
      _
    // Predicated region
    $region10: #{lagnet_forward.1} parent=1 // pred_check
      _
    $region11: #{lagnet_forward.1} parent=1 // pred_check_branch
      %31 = sbr.rel (0) target = $region13
    $region12: #{lagnet_forward.1} parent=1 // pred_region
      _
    $region13: #{lagnet_forward.1} parent=1 // pred_fallthru
      _
    // Predicated region
    $region14: #{lagnet_forward.1} parent=1 // pred_check
      _
    $region15: #{lagnet_forward.1} parent=1 // pred_check_branch
      %33 = sbr.rel (0) target = $region17
    $region16: #{lagnet_forward.1} parent=1 // pred_region
      _
    $region17: #{lagnet_forward.1} parent=1 // pred_fallthru
      _
    // Predicated region
    $region18: #{lagnet_forward.1} parent=1 // pred_check
      _
    $region19: #{lagnet_forward.1} parent=1 // pred_check_branch
      %35 = sbr.rel (0) target = $region21
    $region20: #{lagnet_forward.1} parent=1 // pred_region
      _
    $region21: #{lagnet_forward.1} parent=1 // pred_fallthru
      _
    // Predicated region
    $region22: #{lagnet_forward.1} parent=1 // pred_check
      _
    $region23: #{lagnet_forward.1} parent=1 // pred_check_branch
      %37 = sbr.rel (0) target = $region25
    $region24: #{lagnet_forward.1} parent=1 // pred_region
      %39 = vsyncadd [#allocation3], 0
      %s40 = sshll.u32 %s5, 4
      %s41 = int_to_ptr.hbm [resolvable:$true] %s40
      %s42 = sshll.u32 [#allocation2], 4
      %s43 = int_to_ptr.vmem [resolvable:$true] %s42
      %48 = dma.hbm_to_vmem [thread:$0]  %s41, 16384, %s43, [#allocation3], 256, 256, 16
    $region25: #{lagnet_forward.1} parent=1 // pred_fallthru
      _
    // Predicated region
    $region26: #{lagnet_forward.1} parent=1 // pred_check
      _
    $region27: #{lagnet_forward.1} parent=1 // pred_check_branch
      %50 = sbr.rel (0) target = $region29
    $region28: #{lagnet_forward.1} parent=1 // pred_region
      _
    $region29: #{lagnet_forward.1} parent=1 // pred_fallthru
      _
    // Predicated region
    $region30: #{lagnet_forward.1} parent=1 // pred_check
      _
    $region31: #{lagnet_forward.1} parent=1 // pred_check_branch
      %52 = sbr.rel (0) target = $region33
    $region32: #{lagnet_forward.1} parent=1 // pred_region
      %54 = vsyncadd [#allocation5], 0
      %s55 = sshll.u32 %s7, 4
      %s56 = int_to_ptr.hbm [resolvable:$true] %s55
      %s57 = sshll.u32 [#allocation4], 4
      %s58 = int_to_ptr.vmem [resolvable:$true] %s57
      %63 = dma.hbm_to_vmem [thread:$0]  %s56, 16384, %s58, [#allocation5], 256, 256, 16
    $region33: #{lagnet_forward.1} parent=1 // pred_fallthru
      _
    // Predicated region
    $region34: #{lagnet_forward.1} parent=1 // pred_check
      _
    $region35: #{lagnet_forward.1} parent=1 // pred_check_branch
      %65 = sbr.rel (0) target = $region37
    $region36: #{lagnet_forward.1} parent=1 // pred_region
      _
    $region37: #{lagnet_forward.1} parent=1 // pred_fallthru
      _
    // Predicated region
    $region38: #{lagnet_forward.1} parent=1 // pred_check
      _
    $region39: #{lagnet_forward.1} parent=1 // pred_check_branch
      %67 = sbr.rel (0) target = $region41
    $region40: #{lagnet_forward.1} parent=1 // pred_region
      _
    $region41: #{lagnet_forward.1} parent=1 // pred_fallthru
      _
    // Predicated region
    $region42: #{lagnet_forward.1} parent=1 // pred_check
      _
    $region43: #{lagnet_forward.1} parent=1 // pred_check_branch
      %69 = sbr.rel (0) target = $region45
    $region44: #{lagnet_forward.1} parent=1 // pred_region
      _
    $region45: #{lagnet_forward.1} parent=1 // pred_fallthru
      _
    // Predicated region
    $region46: #{lagnet_forward.1} parent=1 // pred_check
      _
    $region47: #{lagnet_forward.1} parent=1 // pred_check_branch
      %71 = sbr.rel (0) target = $region49
    $region48: #{lagnet_forward.1} parent=1 // pred_region
      %73 = vsyncadd [#allocation5], 0
      %s74 = sshll.u32 %s11, 4
      %s75 = int_to_ptr.hbm [resolvable:$true] %s74
      %s76 = sshll.u32 [#allocation6], 4
      %s77 = int_to_ptr.vmem [resolvable:$true] %s76
      %82 = dma.hbm_to_vmem [thread:$0]  %s75, 16384, %s77, [#allocation5], 256, 256, 16
    $region49: #{lagnet_forward.1} parent=1 // pred_fallthru
      _
    // Predicated region
    $region50: #{lagnet_forward.1} parent=1 // pred_check
      _
    $region51: #{lagnet_forward.1} parent=1 // pred_check_branch
      %84 = sbr.rel (0) target = $region53
    $region52: #{lagnet_forward.1} parent=1 // pred_region
      _
    $region53: #{lagnet_forward.1} parent=1 // pred_fallthru
      _
    // Predicated region
    $region54: #{lagnet_forward.1} parent=1 // pred_check
      _
    $region55: #{lagnet_forward.1} parent=1 // pred_check_branch
      %86 = sbr.rel (0) target = $region57
    $region56: #{lagnet_forward.1} parent=1 // pred_region
      _
    $region57: #{lagnet_forward.1} parent=1 // pred_fallthru
      _
    // Predicated region
    $region58: #{lagnet_forward.1} parent=1 // pred_check
      _
    $region59: #{lagnet_forward.1} parent=1 // pred_check_branch
      %88 = sbr.rel (0) target = $region61
    $region60: #{lagnet_forward.1} parent=1 // pred_region
      _
    $region61: #{lagnet_forward.1} parent=1 // pred_fallthru
      _
    // Predicated region
    $region62: #{lagnet_forward.1} parent=1 // pred_check
      _
    $region63: #{lagnet_forward.1} parent=1 // pred_check_branch
      %90 = sbr.rel (0) target = $region65
    $region64: #{lagnet_forward.1} parent=1 // pred_region
      _
    $region65: #{lagnet_forward.1} parent=1 // pred_fallthru
      _
    // Predicated region
    $region66: #{lagnet_forward.1} parent=1 // pred_check
      _
    $region67: #{lagnet_forward.1} parent=1 // pred_check_branch
      %92 = sbr.rel (0) target = $region69
    $region68: #{lagnet_forward.1} parent=1 // pred_region
      _
    $region69: #{lagnet_forward.1} parent=1 // pred_fallthru
      _
    // Predicated region
    $region70: #{lagnet_forward.1} parent=1 // pred_check
      _
    $region71: #{lagnet_forward.1} parent=1 // pred_check_branch
      %94 = sbr.rel (0) target = $region73
    $region72: #{lagnet_forward.1} parent=1 // pred_region
      _
    $region73: #{lagnet_forward.1} parent=1 // pred_fallthru
      _
    // Predicated region
    $region74: #{lagnet_forward.1} parent=1 // pred_check
      _
    $region75: #{lagnet_forward.1} parent=1 // pred_check_branch
      %96 = sbr.rel (0) target = $region77
    $region76: #{lagnet_forward.1} parent=1 // pred_region
      _
    $region77: #{lagnet_forward.1} parent=1 // pred_fallthru
      _
    // Predicated region
    $region78: #{lagnet_forward.1} parent=1 // pred_check
      _
    $region79: #{lagnet_forward.1} parent=1 // pred_check_branch
      %98 = sbr.rel (0) target = $region81
    $region80: #{lagnet_forward.1} parent=1 // pred_region
      %100 = dma.done [#allocation3], 16384
    $region81: #{lagnet_forward.1} parent=1 // pred_fallthru
      _
    // Predicated region
    $region82: #{lagnet_forward.1} parent=1 // pred_check
      _
    $region83: #{lagnet_forward.1} parent=1 // pred_check_branch
      %102 = sbr.rel (0) target = $region85
    $region84: #{lagnet_forward.1} parent=1 // pred_region
      %104 = dma.done [#allocation5], 16384
    $region85: #{lagnet_forward.1} parent=1 // pred_fallthru
      _
    // Predicated region
    $region86: #{lagnet_forward.1} parent=1 // pred_check
      _
    $region87: #{lagnet_forward.1} parent=1 // pred_check_branch
      %106 = sbr.rel (0) target = $region89
    $region88: #{lagnet_forward.1} parent=1 // pred_region
      %108 = dma.done [#allocation5], 16384
    $region89: #{lagnet_forward.1} parent=1 // pred_fallthru
      _
    %v109 = vld [vmem:[%s0] sm:$0xff]
    %v110 = vld [vmem:[%s1] sm:$0xff]
    %v111 = vld [vmem:[%s2] sm:$0xff]
    %v112 = vld [vmem:[%s3] sm:$0xff]
    %v113 = vld [vmem:[%s3 + $0x8] sm:$0xff]
    %v114 = vld [vmem:[%s3 + $0x10] sm:$0xff]
    %v115 = vld [vmem:[%s3 + $0x18] sm:$0xff]
    %v116 = vld [vmem:[%s4] sm:$0xff]
    %v118 = vperm.slane %v116, 0
    %v119 = vperm.slane %v116, 1
    %v120 = vperm.slane %v116, 2
    %v121 = vperm.slane %v116, 3
    %v122 = vperm.slane %v116, 4
    %v123 = vperm.slane %v116, 5
    %v124 = vperm.slane %v116, 6
    %v125 = vperm.slane %v116, 7
    %138 = vst [vmem:[#allocation1] ss:$2 sm:$0xff] %v112
    %s139 = scalar_lea.vmem [#allocation1], 16
    %140 = vst [vmem:[%s139] ss:$2 sm:$0xff] %v113
    %s141 = scalar_lea.vmem [#allocation1], 32
    %142 = vst [vmem:[%s141] ss:$2 sm:$0xff] %v114
    %s143 = scalar_lea.vmem [#allocation1], 48
    %144 = vst [vmem:[%s143] ss:$2 sm:$0xff] %v115
    %v145 = vld.sshfl [vmem:[#allocation1] sm:$0xff pattern:$0x75316420]
    %v146 = vld.sshfl [vmem:[#allocation1 + $0x8] sm:$0xff pattern:$0x75316420]
    %v147 = vld.sshfl [vmem:[#allocation1 + $0x10] sm:$0xff pattern:$0x75316420]
    %v148 = vld.sshfl [vmem:[#allocation1 + $0x18] sm:$0xff pattern:$0x75316420]
    %v149 = vld.sshfl [vmem:[#allocation1 + $0x20] sm:$0xff pattern:$0x75316420]
    %v150 = vld.sshfl [vmem:[#allocation1 + $0x28] sm:$0xff pattern:$0x75316420]
    %v151 = vld.sshfl [vmem:[#allocation1 + $0x30] sm:$0xff pattern:$0x75316420]
    %v152 = vld.sshfl [vmem:[#allocation1 + $0x38] sm:$0xff pattern:$0x75316420]
    %vm153 = vcmask 31744
    %v155 = vsel %vm153, %v109, 0
    %vm157 = vcmask 1043456
    %v158 = vsel %vm157, %v145, 0
    %v160 = vsel %vm157, %v146, 0
    %v162 = vsel %vm157, %v147, 0
    %v164 = vsel %vm157, %v148, 0
    %v166 = vsel %vm157, %v149, 0
    %v168 = vsel %vm157, %v150, 0
    %v170 = vsel %vm157, %v151, 0
    %v172 = vsel %vm157, %v152, 0
    %174 = vmatpush.msra.mxu0 0.0
    %175 = vmatpush.msra.mxu0 0.0
    %176 = vmatpush.msra.mxu0 0.0
    %177 = vmatpush.msra.mxu0 0.0
    %178 = vmatpush.msra.mxu0 0.0
    %179 = vmatpush.msra.mxu0 0.0
    %180 = vmatpush.msra.mxu0 0.0
    %181 = vmatpush.msra.mxu0 0.0
    %182 = vmatpush.msra.mxu0 0.0
    %183 = vmatpush.msra.mxu0 0.0
    %184 = vmatpush.msra.mxu0 0.0
    %185 = vmatpush.msra.mxu0 0.0
    %186 = vmatpush.msra.mxu0 0.0
    %187 = vmatpush.msra.mxu0 0.0
    %188 = vmatpush.msra.mxu0 0.0
    %189 = vmatpush.msra.mxu0 %v158
    %190 = vmatmul.f32.gmra.mxu0 %v155
    %v191 = vpop.f32.mrf.mxu0
    %v192 = vadd.f32 %v118, %v191
    %193 = vdwg.mxu0
    %194 = vmatpush.msra.mxu0 0.0
    %195 = vmatpush.msra.mxu0 0.0
    %196 = vmatpush.msra.mxu0 0.0
    %197 = vmatpush.msra.mxu0 0.0
    %198 = vmatpush.msra.mxu0 0.0
    %199 = vmatpush.msra.mxu0 0.0
    %200 = vmatpush.msra.mxu0 0.0
    %201 = vmatpush.msra.mxu0 0.0
    %202 = vmatpush.msra.mxu0 0.0
    %203 = vmatpush.msra.mxu0 0.0
    %204 = vmatpush.msra.mxu0 0.0
    %205 = vmatpush.msra.mxu0 0.0
    %206 = vmatpush.msra.mxu0 0.0
    %207 = vmatpush.msra.mxu0 0.0
    %208 = vmatpush.msra.mxu0 0.0
    %209 = vmatpush.msra.mxu0 %v160
    %210 = vmatmul.f32.gmra.mxu0 %v155
    %v211 = vpop.f32.mrf.mxu0
    %v212 = vadd.f32 %v119, %v211
    %213 = vdwg.mxu0
    %214 = vmatpush.msra.mxu0 0.0
    %215 = vmatpush.msra.mxu0 0.0
    %216 = vmatpush.msra.mxu0 0.0
    %217 = vmatpush.msra.mxu0 0.0
    %218 = vmatpush.msra.mxu0 0.0
    %219 = vmatpush.msra.mxu0 0.0
    %220 = vmatpush.msra.mxu0 0.0
    %221 = vmatpush.msra.mxu0 0.0
    %222 = vmatpush.msra.mxu0 0.0
    %223 = vmatpush.msra.mxu0 0.0
    %224 = vmatpush.msra.mxu0 0.0
    %225 = vmatpush.msra.mxu0 0.0
    %226 = vmatpush.msra.mxu0 0.0
    %227 = vmatpush.msra.mxu0 0.0
    %228 = vmatpush.msra.mxu0 0.0
    %229 = vmatpush.msra.mxu0 %v162
    %230 = vmatmul.f32.gmra.mxu0 %v155
    %v231 = vpop.f32.mrf.mxu0
    %v232 = vadd.f32 %v120, %v231
    %233 = vdwg.mxu0
    %234 = vmatpush.msra.mxu0 0.0
    %235 = vmatpush.msra.mxu0 0.0
    %236 = vmatpush.msra.mxu0 0.0
    %237 = vmatpush.msra.mxu0 0.0
    %238 = vmatpush.msra.mxu0 0.0
    %239 = vmatpush.msra.mxu0 0.0
    %240 = vmatpush.msra.mxu0 0.0
    %241 = vmatpush.msra.mxu0 0.0
    %242 = vmatpush.msra.mxu0 0.0
    %243 = vmatpush.msra.mxu0 0.0
    %244 = vmatpush.msra.mxu0 0.0
    %245 = vmatpush.msra.mxu0 0.0
    %246 = vmatpush.msra.mxu0 0.0
    %247 = vmatpush.msra.mxu0 0.0
    %248 = vmatpush.msra.mxu0 0.0
    %249 = vmatpush.msra.mxu0 %v164
    %250 = vmatmul.f32.gmra.mxu0 %v155
    %v251 = vpop.f32.mrf.mxu0
    %v252 = vadd.f32 %v121, %v251
    %253 = vdwg.mxu0
    %254 = vmatpush.msra.mxu0 0.0
    %255 = vmatpush.msra.mxu0 0.0
    %256 = vmatpush.msra.mxu0 0.0
    %257 = vmatpush.msra.mxu0 0.0
    %258 = vmatpush.msra.mxu0 0.0
    %259 = vmatpush.msra.mxu0 0.0
    %260 = vmatpush.msra.mxu0 0.0
    %261 = vmatpush.msra.mxu0 0.0
    %262 = vmatpush.msra.mxu0 0.0
    %263 = vmatpush.msra.mxu0 0.0
    %264 = vmatpush.msra.mxu0 0.0
    %265 = vmatpush.msra.mxu0 0.0
    %266 = vmatpush.msra.mxu0 0.0
    %267 = vmatpush.msra.mxu0 0.0
    %268 = vmatpush.msra.mxu0 0.0
    %269 = vmatpush.msra.mxu0 %v166
    %270 = vmatmul.f32.gmra.mxu0 %v155
    %v271 = vpop.f32.mrf.mxu0
    %v272 = vadd.f32 %v122, %v271
    %273 = vdwg.mxu0
    %274 = vmatpush.msra.mxu0 0.0
    %275 = vmatpush.msra.mxu0 0.0
    %276 = vmatpush.msra.mxu0 0.0
    %277 = vmatpush.msra.mxu0 0.0
    %278 = vmatpush.msra.mxu0 0.0
    %279 = vmatpush.msra.mxu0 0.0
    %280 = vmatpush.msra.mxu0 0.0
    %281 = vmatpush.msra.mxu0 0.0
    %282 = vmatpush.msra.mxu0 0.0
    %283 = vmatpush.msra.mxu0 0.0
    %284 = vmatpush.msra.mxu0 0.0
    %285 = vmatpush.msra.mxu0 0.0
    %286 = vmatpush.msra.mxu0 0.0
    %287 = vmatpush.msra.mxu0 0.0
    %288 = vmatpush.msra.mxu0 0.0
    %289 = vmatpush.msra.mxu0 %v168
    %290 = vmatmul.f32.gmra.mxu0 %v155
    %v291 = vpop.f32.mrf.mxu0
    %v292 = vadd.f32 %v123, %v291
    %293 = vdwg.mxu0
    %294 = vmatpush.msra.mxu0 0.0
    %295 = vmatpush.msra.mxu0 0.0
    %296 = vmatpush.msra.mxu0 0.0
    %297 = vmatpush.msra.mxu0 0.0
    %298 = vmatpush.msra.mxu0 0.0
    %299 = vmatpush.msra.mxu0 0.0
    %300 = vmatpush.msra.mxu0 0.0
    %301 = vmatpush.msra.mxu0 0.0
    %302 = vmatpush.msra.mxu0 0.0
    %303 = vmatpush.msra.mxu0 0.0
    %304 = vmatpush.msra.mxu0 0.0
    %305 = vmatpush.msra.mxu0 0.0
    %306 = vmatpush.msra.mxu0 0.0
    %307 = vmatpush.msra.mxu0 0.0
    %308 = vmatpush.msra.mxu0 0.0
    %309 = vmatpush.msra.mxu0 %v170
    %310 = vmatmul.f32.gmra.mxu0 %v155
    %v311 = vpop.f32.mrf.mxu0
    %v312 = vadd.f32 %v124, %v311
    %313 = vdwg.mxu0
    %314 = vmatpush.msra.mxu0 0.0
    %315 = vmatpush.msra.mxu0 0.0
    %316 = vmatpush.msra.mxu0 0.0
    %317 = vmatpush.msra.mxu0 0.0
    %318 = vmatpush.msra.mxu0 0.0
    %319 = vmatpush.msra.mxu0 0.0
    %320 = vmatpush.msra.mxu0 0.0
    %321 = vmatpush.msra.mxu0 0.0
    %322 = vmatpush.msra.mxu0 0.0
    %323 = vmatpush.msra.mxu0 0.0
    %324 = vmatpush.msra.mxu0 0.0
    %325 = vmatpush.msra.mxu0 0.0
    %326 = vmatpush.msra.mxu0 0.0
    %327 = vmatpush.msra.mxu0 0.0
    %328 = vmatpush.msra.mxu0 0.0
    %329 = vmatpush.msra.mxu0 %v172
    %330 = vmatmul.f32.gmra.mxu0 %v155
    %v331 = vpop.f32.mrf.mxu0
    %v332 = vadd.f32 %v125, %v331
    %333 = vdwg.mxu0
    %v334 = vsub.f32 0.0, %v192
    %v335 = vsub.f32 0.0, %v212
    %v336 = vsub.f32 0.0, %v232
    %v337 = vsub.f32 0.0, %v252
    %v338 = vsub.f32 0.0, %v272
    %v339 = vsub.f32 0.0, %v292
    %v340 = vsub.f32 0.0, %v312
    %v341 = vsub.f32 0.0, %v332
    %v342 = vmul.f32 %v334, 1.442695
    %v343 = vpow.pop %v342
    %v344 = vmul.f32 %v335, 1.442695
    %v345 = vpow.pop %v344
    %v346 = vmul.f32 %v336, 1.442695
    %v347 = vpow.pop %v346
    %v348 = vmul.f32 %v337, 1.442695
    %v349 = vpow.pop %v348
    %v350 = vmul.f32 %v338, 1.442695
    %v351 = vpow.pop %v350
    %v352 = vmul.f32 %v339, 1.442695
    %v353 = vpow.pop %v352
    %v354 = vmul.f32 %v340, 1.442695
    %v355 = vpow.pop %v354
    %v356 = vmul.f32 %v341, 1.442695
    %v357 = vpow.pop %v356
    %v358 = vadd.f32 %v343, 1.0
    %v359 = vadd.f32 %v345, 1.0
    %v360 = vadd.f32 %v347, 1.0
    %v361 = vadd.f32 %v349, 1.0
    %v362 = vadd.f32 %v351, 1.0
    %v363 = vadd.f32 %v353, 1.0
    %v364 = vadd.f32 %v355, 1.0
    %v365 = vadd.f32 %v357, 1.0
    %v366 = vrcp.pop %v358
    %v367 = vrcp.pop %v359
    %v368 = vrcp.pop %v360
    %v369 = vrcp.pop %v361
    %v370 = vrcp.pop %v362
    %v371 = vrcp.pop %v363
    %v372 = vrcp.pop %v364
    %v373 = vrcp.pop %v365
    %v374 = vsub.f32 1.0, %v366
    %v375 = vsub.f32 1.0, %v367
    %v376 = vsub.f32 1.0, %v368
    %v377 = vsub.f32 1.0, %v369
    %v378 = vmul.f32 %v366, %v374
    %v379 = vmul.f32 %v367, %v375
    %v380 = vmul.f32 %v368, %v376
    %v381 = vmul.f32 %v369, %v377
    %v382 = vld [vmem:[%s3] sm:$0xff]
    %v383 = vld [vmem:[%s3 + $0x8] sm:$0xff]
    %v386 = vperm.slane %v382, 0
    %v387 = vperm.slane %v382, 4
    %v388 = vperm.slane %v383, 0
    %v389 = vperm.slane %v383, 4
    %v394 = vperm.slane %v386, 0
    %v395 = vperm.slane %v387, 0
    %v396 = vperm.slane %v388, 0
    %v397 = vperm.slane %v389, 0
    %v398 = vmul.f32 %v394, %v378
    %v399 = vmul.f32 %v395, %v379
    %v400 = vmul.f32 %v396, %v380
    %v401 = vmul.f32 %v397, %v381
    %v402 = vperm.slane %v382, 1
    %v403 = vperm.slane %v382, 5
    %v404 = vperm.slane %v383, 1
    %v405 = vperm.slane %v383, 5
    %v410 = vperm.slane %v402, 1
    %v411 = vperm.slane %v403, 1
    %v412 = vperm.slane %v404, 1
    %v413 = vperm.slane %v405, 1
    %v414 = vmul.f32 %v410, %v378
    %v415 = vmul.f32 %v411, %v379
    %v416 = vmul.f32 %v412, %v380
    %v417 = vmul.f32 %v413, %v381
    %v418 = vperm.slane %v382, 2
    %v419 = vperm.slane %v382, 6
    %v420 = vperm.slane %v383, 2
    %v421 = vperm.slane %v383, 6
    %v426 = vperm.slane %v418, 2
    %v427 = vperm.slane %v419, 2
    %v428 = vperm.slane %v420, 2
    %v429 = vperm.slane %v421, 2
    %v430 = vmul.f32 %v426, %v378
    %v431 = vmul.f32 %v427, %v379
    %v432 = vmul.f32 %v428, %v380
    %v433 = vmul.f32 %v429, %v381
    %v434 = vperm.slane %v382, 3
    %v435 = vperm.slane %v382, 7
    %v436 = vperm.slane %v383, 3
    %v437 = vperm.slane %v383, 7
    %v442 = vperm.slane %v434, 3
    %v443 = vperm.slane %v435, 3
    %v444 = vperm.slane %v436, 3
    %v445 = vperm.slane %v437, 3
    %v446 = vmul.f32 %v442, %v378
    %v447 = vmul.f32 %v443, %v379
    %v448 = vmul.f32 %v444, %v380
    %v449 = vmul.f32 %v445, %v381
    %v450 = vpack.c.bf16 %v398, %v366
    %v451 = vpack.c.bf16 %v399, %v367
    %v452 = vpack.c.bf16 %v400, %v368
    %v453 = vpack.c.bf16 %v401, %v369
    %v454 = vpack.c.bf16 %v430, %v414
    %v455 = vpack.c.bf16 %v431, %v415
    %v456 = vpack.c.bf16 %v432, %v416
    %v457 = vpack.c.bf16 %v433, %v417
    %v458 = vpack.c.bf16 %v446, %v446
    %v459 = vpack.c.bf16 %v447, %v447
    %v460 = vpack.c.bf16 %v448, %v448
    %v461 = vpack.c.bf16 %v449, %v449
    %v462 = vld [vmem:[#allocation2] sm:$0xff]
    %v463 = vld [vmem:[#allocation2 + $0x8] sm:$0xff]
    %v464 = vld [vmem:[#allocation2 + $0x10] sm:$0xff]
    %v465 = vld [vmem:[#allocation2 + $0x18] sm:$0xff]
    %v466 = vld [vmem:[#allocation2 + $0x20] sm:$0xff]
    %v467 = vld [vmem:[#allocation2 + $0x28] sm:$0xff]
    %v468 = vld [vmem:[#allocation2 + $0x30] sm:$0xff]
    %v469 = vld [vmem:[#allocation2 + $0x38] sm:$0xff]
    %v470 = vld [vmem:[#allocation2 + $0x40] sm:$0xff]
    %v471 = vld [vmem:[#allocation2 + $0x48] sm:$0xff]
    %v472 = vld [vmem:[#allocation2 + $0x50] sm:$0xff]
    %v473 = vld [vmem:[#allocation2 + $0x58] sm:$0xff]
    %v474 = vld [vmem:[#allocation2 + $0x60] sm:$0xff]
    %v475 = vld [vmem:[#allocation2 + $0x68] sm:$0xff]
    %v476 = vld [vmem:[#allocation2 + $0x70] sm:$0xff]
    %v477 = vld [vmem:[#allocation2 + $0x78] sm:$0xff]
    %v478 = vld [vmem:[#allocation2 + $0x80] sm:$0xff]
    %v479 = vld [vmem:[#allocation2 + $0x88] sm:$0xff]
    %v480 = vld [vmem:[#allocation2 + $0x90] sm:$0xff]
    %v481 = vld [vmem:[#allocation2 + $0x98] sm:$0xff]
    %v482 = vld [vmem:[#allocation2 + $0xa0] sm:$0xff]
    %v483 = vld [vmem:[#allocation2 + $0xa8] sm:$0xff]
    %v484 = vld [vmem:[#allocation2 + $0xb0] sm:$0xff]
    %v485 = vld [vmem:[#allocation2 + $0xb8] sm:$0xff]
    %v486 = vld [vmem:[#allocation2 + $0xc0] sm:$0xff]
    %v487 = vld [vmem:[#allocation2 + $0xc8] sm:$0xff]
    %v488 = vld [vmem:[#allocation2 + $0xd0] sm:$0xff]
    %v489 = vld [vmem:[#allocation2 + $0xd8] sm:$0xff]
    %v490 = vld [vmem:[#allocation2 + $0xe0] sm:$0xff]
    %v491 = vld [vmem:[#allocation2 + $0xe8] sm:$0xff]
    %v492 = vld [vmem:[#allocation2 + $0xf0] sm:$0xff]
    %v493 = vld [vmem:[#allocation2 + $0xf8] sm:$0xff]
    %v494 = vld [vmem:[#allocation2 + $0x100] sm:$0xff]
    %v495 = vld [vmem:[#allocation2 + $0x108] sm:$0xff]
    %v496 = vld [vmem:[#allocation2 + $0x110] sm:$0xff]
    %v497 = vld [vmem:[#allocation2 + $0x118] sm:$0xff]
    %v498 = vld [vmem:[#allocation2 + $0x120] sm:$0xff]
    %v499 = vld [vmem:[#allocation2 + $0x128] sm:$0xff]
    %v500 = vld [vmem:[#allocation2 + $0x130] sm:$0xff]
    %v501 = vld [vmem:[#allocation2 + $0x138] sm:$0xff]
    %v502 = vld [vmem:[#allocation2 + $0x140] sm:$0xff]
    %v503 = vld [vmem:[#allocation2 + $0x148] sm:$0xff]
    %v504 = vld [vmem:[#allocation2 + $0x150] sm:$0xff]
    %v505 = vld [vmem:[#allocation2 + $0x158] sm:$0xff]
    %v506 = vld [vmem:[#allocation2 + $0x160] sm:$0xff]
    %v507 = vld [vmem:[#allocation2 + $0x168] sm:$0xff]
    %v508 = vld [vmem:[#allocation2 + $0x170] sm:$0xff]
    %v509 = vld [vmem:[#allocation2 + $0x178] sm:$0xff]
    %v510 = vld [vmem:[#allocation2 + $0x180] sm:$0xff]
    %v511 = vld [vmem:[#allocation2 + $0x188] sm:$0xff]
    %v512 = vld [vmem:[#allocation2 + $0x190] sm:$0xff]
    %v513 = vld [vmem:[#allocation2 + $0x198] sm:$0xff]
    %v514 = vld [vmem:[#allocation2 + $0x1a0] sm:$0xff]
    %v515 = vld [vmem:[#allocation2 + $0x1a8] sm:$0xff]
    %v516 = vld [vmem:[#allocation2 + $0x1b0] sm:$0xff]
    %v517 = vld [vmem:[#allocation2 + $0x1b8] sm:$0xff]
    %v518 = vld [vmem:[#allocation2 + $0x1c0] sm:$0xff]
    %v519 = vld [vmem:[#allocation2 + $0x1c8] sm:$0xff]
    %v520 = vld [vmem:[#allocation2 + $0x1d0] sm:$0xff]
    %v521 = vld [vmem:[#allocation2 + $0x1d8] sm:$0xff]
    %v522 = vld [vmem:[#allocation2 + $0x1e0] sm:$0xff]
    %v523 = vld [vmem:[#allocation2 + $0x1e8] sm:$0xff]
    %v524 = vld [vmem:[#allocation2 + $0x1f0] sm:$0xff]
    %v525 = vld [vmem:[#allocation2 + $0x1f8] sm:$0xff]
    %v526 = vld [vmem:[#allocation2 + $0x200] sm:$0xff]
    %v527 = vld [vmem:[#allocation2 + $0x208] sm:$0xff]
    %v528 = vld [vmem:[#allocation2 + $0x210] sm:$0xff]
    %v529 = vld [vmem:[#allocation2 + $0x218] sm:$0xff]
    %v530 = vld [vmem:[#allocation2 + $0x220] sm:$0xff]
    %v531 = vld [vmem:[#allocation2 + $0x228] sm:$0xff]
    %v532 = vld [vmem:[#allocation2 + $0x230] sm:$0xff]
    %v533 = vld [vmem:[#allocation2 + $0x238] sm:$0xff]
    %v534 = vld [vmem:[#allocation2 + $0x240] sm:$0xff]
    %v535 = vld [vmem:[#allocation2 + $0x248] sm:$0xff]
    %v536 = vld [vmem:[#allocation2 + $0x250] sm:$0xff]
    %v537 = vld [vmem:[#allocation2 + $0x258] sm:$0xff]
    %v538 = vld [vmem:[#allocation2 + $0x260] sm:$0xff]
    %v539 = vld [vmem:[#allocation2 + $0x268] sm:$0xff]
    %v540 = vld [vmem:[#allocation2 + $0x270] sm:$0xff]
    %v541 = vld [vmem:[#allocation2 + $0x278] sm:$0xff]
    %v542 = vld [vmem:[#allocation2 + $0x280] sm:$0xff]
    %v543 = vld [vmem:[#allocation2 + $0x288] sm:$0xff]
    %v544 = vld [vmem:[#allocation2 + $0x290] sm:$0xff]
    %v545 = vld [vmem:[#allocation2 + $0x298] sm:$0xff]
    %v546 = vld [vmem:[#allocation2 + $0x2a0] sm:$0xff]
    %v547 = vld [vmem:[#allocation2 + $0x2a8] sm:$0xff]
    %v548 = vld [vmem:[#allocation2 + $0x2b0] sm:$0xff]
    %v549 = vld [vmem:[#allocation2 + $0x2b8] sm:$0xff]
    %v550 = vld [vmem:[#allocation2 + $0x2c0] sm:$0xff]
    %v551 = vld [vmem:[#allocation2 + $0x2c8] sm:$0xff]
    %v552 = vld [vmem:[#allocation2 + $0x2d0] sm:$0xff]
    %v553 = vld [vmem:[#allocation2 + $0x2d8] sm:$0xff]
    %v554 = vld [vmem:[#allocation2 + $0x2e0] sm:$0xff]
    %v555 = vld [vmem:[#allocation2 + $0x2e8] sm:$0xff]
    %v556 = vld [vmem:[#allocation2 + $0x2f0] sm:$0xff]
    %v557 = vld [vmem:[#allocation2 + $0x2f8] sm:$0xff]
    %v558 = vld [vmem:[#allocation2 + $0x300] sm:$0xff]
    %v559 = vld [vmem:[#allocation2 + $0x308] sm:$0xff]
    %v560 = vld [vmem:[#allocation2 + $0x310] sm:$0xff]
    %v561 = vld [vmem:[#allocation2 + $0x318] sm:$0xff]
    %v562 = vld [vmem:[#allocation2 + $0x320] sm:$0xff]
    %v563 = vld [vmem:[#allocation2 + $0x328] sm:$0xff]
    %v564 = vld [vmem:[#allocation2 + $0x330] sm:$0xff]
    %v565 = vld [vmem:[#allocation2 + $0x338] sm:$0xff]
    %v566 = vld [vmem:[#allocation2 + $0x340] sm:$0xff]
    %v567 = vld [vmem:[#allocation2 + $0x348] sm:$0xff]
    %v568 = vld [vmem:[#allocation2 + $0x350] sm:$0xff]
    %v569 = vld [vmem:[#allocation2 + $0x358] sm:$0xff]
    %v570 = vld [vmem:[#allocation2 + $0x360] sm:$0xff]
    %v571 = vld [vmem:[#allocation2 + $0x368] sm:$0xff]
    %v572 = vld [vmem:[#allocation2 + $0x370] sm:$0xff]
    %v573 = vld [vmem:[#allocation2 + $0x378] sm:$0xff]
    %v574 = vld [vmem:[#allocation2 + $0x380] sm:$0xff]
    %v575 = vld [vmem:[#allocation2 + $0x388] sm:$0xff]
    %v576 = vld [vmem:[#allocation2 + $0x390] sm:$0xff]
    %v577 = vld [vmem:[#allocation2 + $0x398] sm:$0xff]
    %v578 = vld [vmem:[#allocation2 + $0x3a0] sm:$0xff]
    %v579 = vld [vmem:[#allocation2 + $0x3a8] sm:$0xff]
    %v580 = vld [vmem:[#allocation2 + $0x3b0] sm:$0xff]
    %v581 = vld [vmem:[#allocation2 + $0x3b8] sm:$0xff]
    %v582 = vld [vmem:[#allocation2 + $0x3c0] sm:$0xff]
    %v583 = vld [vmem:[#allocation2 + $0x3c8] sm:$0xff]
    %v584 = vld [vmem:[#allocation2 + $0x3d0] sm:$0xff]
    %v585 = vld [vmem:[#allocation2 + $0x3d8] sm:$0xff]
    %v586 = vld [vmem:[#allocation2 + $0x3e0] sm:$0xff]
    %v587 = vld [vmem:[#allocation2 + $0x3e8] sm:$0xff]
    %v588 = vld [vmem:[#allocation2 + $0x3f0] sm:$0xff]
    %v589 = vld [vmem:[#allocation2 + $0x3f8] sm:$0xff]
    %v718 = vunpack.c.l.b16 %v462
    %v719 = vunpack.c.h.b16 %v462
    %v720 = vunpack.c.l.b16 %v463
    %v721 = vunpack.c.h.b16 %v463
    %v722 = vunpack.c.l.b16 %v464
    %v723 = vunpack.c.h.b16 %v464
    %v724 = vunpack.c.l.b16 %v465
    %v725 = vunpack.c.h.b16 %v465
    %v726 = vunpack.c.l.b16 %v466
    %v727 = vunpack.c.h.b16 %v466
    %v728 = vunpack.c.l.b16 %v467
    %v729 = vunpack.c.h.b16 %v467
    %v730 = vunpack.c.l.b16 %v468
    %v731 = vunpack.c.h.b16 %v468
    %v732 = vunpack.c.l.b16 %v469
    %v733 = vunpack.c.h.b16 %v469
    %v734 = vunpack.c.l.b16 %v470
    %v735 = vunpack.c.h.b16 %v470
    %v736 = vunpack.c.l.b16 %v471
    %v737 = vunpack.c.h.b16 %v471
    %v738 = vunpack.c.l.b16 %v472
    %v739 = vunpack.c.h.b16 %v472
    %v740 = vunpack.c.l.b16 %v473
    %v741 = vunpack.c.h.b16 %v473
    %v742 = vunpack.c.l.b16 %v474
    %v743 = vunpack.c.h.b16 %v474
    %v744 = vunpack.c.l.b16 %v475
    %v745 = vunpack.c.h.b16 %v475
    %v746 = vunpack.c.l.b16 %v476
    %v747 = vunpack.c.h.b16 %v476
    %v748 = vunpack.c.l.b16 %v477
    %v749 = vunpack.c.h.b16 %v477
    %v750 = vunpack.c.l.b16 %v478
    %v751 = vunpack.c.h.b16 %v478
    %v752 = vunpack.c.l.b16 %v479
    %v753 = vunpack.c.h.b16 %v479
    %v754 = vunpack.c.l.b16 %v480
    %v755 = vunpack.c.h.b16 %v480
    %v756 = vunpack.c.l.b16 %v481
    %v757 = vunpack.c.h.b16 %v481
    %v758 = vunpack.c.l.b16 %v482
    %v759 = vunpack.c.h.b16 %v482
    %v760 = vunpack.c.l.b16 %v483
    %v761 = vunpack.c.h.b16 %v483
    %v762 = vunpack.c.l.b16 %v484
    %v763 = vunpack.c.h.b16 %v484
    %v764 = vunpack.c.l.b16 %v485
    %v765 = vunpack.c.h.b16 %v485
    %v766 = vunpack.c.l.b16 %v486
    %v767 = vunpack.c.h.b16 %v486
    %v768 = vunpack.c.l.b16 %v487
    %v769 = vunpack.c.h.b16 %v487
    %v770 = vunpack.c.l.b16 %v488
    %v771 = vunpack.c.h.b16 %v488
    %v772 = vunpack.c.l.b16 %v489
    %v773 = vunpack.c.h.b16 %v489
    %v774 = vunpack.c.l.b16 %v490
    %v775 = vunpack.c.h.b16 %v490
    %v776 = vunpack.c.l.b16 %v491
    %v777 = vunpack.c.h.b16 %v491
    %v778 = vunpack.c.l.b16 %v492
    %v779 = vunpack.c.h.b16 %v492
    %v780 = vunpack.c.l.b16 %v493
    %v781 = vunpack.c.h.b16 %v493
    %v782 = vunpack.c.l.b16 %v494
    %v783 = vunpack.c.h.b16 %v494
    %v784 = vunpack.c.l.b16 %v495
    %v785 = vunpack.c.h.b16 %v495
    %v786 = vunpack.c.l.b16 %v496
    %v787 = vunpack.c.h.b16 %v496
    %v788 = vunpack.c.l.b16 %v497
    %v789 = vunpack.c.h.b16 %v497
    %v790 = vunpack.c.l.b16 %v498
    %v791 = vunpack.c.h.b16 %v498
    %v792 = vunpack.c.l.b16 %v499
    %v793 = vunpack.c.h.b16 %v499
    %v794 = vunpack.c.l.b16 %v500
    %v795 = vunpack.c.h.b16 %v500
    %v796 = vunpack.c.l.b16 %v501
    %v797 = vunpack.c.h.b16 %v501
    %v798 = vunpack.c.l.b16 %v502
    %v799 = vunpack.c.h.b16 %v502
    %v800 = vunpack.c.l.b16 %v503
    %v801 = vunpack.c.h.b16 %v503
    %v802 = vunpack.c.l.b16 %v504
    %v803 = vunpack.c.h.b16 %v504
    %v804 = vunpack.c.l.b16 %v505
    %v805 = vunpack.c.h.b16 %v505
    %v806 = vunpack.c.l.b16 %v506
    %v807 = vunpack.c.h.b16 %v506
    %v808 = vunpack.c.l.b16 %v507
    %v809 = vunpack.c.h.b16 %v507
    %v810 = vunpack.c.l.b16 %v508
    %v811 = vunpack.c.h.b16 %v508
    %v812 = vunpack.c.l.b16 %v509
    %v813 = vunpack.c.h.b16 %v509
    %v814 = vunpack.c.l.b16 %v510
    %v815 = vunpack.c.h.b16 %v510
    %v816 = vunpack.c.l.b16 %v511
    %v817 = vunpack.c.h.b16 %v511
    %v818 = vunpack.c.l.b16 %v512
    %v819 = vunpack.c.h.b16 %v512
    %v820 = vunpack.c.l.b16 %v513
    %v821 = vunpack.c.h.b16 %v513
    %v822 = vunpack.c.l.b16 %v514
    %v823 = vunpack.c.h.b16 %v514
    %v824 = vunpack.c.l.b16 %v515
    %v825 = vunpack.c.h.b16 %v515
    %v826 = vunpack.c.l.b16 %v516
    %v827 = vunpack.c.h.b16 %v516
    %v828 = vunpack.c.l.b16 %v517
    %v829 = vunpack.c.h.b16 %v517
    %v830 = vunpack.c.l.b16 %v518
    %v831 = vunpack.c.h.b16 %v518
    %v832 = vunpack.c.l.b16 %v519
    %v833 = vunpack.c.h.b16 %v519
    %v834 = vunpack.c.l.b16 %v520
    %v835 = vunpack.c.h.b16 %v520
    %v836 = vunpack.c.l.b16 %v521
    %v837 = vunpack.c.h.b16 %v521
    %v838 = vunpack.c.l.b16 %v522
    %v839 = vunpack.c.h.b16 %v522
    %v840 = vunpack.c.l.b16 %v523
    %v841 = vunpack.c.h.b16 %v523
    %v842 = vunpack.c.l.b16 %v524
    %v843 = vunpack.c.h.b16 %v524
    %v844 = vunpack.c.l.b16 %v525
    %v845 = vunpack.c.h.b16 %v525
    %v846 = vunpack.c.l.b16 %v526
    %v847 = vunpack.c.h.b16 %v526
    %v848 = vunpack.c.l.b16 %v527
    %v849 = vunpack.c.h.b16 %v527
    %v850 = vunpack.c.l.b16 %v528
    %v851 = vunpack.c.h.b16 %v528
    %v852 = vunpack.c.l.b16 %v529
    %v853 = vunpack.c.h.b16 %v529
    %v854 = vunpack.c.l.b16 %v530
    %v855 = vunpack.c.h.b16 %v530
    %v856 = vunpack.c.l.b16 %v531
    %v857 = vunpack.c.h.b16 %v531
    %v858 = vunpack.c.l.b16 %v532
    %v859 = vunpack.c.h.b16 %v532
    %v860 = vunpack.c.l.b16 %v533
    %v861 = vunpack.c.h.b16 %v533
    %v862 = vunpack.c.l.b16 %v534
    %v863 = vunpack.c.h.b16 %v534
    %v864 = vunpack.c.l.b16 %v535
    %v865 = vunpack.c.h.b16 %v535
    %v866 = vunpack.c.l.b16 %v536
    %v867 = vunpack.c.h.b16 %v536
    %v868 = vunpack.c.l.b16 %v537
    %v869 = vunpack.c.h.b16 %v537
    %v870 = vunpack.c.l.b16 %v538
    %v871 = vunpack.c.h.b16 %v538
    %v872 = vunpack.c.l.b16 %v539
    %v873 = vunpack.c.h.b16 %v539
    %v874 = vunpack.c.l.b16 %v540
    %v875 = vunpack.c.h.b16 %v540
    %v876 = vunpack.c.l.b16 %v541
    %v877 = vunpack.c.h.b16 %v541
    %v878 = vunpack.c.l.b16 %v542
    %v879 = vunpack.c.h.b16 %v542
    %v880 = vunpack.c.l.b16 %v543
    %v881 = vunpack.c.h.b16 %v543
    %v882 = vunpack.c.l.b16 %v544
    %v883 = vunpack.c.h.b16 %v544
    %v884 = vunpack.c.l.b16 %v545
    %v885 = vunpack.c.h.b16 %v545
    %v886 = vunpack.c.l.b16 %v546
    %v887 = vunpack.c.h.b16 %v546
    %v888 = vunpack.c.l.b16 %v547
    %v889 = vunpack.c.h.b16 %v547
    %v890 = vunpack.c.l.b16 %v548
    %v891 = vunpack.c.h.b16 %v548
    %v892 = vunpack.c.l.b16 %v549
    %v893 = vunpack.c.h.b16 %v549
    %v894 = vunpack.c.l.b16 %v550
    %v895 = vunpack.c.h.b16 %v550
    %v896 = vunpack.c.l.b16 %v551
    %v897 = vunpack.c.h.b16 %v551
    %v898 = vunpack.c.l.b16 %v552
    %v899 = vunpack.c.h.b16 %v552
    %v900 = vunpack.c.l.b16 %v553
    %v901 = vunpack.c.h.b16 %v553
    %v902 = vunpack.c.l.b16 %v554
    %v903 = vunpack.c.h.b16 %v554
    %v904 = vunpack.c.l.b16 %v555
    %v905 = vunpack.c.h.b16 %v555
    %v906 = vunpack.c.l.b16 %v556
    %v907 = vunpack.c.h.b16 %v556
    %v908 = vunpack.c.l.b16 %v557
    %v909 = vunpack.c.h.b16 %v557
    %v910 = vunpack.c.l.b16 %v558
    %v911 = vunpack.c.h.b16 %v558
    %v912 = vunpack.c.l.b16 %v559
    %v913 = vunpack.c.h.b16 %v559
    %v914 = vunpack.c.l.b16 %v560
    %v915 = vunpack.c.h.b16 %v560
    %v916 = vunpack.c.l.b16 %v561
    %v917 = vunpack.c.h.b16 %v561
    %v918 = vunpack.c.l.b16 %v562
    %v919 = vunpack.c.h.b16 %v562
    %v920 = vunpack.c.l.b16 %v563
    %v921 = vunpack.c.h.b16 %v563
    %v922 = vunpack.c.l.b16 %v564
    %v923 = vunpack.c.h.b16 %v564
    %v924 = vunpack.c.l.b16 %v565
    %v925 = vunpack.c.h.b16 %v565
    %v926 = vunpack.c.l.b16 %v566
    %v927 = vunpack.c.h.b16 %v566
    %v928 = vunpack.c.l.b16 %v567
    %v929 = vunpack.c.h.b16 %v567
    %v930 = vunpack.c.l.b16 %v568
    %v931 = vunpack.c.h.b16 %v568
    %v932 = vunpack.c.l.b16 %v569
    %v933 = vunpack.c.h.b16 %v569
    %v934 = vunpack.c.l.b16 %v570
    %v935 = vunpack.c.h.b16 %v570
    %v936 = vunpack.c.l.b16 %v571
    %v937 = vunpack.c.h.b16 %v571
    %v938 = vunpack.c.l.b16 %v572
    %v939 = vunpack.c.h.b16 %v572
    %v940 = vunpack.c.l.b16 %v573
    %v941 = vunpack.c.h.b16 %v573
    %v942 = vunpack.c.l.b16 %v574
    %v943 = vunpack.c.h.b16 %v574
    %v944 = vunpack.c.l.b16 %v575
    %v945 = vunpack.c.h.b16 %v575
    %v946 = vunpack.c.l.b16 %v576
    %v947 = vunpack.c.h.b16 %v576
    %v948 = vunpack.c.l.b16 %v577
    %v949 = vunpack.c.h.b16 %v577
    %v950 = vunpack.c.l.b16 %v578
    %v951 = vunpack.c.h.b16 %v578
    %v952 = vunpack.c.l.b16 %v579
    %v953 = vunpack.c.h.b16 %v579
    %v954 = vunpack.c.l.b16 %v580
    %v955 = vunpack.c.h.b16 %v580
    %v956 = vunpack.c.l.b16 %v581
    %v957 = vunpack.c.h.b16 %v581
    %v958 = vunpack.c.l.b16 %v582
    %v959 = vunpack.c.h.b16 %v582
    %v960 = vunpack.c.l.b16 %v583
    %v961 = vunpack.c.h.b16 %v583
    %v962 = vunpack.c.l.b16 %v584
    %v963 = vunpack.c.h.b16 %v584
    %v964 = vunpack.c.l.b16 %v585
    %v965 = vunpack.c.h.b16 %v585
    %v966 = vunpack.c.l.b16 %v586
    %v967 = vunpack.c.h.b16 %v586
    %v968 = vunpack.c.l.b16 %v587
    %v969 = vunpack.c.h.b16 %v587
    %v970 = vunpack.c.l.b16 %v588
    %v971 = vunpack.c.h.b16 %v588
    %v972 = vunpack.c.l.b16 %v589
    %v973 = vunpack.c.h.b16 %v589
    %v974 = vpack.c.b16 %v722, %v718
    %v975 = vpack.c.b16 %v723, %v719
    %v976 = vpack.c.b16 %v724, %v720
    %v977 = vpack.c.b16 %v725, %v721
    %v978 = vpack.c.b16 %v730, %v726
    %v979 = vpack.c.b16 %v731, %v727
    %v980 = vpack.c.b16 %v732, %v728
    %v981 = vpack.c.b16 %v733, %v729
    %v982 = vpack.c.b16 %v738, %v734
    %v983 = vpack.c.b16 %v739, %v735
    %v984 = vpack.c.b16 %v740, %v736
    %v985 = vpack.c.b16 %v741, %v737
    %v986 = vpack.c.b16 %v746, %v742
    %v987 = vpack.c.b16 %v747, %v743
    %v988 = vpack.c.b16 %v748, %v744
    %v989 = vpack.c.b16 %v749, %v745
    %v990 = vpack.c.b16 %v754, %v750
    %v991 = vpack.c.b16 %v755, %v751
    %v992 = vpack.c.b16 %v756, %v752
    %v993 = vpack.c.b16 %v757, %v753
    %v994 = vpack.c.b16 %v762, %v758
    %v995 = vpack.c.b16 %v763, %v759
    %v996 = vpack.c.b16 %v764, %v760
    %v997 = vpack.c.b16 %v765, %v761
    %v998 = vpack.c.b16 %v770, %v766
    %v999 = vpack.c.b16 %v771, %v767
    %v1000 = vpack.c.b16 %v772, %v768
    %v1001 = vpack.c.b16 %v773, %v769
    %v1002 = vpack.c.b16 %v778, %v774
    %v1003 = vpack.c.b16 %v779, %v775
    %v1004 = vpack.c.b16 %v780, %v776
    %v1005 = vpack.c.b16 %v781, %v777
    %v1006 = vpack.c.b16 %v786, %v782
    %v1007 = vpack.c.b16 %v787, %v783
    %v1008 = vpack.c.b16 %v788, %v784
    %v1009 = vpack.c.b16 %v789, %v785
    %v1010 = vpack.c.b16 %v794, %v790
    %v1011 = vpack.c.b16 %v795, %v791
    %v1012 = vpack.c.b16 %v796, %v792
    %v1013 = vpack.c.b16 %v797, %v793
    %v1014 = vpack.c.b16 %v802, %v798
    %v1015 = vpack.c.b16 %v803, %v799
    %v1016 = vpack.c.b16 %v804, %v800
    %v1017 = vpack.c.b16 %v805, %v801
    %v1018 = vpack.c.b16 %v810, %v806
    %v1019 = vpack.c.b16 %v811, %v807
    %v1020 = vpack.c.b16 %v812, %v808
    %v1021 = vpack.c.b16 %v813, %v809
    %v1022 = vpack.c.b16 %v818, %v814
    %v1023 = vpack.c.b16 %v819, %v815
    %v1024 = vpack.c.b16 %v820, %v816
    %v1025 = vpack.c.b16 %v821, %v817
    %v1026 = vpack.c.b16 %v826, %v822
    %v1027 = vpack.c.b16 %v827, %v823
    %v1028 = vpack.c.b16 %v828, %v824
    %v1029 = vpack.c.b16 %v829, %v825
    %v1030 = vpack.c.b16 %v834, %v830
    %v1031 = vpack.c.b16 %v835, %v831
    %v1032 = vpack.c.b16 %v836, %v832
    %v1033 = vpack.c.b16 %v837, %v833
    %v1034 = vpack.c.b16 %v842, %v838
    %v1035 = vpack.c.b16 %v843, %v839
    %v1036 = vpack.c.b16 %v844, %v840
    %v1037 = vpack.c.b16 %v845, %v841
    %v1038 = vpack.c.b16 %v850, %v846
    %v1039 = vpack.c.b16 %v851, %v847
    %v1040 = vpack.c.b16 %v852, %v848
    %v1041 = vpack.c.b16 %v853, %v849
    %v1042 = vpack.c.b16 %v858, %v854
    %v1043 = vpack.c.b16 %v859, %v855
    %v1044 = vpack.c.b16 %v860, %v856
    %v1045 = vpack.c.b16 %v861, %v857
    %v1046 = vpack.c.b16 %v866, %v862
    %v1047 = vpack.c.b16 %v867, %v863
    %v1048 = vpack.c.b16 %v868, %v864
    %v1049 = vpack.c.b16 %v869, %v865
    %v1050 = vpack.c.b16 %v874, %v870
    %v1051 = vpack.c.b16 %v875, %v871
    %v1052 = vpack.c.b16 %v876, %v872
    %v1053 = vpack.c.b16 %v877, %v873
    %v1054 = vpack.c.b16 %v882, %v878
    %v1055 = vpack.c.b16 %v883, %v879
    %v1056 = vpack.c.b16 %v884, %v880
    %v1057 = vpack.c.b16 %v885, %v881
    %v1058 = vpack.c.b16 %v890, %v886
    %v1059 = vpack.c.b16 %v891, %v887
    %v1060 = vpack.c.b16 %v892, %v888
    %v1061 = vpack.c.b16 %v893, %v889
    %v1062 = vpack.c.b16 %v898, %v894
    %v1063 = vpack.c.b16 %v899, %v895
    %v1064 = vpack.c.b16 %v900, %v896
    %v1065 = vpack.c.b16 %v901, %v897
    %v1066 = vpack.c.b16 %v906, %v902
    %v1067 = vpack.c.b16 %v907, %v903
    %v1068 = vpack.c.b16 %v908, %v904
    %v1069 = vpack.c.b16 %v909, %v905
    %v1070 = vpack.c.b16 %v914, %v910
    %v1071 = vpack.c.b16 %v915, %v911
    %v1072 = vpack.c.b16 %v916, %v912
    %v1073 = vpack.c.b16 %v917, %v913
    %v1074 = vpack.c.b16 %v922, %v918
    %v1075 = vpack.c.b16 %v923, %v919
    %v1076 = vpack.c.b16 %v924, %v920
    %v1077 = vpack.c.b16 %v925, %v921
    %v1078 = vpack.c.b16 %v930, %v926
    %v1079 = vpack.c.b16 %v931, %v927
    %v1080 = vpack.c.b16 %v932, %v928
    %v1081 = vpack.c.b16 %v933, %v929
    %v1082 = vpack.c.b16 %v938, %v934
    %v1083 = vpack.c.b16 %v939, %v935
    %v1084 = vpack.c.b16 %v940, %v936
    %v1085 = vpack.c.b16 %v941, %v937
    %v1086 = vpack.c.b16 %v946, %v942
    %v1087 = vpack.c.b16 %v947, %v943
    %v1088 = vpack.c.b16 %v948, %v944
    %v1089 = vpack.c.b16 %v949, %v945
    %v1090 = vpack.c.b16 %v954, %v950
    %v1091 = vpack.c.b16 %v955, %v951
    %v1092 = vpack.c.b16 %v956, %v952
    %v1093 = vpack.c.b16 %v957, %v953
    %v1094 = vpack.c.b16 %v962, %v958
    %v1095 = vpack.c.b16 %v963, %v959
    %v1096 = vpack.c.b16 %v964, %v960
    %v1097 = vpack.c.b16 %v965, %v961
    %v1098 = vpack.c.b16 %v970, %v966
    %v1099 = vpack.c.b16 %v971, %v967
    %v1100 = vpack.c.b16 %v972, %v968
    %v1101 = vpack.c.b16 %v973, %v969
    %1230 = vmatpush.bf16.msra.mxu0 %v1002
    %1231 = vmatpush.bf16.msra.mxu0 %v998
    %1232 = vmatpush.bf16.msra.mxu0 %v994
    %1233 = vmatpush.bf16.msra.mxu0 %v990
    %1234 = vmatpush.bf16.msra.mxu0 %v986
    %1235 = vmatpush.bf16.msra.mxu0 %v982
    %1236 = vmatpush.bf16.msra.mxu0 %v978
    %1237 = vmatpush.bf16.msra.mxu0 %v974
    %1238 = vmatmul.bf16.gmra.mxu0 %v450
    %v1239 = vpop.f32.mrf.mxu0
    %v1240 = vadd.f32 0.0, %v1239
    %v1241 = vpop.f32.mrf.mxu0
    %v1242 = vadd.f32 0.0, %v1241
    %1243 = vmatmul.bf16.gmra.mxu0 %v454
    %v1244 = vpop.f32.mrf.mxu0
    %v1245 = vadd.f32 0.0, %v1244
    %v1246 = vpop.f32.mrf.mxu0
    %v1247 = vadd.f32 0.0, %v1246
    %1248 = vmatmul.bf16.gmra.mxu0 %v458
    %v1249 = vpop.f32.mrf.mxu0
    %v1250 = vadd.f32 0.0, %v1249
    %v1251 = vpop.f32.mrf.mxu0
    %1252 = vdwg.mxu0
    %1253 = vmatpush.bf16.msra.mxu0 %v1034
    %1254 = vmatpush.bf16.msra.mxu0 %v1030
    %1255 = vmatpush.bf16.msra.mxu0 %v1026
    %1256 = vmatpush.bf16.msra.mxu0 %v1022
    %1257 = vmatpush.bf16.msra.mxu0 %v1018
    %1258 = vmatpush.bf16.msra.mxu0 %v1014
    %1259 = vmatpush.bf16.msra.mxu0 %v1010
    %1260 = vmatpush.bf16.msra.mxu0 %v1006
    %1261 = vmatmul.bf16.gmra.mxu0 %v451
    %v1262 = vpop.f32.mrf.mxu0
    %v1263 = vadd.f32 %v1240, %v1262
    %v1264 = vpop.f32.mrf.mxu0
    %v1265 = vadd.f32 %v1242, %v1264
    %1266 = vmatmul.bf16.gmra.mxu0 %v455
    %v1267 = vpop.f32.mrf.mxu0
    %v1268 = vadd.f32 %v1245, %v1267
    %v1269 = vpop.f32.mrf.mxu0
    %v1270 = vadd.f32 %v1247, %v1269
    %1271 = vmatmul.bf16.gmra.mxu0 %v459
    %v1272 = vpop.f32.mrf.mxu0
    %v1273 = vadd.f32 %v1250, %v1272
    %v1274 = vpop.f32.mrf.mxu0
    %1275 = vdwg.mxu0
    %1276 = vmatpush.bf16.msra.mxu0 %v1066
    %1277 = vmatpush.bf16.msra.mxu0 %v1062
    %1278 = vmatpush.bf16.msra.mxu0 %v1058
    %1279 = vmatpush.bf16.msra.mxu0 %v1054
    %1280 = vmatpush.bf16.msra.mxu0 %v1050
    %1281 = vmatpush.bf16.msra.mxu0 %v1046
    %1282 = vmatpush.bf16.msra.mxu0 %v1042
    %1283 = vmatpush.bf16.msra.mxu0 %v1038
    %1284 = vmatmul.bf16.gmra.mxu0 %v452
    %v1285 = vpop.f32.mrf.mxu0
    %v1286 = vadd.f32 %v1263, %v1285
    %v1287 = vpop.f32.mrf.mxu0
    %v1288 = vadd.f32 %v1265, %v1287
    %1289 = vmatmul.bf16.gmra.mxu0 %v456
    %v1290 = vpop.f32.mrf.mxu0
    %v1291 = vadd.f32 %v1268, %v1290
    %v1292 = vpop.f32.mrf.mxu0
    %v1293 = vadd.f32 %v1270, %v1292
    %1294 = vmatmul.bf16.gmra.mxu0 %v460
    %v1295 = vpop.f32.mrf.mxu0
    %v1296 = vadd.f32 %v1273, %v1295
    %v1297 = vpop.f32.mrf.mxu0
    %1298 = vdwg.mxu0
    %1299 = vmatpush.bf16.msra.mxu0 %v1098
    %1300 = vmatpush.bf16.msra.mxu0 %v1094
    %1301 = vmatpush.bf16.msra.mxu0 %v1090
    %1302 = vmatpush.bf16.msra.mxu0 %v1086
    %1303 = vmatpush.bf16.msra.mxu0 %v1082
    %1304 = vmatpush.bf16.msra.mxu0 %v1078
    %1305 = vmatpush.bf16.msra.mxu0 %v1074
    %1306 = vmatpush.bf16.msra.mxu0 %v1070
    %1307 = vmatmul.bf16.gmra.mxu0 %v453
    %v1308 = vpop.f32.mrf.mxu0
    %v1309 = vadd.f32 %v1286, %v1308
    %v1310 = vpop.f32.mrf.mxu0
    %v1311 = vadd.f32 %v1288, %v1310
    %1312 = vmatmul.bf16.gmra.mxu0 %v457
    %v1313 = vpop.f32.mrf.mxu0
    %v1314 = vadd.f32 %v1291, %v1313
    %v1315 = vpop.f32.mrf.mxu0
    %v1316 = vadd.f32 %v1293, %v1315
    %1317 = vmatmul.bf16.gmra.mxu0 %v461
    %v1318 = vpop.f32.mrf.mxu0
    %v1319 = vadd.f32 %v1296, %v1318
    %v1320 = vpop.f32.mrf.mxu0
    %1321 = vdwg.mxu0
    %1322 = vmatpush.bf16.msra.mxu0 %v1003
    %1323 = vmatpush.bf16.msra.mxu0 %v999
    %1324 = vmatpush.bf16.msra.mxu0 %v995
    %1325 = vmatpush.bf16.msra.mxu0 %v991
    %1326 = vmatpush.bf16.msra.mxu0 %v987
    %1327 = vmatpush.bf16.msra.mxu0 %v983
    %1328 = vmatpush.bf16.msra.mxu0 %v979
    %1329 = vmatpush.bf16.msra.mxu0 %v975
    %1330 = vmatmul.bf16.gmra.mxu0 %v450
    %v1331 = vpop.f32.mrf.mxu0
    %v1332 = vadd.f32 0.0, %v1331
    %v1333 = vpop.f32.mrf.mxu0
    %v1334 = vadd.f32 0.0, %v1333
    %1335 = vmatmul.bf16.gmra.mxu0 %v454
    %v1336 = vpop.f32.mrf.mxu0
    %v1337 = vadd.f32 0.0, %v1336
    %v1338 = vpop.f32.mrf.mxu0
    %v1339 = vadd.f32 0.0, %v1338
    %1340 = vmatmul.bf16.gmra.mxu0 %v458
    %v1341 = vpop.f32.mrf.mxu0
    %v1342 = vadd.f32 0.0, %v1341
    %v1343 = vpop.f32.mrf.mxu0
    %1344 = vdwg.mxu0
    %1345 = vmatpush.bf16.msra.mxu0 %v1035
    %1346 = vmatpush.bf16.msra.mxu0 %v1031
    %1347 = vmatpush.bf16.msra.mxu0 %v1027
    %1348 = vmatpush.bf16.msra.mxu0 %v1023
    %1349 = vmatpush.bf16.msra.mxu0 %v1019
    %1350 = vmatpush.bf16.msra.mxu0 %v1015
    %1351 = vmatpush.bf16.msra.mxu0 %v1011
    %1352 = vmatpush.bf16.msra.mxu0 %v1007
    %1353 = vmatmul.bf16.gmra.mxu0 %v451
    %v1354 = vpop.f32.mrf.mxu0
    %v1355 = vadd.f32 %v1332, %v1354
    %v1356 = vpop.f32.mrf.mxu0
    %v1357 = vadd.f32 %v1334, %v1356
    %1358 = vmatmul.bf16.gmra.mxu0 %v455
    %v1359 = vpop.f32.mrf.mxu0
    %v1360 = vadd.f32 %v1337, %v1359
    %v1361 = vpop.f32.mrf.mxu0
    %v1362 = vadd.f32 %v1339, %v1361
    %1363 = vmatmul.bf16.gmra.mxu0 %v459
    %v1364 = vpop.f32.mrf.mxu0
    %v1365 = vadd.f32 %v1342, %v1364
    %v1366 = vpop.f32.mrf.mxu0
    %1367 = vdwg.mxu0
    %1368 = vmatpush.bf16.msra.mxu0 %v1067
    %1369 = vmatpush.bf16.msra.mxu0 %v1063
    %1370 = vmatpush.bf16.msra.mxu0 %v1059
    %1371 = vmatpush.bf16.msra.mxu0 %v1055
    %1372 = vmatpush.bf16.msra.mxu0 %v1051
    %1373 = vmatpush.bf16.msra.mxu0 %v1047
    %1374 = vmatpush.bf16.msra.mxu0 %v1043
    %1375 = vmatpush.bf16.msra.mxu0 %v1039
    %1376 = vmatmul.bf16.gmra.mxu0 %v452
    %v1377 = vpop.f32.mrf.mxu0
    %v1378 = vadd.f32 %v1355, %v1377
    %v1379 = vpop.f32.mrf.mxu0
    %v1380 = vadd.f32 %v1357, %v1379
    %1381 = vmatmul.bf16.gmra.mxu0 %v456
    %v1382 = vpop.f32.mrf.mxu0
    %v1383 = vadd.f32 %v1360, %v1382
    %v1384 = vpop.f32.mrf.mxu0
    %v1385 = vadd.f32 %v1362, %v1384
    %1386 = vmatmul.bf16.gmra.mxu0 %v460
    %v1387 = vpop.f32.mrf.mxu0
    %v1388 = vadd.f32 %v1365, %v1387
    %v1389 = vpop.f32.mrf.mxu0
    %1390 = vdwg.mxu0
    %1391 = vmatpush.bf16.msra.mxu0 %v1099
    %1392 = vmatpush.bf16.msra.mxu0 %v1095
    %1393 = vmatpush.bf16.msra.mxu0 %v1091
    %1394 = vmatpush.bf16.msra.mxu0 %v1087
    %1395 = vmatpush.bf16.msra.mxu0 %v1083
    %1396 = vmatpush.bf16.msra.mxu0 %v1079
    %1397 = vmatpush.bf16.msra.mxu0 %v1075
    %1398 = vmatpush.bf16.msra.mxu0 %v1071
    %1399 = vmatmul.bf16.gmra.mxu0 %v453
    %v1400 = vpop.f32.mrf.mxu0
    %v1401 = vadd.f32 %v1378, %v1400
    %v1402 = vpop.f32.mrf.mxu0
    %v1403 = vadd.f32 %v1380, %v1402
    %1404 = vmatmul.bf16.gmra.mxu0 %v457
    %v1405 = vpop.f32.mrf.mxu0
    %v1406 = vadd.f32 %v1383, %v1405
    %v1407 = vpop.f32.mrf.mxu0
    %v1408 = vadd.f32 %v1385, %v1407
    %1409 = vmatmul.bf16.gmra.mxu0 %v461
    %v1410 = vpop.f32.mrf.mxu0
    %v1411 = vadd.f32 %v1388, %v1410
    %v1412 = vpop.f32.mrf.mxu0
    %1413 = vdwg.mxu0
    %1414 = vmatpush.bf16.msra.mxu0 %v1004
    %1415 = vmatpush.bf16.msra.mxu0 %v1000
    %1416 = vmatpush.bf16.msra.mxu0 %v996
    %1417 = vmatpush.bf16.msra.mxu0 %v992
    %1418 = vmatpush.bf16.msra.mxu0 %v988
    %1419 = vmatpush.bf16.msra.mxu0 %v984
    %1420 = vmatpush.bf16.msra.mxu0 %v980
    %1421 = vmatpush.bf16.msra.mxu0 %v976
    %1422 = vmatmul.bf16.gmra.mxu0 %v450
    %v1423 = vpop.f32.mrf.mxu0
    %v1424 = vadd.f32 0.0, %v1423
    %v1425 = vpop.f32.mrf.mxu0
    %v1426 = vadd.f32 0.0, %v1425
    %1427 = vmatmul.bf16.gmra.mxu0 %v454
    %v1428 = vpop.f32.mrf.mxu0
    %v1429 = vadd.f32 0.0, %v1428
    %v1430 = vpop.f32.mrf.mxu0
    %v1431 = vadd.f32 0.0, %v1430
    %1432 = vmatmul.bf16.gmra.mxu0 %v458
    %v1433 = vpop.f32.mrf.mxu0
    %v1434 = vadd.f32 0.0, %v1433
    %v1435 = vpop.f32.mrf.mxu0
    %1436 = vdwg.mxu0
    %1437 = vmatpush.bf16.msra.mxu0 %v1036
    %1438 = vmatpush.bf16.msra.mxu0 %v1032
    %1439 = vmatpush.bf16.msra.mxu0 %v1028
    %1440 = vmatpush.bf16.msra.mxu0 %v1024
    %1441 = vmatpush.bf16.msra.mxu0 %v1020
    %1442 = vmatpush.bf16.msra.mxu0 %v1016
    %1443 = vmatpush.bf16.msra.mxu0 %v1012
    %1444 = vmatpush.bf16.msra.mxu0 %v1008
    %1445 = vmatmul.bf16.gmra.mxu0 %v451
    %v1446 = vpop.f32.mrf.mxu0
    %v1447 = vadd.f32 %v1424, %v1446
    %v1448 = vpop.f32.mrf.mxu0
    %v1449 = vadd.f32 %v1426, %v1448
    %1450 = vmatmul.bf16.gmra.mxu0 %v455
    %v1451 = vpop.f32.mrf.mxu0
    %v1452 = vadd.f32 %v1429, %v1451
    %v1453 = vpop.f32.mrf.mxu0
    %v1454 = vadd.f32 %v1431, %v1453
    %1455 = vmatmul.bf16.gmra.mxu0 %v459
    %v1456 = vpop.f32.mrf.mxu0
    %v1457 = vadd.f32 %v1434, %v1456
    %v1458 = vpop.f32.mrf.mxu0
    %1459 = vdwg.mxu0
    %1460 = vmatpush.bf16.msra.mxu0 %v1068
    %1461 = vmatpush.bf16.msra.mxu0 %v1064
    %1462 = vmatpush.bf16.msra.mxu0 %v1060
    %1463 = vmatpush.bf16.msra.mxu0 %v1056
    %1464 = vmatpush.bf16.msra.mxu0 %v1052
    %1465 = vmatpush.bf16.msra.mxu0 %v1048
    %1466 = vmatpush.bf16.msra.mxu0 %v1044
    %1467 = vmatpush.bf16.msra.mxu0 %v1040
    %1468 = vmatmul.bf16.gmra.mxu0 %v452
    %v1469 = vpop.f32.mrf.mxu0
    %v1470 = vadd.f32 %v1447, %v1469
    %v1471 = vpop.f32.mrf.mxu0
    %v1472 = vadd.f32 %v1449, %v1471
    %1473 = vmatmul.bf16.gmra.mxu0 %v456
    %v1474 = vpop.f32.mrf.mxu0
    %v1475 = vadd.f32 %v1452, %v1474
    %v1476 = vpop.f32.mrf.mxu0
    %v1477 = vadd.f32 %v1454, %v1476
    %1478 = vmatmul.bf16.gmra.mxu0 %v460
    %v1479 = vpop.f32.mrf.mxu0
    %v1480 = vadd.f32 %v1457, %v1479
    %v1481 = vpop.f32.mrf.mxu0
    %1482 = vdwg.mxu0
    %1483 = vmatpush.bf16.msra.mxu0 %v1100
    %1484 = vmatpush.bf16.msra.mxu0 %v1096
    %1485 = vmatpush.bf16.msra.mxu0 %v1092
    %1486 = vmatpush.bf16.msra.mxu0 %v1088
    %1487 = vmatpush.bf16.msra.mxu0 %v1084
    %1488 = vmatpush.bf16.msra.mxu0 %v1080
    %1489 = vmatpush.bf16.msra.mxu0 %v1076
    %1490 = vmatpush.bf16.msra.mxu0 %v1072
    %1491 = vmatmul.bf16.gmra.mxu0 %v453
    %v1492 = vpop.f32.mrf.mxu0
    %v1493 = vadd.f32 %v1470, %v1492
    %v1494 = vpop.f32.mrf.mxu0
    %v1495 = vadd.f32 %v1472, %v1494
    %1496 = vmatmul.bf16.gmra.mxu0 %v457
    %v1497 = vpop.f32.mrf.mxu0
    %v1498 = vadd.f32 %v1475, %v1497
    %v1499 = vpop.f32.mrf.mxu0
    %v1500 = vadd.f32 %v1477, %v1499
    %1501 = vmatmul.bf16.gmra.mxu0 %v461
    %v1502 = vpop.f32.mrf.mxu0
    %v1503 = vadd.f32 %v1480, %v1502
    %v1504 = vpop.f32.mrf.mxu0
    %1505 = vdwg.mxu0
    %1506 = vmatpush.bf16.msra.mxu0 %v1005
    %1507 = vmatpush.bf16.msra.mxu0 %v1001
    %1508 = vmatpush.bf16.msra.mxu0 %v997
    %1509 = vmatpush.bf16.msra.mxu0 %v993
    %1510 = vmatpush.bf16.msra.mxu0 %v989
    %1511 = vmatpush.bf16.msra.mxu0 %v985
    %1512 = vmatpush.bf16.msra.mxu0 %v981
    %1513 = vmatpush.bf16.msra.mxu0 %v977
    %1514 = vmatmul.bf16.gmra.mxu0 %v450
    %v1515 = vpop.f32.mrf.mxu0
    %v1516 = vadd.f32 0.0, %v1515
    %v1517 = vpop.f32.mrf.mxu0
    %v1518 = vadd.f32 0.0, %v1517
    %1519 = vmatmul.bf16.gmra.mxu0 %v454
    %v1520 = vpop.f32.mrf.mxu0
    %v1521 = vadd.f32 0.0, %v1520
    %v1522 = vpop.f32.mrf.mxu0
    %v1523 = vadd.f32 0.0, %v1522
    %1524 = vmatmul.bf16.gmra.mxu0 %v458
    %v1525 = vpop.f32.mrf.mxu0
    %v1526 = vadd.f32 0.0, %v1525
    %v1527 = vpop.f32.mrf.mxu0
    %1528 = vdwg.mxu0
    %1529 = vmatpush.bf16.msra.mxu0 %v1037
    %1530 = vmatpush.bf16.msra.mxu0 %v1033
    %1531 = vmatpush.bf16.msra.mxu0 %v1029
    %1532 = vmatpush.bf16.msra.mxu0 %v1025
    %1533 = vmatpush.bf16.msra.mxu0 %v1021
    %1534 = vmatpush.bf16.msra.mxu0 %v1017
    %1535 = vmatpush.bf16.msra.mxu0 %v1013
    %1536 = vmatpush.bf16.msra.mxu0 %v1009
    %1537 = vmatmul.bf16.gmra.mxu0 %v451
    %v1538 = vpop.f32.mrf.mxu0
    %v1539 = vadd.f32 %v1516, %v1538
    %v1540 = vpop.f32.mrf.mxu0
    %v1541 = vadd.f32 %v1518, %v1540
    %1542 = vmatmul.bf16.gmra.mxu0 %v455
    %v1543 = vpop.f32.mrf.mxu0
    %v1544 = vadd.f32 %v1521, %v1543
    %v1545 = vpop.f32.mrf.mxu0
    %v1546 = vadd.f32 %v1523, %v1545
    %1547 = vmatmul.bf16.gmra.mxu0 %v459
    %v1548 = vpop.f32.mrf.mxu0
    %v1549 = vadd.f32 %v1526, %v1548
    %v1550 = vpop.f32.mrf.mxu0
    %1551 = vdwg.mxu0
    %1552 = vmatpush.bf16.msra.mxu0 %v1069
    %1553 = vmatpush.bf16.msra.mxu0 %v1065
    %1554 = vmatpush.bf16.msra.mxu0 %v1061
    %1555 = vmatpush.bf16.msra.mxu0 %v1057
    %1556 = vmatpush.bf16.msra.mxu0 %v1053
    %1557 = vmatpush.bf16.msra.mxu0 %v1049
    %1558 = vmatpush.bf16.msra.mxu0 %v1045
    %1559 = vmatpush.bf16.msra.mxu0 %v1041
    %1560 = vmatmul.bf16.gmra.mxu0 %v452
    %v1561 = vpop.f32.mrf.mxu0
    %v1562 = vadd.f32 %v1539, %v1561
    %v1563 = vpop.f32.mrf.mxu0
    %v1564 = vadd.f32 %v1541, %v1563
    %1565 = vmatmul.bf16.gmra.mxu0 %v456
    %v1566 = vpop.f32.mrf.mxu0
    %v1567 = vadd.f32 %v1544, %v1566
    %v1568 = vpop.f32.mrf.mxu0
    %v1569 = vadd.f32 %v1546, %v1568
    %1570 = vmatmul.bf16.gmra.mxu0 %v460
    %v1571 = vpop.f32.mrf.mxu0
    %v1572 = vadd.f32 %v1549, %v1571
    %v1573 = vpop.f32.mrf.mxu0
    %1574 = vdwg.mxu0
    %1575 = vmatpush.bf16.msra.mxu0 %v1101
    %1576 = vmatpush.bf16.msra.mxu0 %v1097
    %1577 = vmatpush.bf16.msra.mxu0 %v1093
    %1578 = vmatpush.bf16.msra.mxu0 %v1089
    %1579 = vmatpush.bf16.msra.mxu0 %v1085
    %1580 = vmatpush.bf16.msra.mxu0 %v1081
    %1581 = vmatpush.bf16.msra.mxu0 %v1077
    %1582 = vmatpush.bf16.msra.mxu0 %v1073
    %1583 = vmatmul.bf16.gmra.mxu0 %v453
    %v1584 = vpop.f32.mrf.mxu0
    %v1585 = vadd.f32 %v1562, %v1584
    %v1586 = vpop.f32.mrf.mxu0
    %v1587 = vadd.f32 %v1564, %v1586
    %1588 = vmatmul.bf16.gmra.mxu0 %v457
    %v1589 = vpop.f32.mrf.mxu0
    %v1590 = vadd.f32 %v1567, %v1589
    %v1591 = vpop.f32.mrf.mxu0
    %v1592 = vadd.f32 %v1569, %v1591
    %1593 = vmatmul.bf16.gmra.mxu0 %v461
    %v1594 = vpop.f32.mrf.mxu0
    %v1595 = vadd.f32 %v1572, %v1594
    %v1596 = vpop.f32.mrf.mxu0
    %1597 = vdwg.mxu0
    %v1598 = vld [vmem:[%s6] sm:$0xf]
    %v1600 = vperm.slane %v1598, 0
    %v1601 = vperm.slane %v1598, 1
    %v1602 = vperm.slane %v1598, 2
    %v1603 = vperm.slane %v1598, 3
    %v1608 = vadd.f32 %v1309, %v1600
    %v1609 = vadd.f32 %v1401, %v1601
    %v1610 = vadd.f32 %v1493, %v1602
    %v1611 = vadd.f32 %v1585, %v1603
    %v1612 = vsub.f32 0.0, %v1608
    %v1613 = vsub.f32 0.0, %v1609
    %v1614 = vsub.f32 0.0, %v1610
    %v1615 = vsub.f32 0.0, %v1611
    %v1616 = vmul.f32 %v1612, 1.442695
    %v1617 = vpow.pop %v1616
    %v1618 = vmul.f32 %v1613, 1.442695
    %v1619 = vpow.pop %v1618
    %v1620 = vmul.f32 %v1614, 1.442695
    %v1621 = vpow.pop %v1620
    %v1622 = vmul.f32 %v1615, 1.442695
    %v1623 = vpow.pop %v1622
    %v1624 = vadd.f32 %v1617, 1.0
    %v1625 = vadd.f32 %v1619, 1.0
    %v1626 = vadd.f32 %v1621, 1.0
    %v1627 = vadd.f32 %v1623, 1.0
    %v1628 = vrcp.pop %v1624
    %v1629 = vrcp.pop %v1625
    %v1630 = vrcp.pop %v1626
    %v1631 = vrcp.pop %v1627
    %v1632 = vsub.f32 1.0, %v1628
    %v1633 = vsub.f32 1.0, %v1629
    %v1634 = vsub.f32 1.0, %v1630
    %v1635 = vsub.f32 1.0, %v1631
    %v1636 = vmul.f32 %v1628, %v1632
    %v1637 = vmul.f32 %v1629, %v1633
    %v1638 = vmul.f32 %v1630, %v1634
    %v1639 = vmul.f32 %v1631, %v1635
    %v1640 = vmul.f32 %v1311, %v1636
    %v1641 = vmul.f32 %v1403, %v1637
    %v1642 = vmul.f32 %v1495, %v1638
    %v1643 = vmul.f32 %v1587, %v1639
    %v1644 = vmul.f32 %v1314, %v1636
    %v1645 = vmul.f32 %v1406, %v1637
    %v1646 = vmul.f32 %v1498, %v1638
    %v1647 = vmul.f32 %v1590, %v1639
    %v1648 = vmul.f32 %v1316, %v1636
    %v1649 = vmul.f32 %v1408, %v1637
    %v1650 = vmul.f32 %v1500, %v1638
    %v1651 = vmul.f32 %v1592, %v1639
    %v1652 = vmul.f32 %v1319, %v1636
    %v1653 = vmul.f32 %v1411, %v1637
    %v1654 = vmul.f32 %v1503, %v1638
    %v1655 = vmul.f32 %v1595, %v1639
    %v1656 = vpack.c.bf16 %v370, %v370
    %v1657 = vpack.c.bf16 %v371, %v371
    %v1658 = vpack.c.bf16 %v372, %v372
    %v1659 = vpack.c.bf16 %v373, %v373
    %v1660 = vld [vmem:[#allocation6] sm:$0xff]
    %v1661 = vld [vmem:[#allocation6 + $0x8] sm:$0xff]
    %v1662 = vld [vmem:[#allocation6 + $0x10] sm:$0xff]
    %v1663 = vld [vmem:[#allocation6 + $0x18] sm:$0xff]
    %v1664 = vld [vmem:[#allocation6 + $0x20] sm:$0xff]
    %v1665 = vld [vmem:[#allocation6 + $0x28] sm:$0xff]
    %v1666 = vld [vmem:[#allocation6 + $0x30] sm:$0xff]
    %v1667 = vld [vmem:[#allocation6 + $0x38] sm:$0xff]
    %v1668 = vld [vmem:[#allocation6 + $0x40] sm:$0xff]
    %v1669 = vld [vmem:[#allocation6 + $0x48] sm:$0xff]
    %v1670 = vld [vmem:[#allocation6 + $0x50] sm:$0xff]
    %v1671 = vld [vmem:[#allocation6 + $0x58] sm:$0xff]
    %v1672 = vld [vmem:[#allocation6 + $0x60] sm:$0xff]
    %v1673 = vld [vmem:[#allocation6 + $0x68] sm:$0xff]
    %v1674 = vld [vmem:[#allocation6 + $0x70] sm:$0xff]
    %v1675 = vld [vmem:[#allocation6 + $0x78] sm:$0xff]
    %v1676 = vld [vmem:[#allocation6 + $0x80] sm:$0xff]
    %v1677 = vld [vmem:[#allocation6 + $0x88] sm:$0xff]
    %v1678 = vld [vmem:[#allocation6 + $0x90] sm:$0xff]
    %v1679 = vld [vmem:[#allocation6 + $0x98] sm:$0xff]
    %v1680 = vld [vmem:[#allocation6 + $0xa0] sm:$0xff]
    %v1681 = vld [vmem:[#allocation6 + $0xa8] sm:$0xff]
    %v1682 = vld [vmem:[#allocation6 + $0xb0] sm:$0xff]
    %v1683 = vld [vmem:[#allocation6 + $0xb8] sm:$0xff]
    %v1684 = vld [vmem:[#allocation6 + $0xc0] sm:$0xff]
    %v1685 = vld [vmem:[#allocation6 + $0xc8] sm:$0xff]
    %v1686 = vld [vmem:[#allocation6 + $0xd0] sm:$0xff]
    %v1687 = vld [vmem:[#allocation6 + $0xd8] sm:$0xff]
    %v1688 = vld [vmem:[#allocation6 + $0xe0] sm:$0xff]
    %v1689 = vld [vmem:[#allocation6 + $0xe8] sm:$0xff]
    %v1690 = vld [vmem:[#allocation6 + $0xf0] sm:$0xff]
    %v1691 = vld [vmem:[#allocation6 + $0xf8] sm:$0xff]
    %v1692 = vld [vmem:[#allocation6 + $0x100] sm:$0xff]
    %v1693 = vld [vmem:[#allocation6 + $0x108] sm:$0xff]
    %v1694 = vld [vmem:[#allocation6 + $0x110] sm:$0xff]
    %v1695 = vld [vmem:[#allocation6 + $0x118] sm:$0xff]
    %v1696 = vld [vmem:[#allocation6 + $0x120] sm:$0xff]
    %v1697 = vld [vmem:[#allocation6 + $0x128] sm:$0xff]
    %v1698 = vld [vmem:[#allocation6 + $0x130] sm:$0xff]
    %v1699 = vld [vmem:[#allocation6 + $0x138] sm:$0xff]
    %v1700 = vld [vmem:[#allocation6 + $0x140] sm:$0xff]
    %v1701 = vld [vmem:[#allocation6 + $0x148] sm:$0xff]
    %v1702 = vld [vmem:[#allocation6 + $0x150] sm:$0xff]
    %v1703 = vld [vmem:[#allocation6 + $0x158] sm:$0xff]
    %v1704 = vld [vmem:[#allocation6 + $0x160] sm:$0xff]
    %v1705 = vld [vmem:[#allocation6 + $0x168] sm:$0xff]
    %v1706 = vld [vmem:[#allocation6 + $0x170] sm:$0xff]
    %v1707 = vld [vmem:[#allocation6 + $0x178] sm:$0xff]
    %v1708 = vld [vmem:[#allocation6 + $0x180] sm:$0xff]
    %v1709 = vld [vmem:[#allocation6 + $0x188] sm:$0xff]
    %v1710 = vld [vmem:[#allocation6 + $0x190] sm:$0xff]
    %v1711 = vld [vmem:[#allocation6 + $0x198] sm:$0xff]
    %v1712 = vld [vmem:[#allocation6 + $0x1a0] sm:$0xff]
    %v1713 = vld [vmem:[#allocation6 + $0x1a8] sm:$0xff]
    %v1714 = vld [vmem:[#allocation6 + $0x1b0] sm:$0xff]
    %v1715 = vld [vmem:[#allocation6 + $0x1b8] sm:$0xff]
    %v1716 = vld [vmem:[#allocation6 + $0x1c0] sm:$0xff]
    %v1717 = vld [vmem:[#allocation6 + $0x1c8] sm:$0xff]
    %v1718 = vld [vmem:[#allocation6 + $0x1d0] sm:$0xff]
    %v1719 = vld [vmem:[#allocation6 + $0x1d8] sm:$0xff]
    %v1720 = vld [vmem:[#allocation6 + $0x1e0] sm:$0xff]
    %v1721 = vld [vmem:[#allocation6 + $0x1e8] sm:$0xff]
    %v1722 = vld [vmem:[#allocation6 + $0x1f0] sm:$0xff]
    %v1723 = vld [vmem:[#allocation6 + $0x1f8] sm:$0xff]
    %v1724 = vld [vmem:[#allocation6 + $0x200] sm:$0xff]
    %v1725 = vld [vmem:[#allocation6 + $0x208] sm:$0xff]
    %v1726 = vld [vmem:[#allocation6 + $0x210] sm:$0xff]
    %v1727 = vld [vmem:[#allocation6 + $0x218] sm:$0xff]
    %v1728 = vld [vmem:[#allocation6 + $0x220] sm:$0xff]
    %v1729 = vld [vmem:[#allocation6 + $0x228] sm:$0xff]
    %v1730 = vld [vmem:[#allocation6 + $0x230] sm:$0xff]
    %v1731 = vld [vmem:[#allocation6 + $0x238] sm:$0xff]
    %v1732 = vld [vmem:[#allocation6 + $0x240] sm:$0xff]
    %v1733 = vld [vmem:[#allocation6 + $0x248] sm:$0xff]
    %v1734 = vld [vmem:[#allocation6 + $0x250] sm:$0xff]
    %v1735 = vld [vmem:[#allocation6 + $0x258] sm:$0xff]
    %v1736 = vld [vmem:[#allocation6 + $0x260] sm:$0xff]
    %v1737 = vld [vmem:[#allocation6 + $0x268] sm:$0xff]
    %v1738 = vld [vmem:[#allocation6 + $0x270] sm:$0xff]
    %v1739 = vld [vmem:[#allocation6 + $0x278] sm:$0xff]
    %v1740 = vld [vmem:[#allocation6 + $0x280] sm:$0xff]
    %v1741 = vld [vmem:[#allocation6 + $0x288] sm:$0xff]
    %v1742 = vld [vmem:[#allocation6 + $0x290] sm:$0xff]
    %v1743 = vld [vmem:[#allocation6 + $0x298] sm:$0xff]
    %v1744 = vld [vmem:[#allocation6 + $0x2a0] sm:$0xff]
    %v1745 = vld [vmem:[#allocation6 + $0x2a8] sm:$0xff]
    %v1746 = vld [vmem:[#allocation6 + $0x2b0] sm:$0xff]
    %v1747 = vld [vmem:[#allocation6 + $0x2b8] sm:$0xff]
    %v1748 = vld [vmem:[#allocation6 + $0x2c0] sm:$0xff]
    %v1749 = vld [vmem:[#allocation6 + $0x2c8] sm:$0xff]
    %v1750 = vld [vmem:[#allocation6 + $0x2d0] sm:$0xff]
    %v1751 = vld [vmem:[#allocation6 + $0x2d8] sm:$0xff]
    %v1752 = vld [vmem:[#allocation6 + $0x2e0] sm:$0xff]
    %v1753 = vld [vmem:[#allocation6 + $0x2e8] sm:$0xff]
    %v1754 = vld [vmem:[#allocation6 + $0x2f0] sm:$0xff]
    %v1755 = vld [vmem:[#allocation6 + $0x2f8] sm:$0xff]
    %v1756 = vld [vmem:[#allocation6 + $0x300] sm:$0xff]
    %v1757 = vld [vmem:[#allocation6 + $0x308] sm:$0xff]
    %v1758 = vld [vmem:[#allocation6 + $0x310] sm:$0xff]
    %v1759 = vld [vmem:[#allocation6 + $0x318] sm:$0xff]
    %v1760 = vld [vmem:[#allocation6 + $0x320] sm:$0xff]
    %v1761 = vld [vmem:[#allocation6 + $0x328] sm:$0xff]
    %v1762 = vld [vmem:[#allocation6 + $0x330] sm:$0xff]
    %v1763 = vld [vmem:[#allocation6 + $0x338] sm:$0xff]
    %v1764 = vld [vmem:[#allocation6 + $0x340] sm:$0xff]
    %v1765 = vld [vmem:[#allocation6 + $0x348] sm:$0xff]
    %v1766 = vld [vmem:[#allocation6 + $0x350] sm:$0xff]
    %v1767 = vld [vmem:[#allocation6 + $0x358] sm:$0xff]
    %v1768 = vld [vmem:[#allocation6 + $0x360] sm:$0xff]
    %v1769 = vld [vmem:[#allocation6 + $0x368] sm:$0xff]
    %v1770 = vld [vmem:[#allocation6 + $0x370] sm:$0xff]
    %v1771 = vld [vmem:[#allocation6 + $0x378] sm:$0xff]
    %v1772 = vld [vmem:[#allocation6 + $0x380] sm:$0xff]
    %v1773 = vld [vmem:[#allocation6 + $0x388] sm:$0xff]
    %v1774 = vld [vmem:[#allocation6 + $0x390] sm:$0xff]
    %v1775 = vld [vmem:[#allocation6 + $0x398] sm:$0xff]
    %v1776 = vld [vmem:[#allocation6 + $0x3a0] sm:$0xff]
    %v1777 = vld [vmem:[#allocation6 + $0x3a8] sm:$0xff]
    %v1778 = vld [vmem:[#allocation6 + $0x3b0] sm:$0xff]
    %v1779 = vld [vmem:[#allocation6 + $0x3b8] sm:$0xff]
    %v1780 = vld [vmem:[#allocation6 + $0x3c0] sm:$0xff]
    %v1781 = vld [vmem:[#allocation6 + $0x3c8] sm:$0xff]
    %v1782 = vld [vmem:[#allocation6 + $0x3d0] sm:$0xff]
    %v1783 = vld [vmem:[#allocation6 + $0x3d8] sm:$0xff]
    %v1784 = vld [vmem:[#allocation6 + $0x3e0] sm:$0xff]
    %v1785 = vld [vmem:[#allocation6 + $0x3e8] sm:$0xff]
    %v1786 = vld [vmem:[#allocation6 + $0x3f0] sm:$0xff]
    %v1787 = vld [vmem:[#allocation6 + $0x3f8] sm:$0xff]
    %v1788 = vld [vmem:[%s12] sm:$0xf]
    %v1790 = vperm.slane %v1788, 0
    %v1791 = vperm.slane %v1788, 1
    %v1792 = vperm.slane %v1788, 2
    %v1793 = vperm.slane %v1788, 3
    %v1926 = vunpack.c.l.b16 %v1660
    %v1927 = vunpack.c.h.b16 %v1660
    %v1928 = vunpack.c.l.b16 %v1661
    %v1929 = vunpack.c.h.b16 %v1661
    %v1930 = vunpack.c.l.b16 %v1662
    %v1931 = vunpack.c.h.b16 %v1662
    %v1932 = vunpack.c.l.b16 %v1663
    %v1933 = vunpack.c.h.b16 %v1663
    %v1934 = vunpack.c.l.b16 %v1664
    %v1935 = vunpack.c.h.b16 %v1664
    %v1936 = vunpack.c.l.b16 %v1665
    %v1937 = vunpack.c.h.b16 %v1665
    %v1938 = vunpack.c.l.b16 %v1666
    %v1939 = vunpack.c.h.b16 %v1666
    %v1940 = vunpack.c.l.b16 %v1667
    %v1941 = vunpack.c.h.b16 %v1667
    %v1942 = vunpack.c.l.b16 %v1668
    %v1943 = vunpack.c.h.b16 %v1668
    %v1944 = vunpack.c.l.b16 %v1669
    %v1945 = vunpack.c.h.b16 %v1669
    %v1946 = vunpack.c.l.b16 %v1670
    %v1947 = vunpack.c.h.b16 %v1670
    %v1948 = vunpack.c.l.b16 %v1671
    %v1949 = vunpack.c.h.b16 %v1671
    %v1950 = vunpack.c.l.b16 %v1672
    %v1951 = vunpack.c.h.b16 %v1672
    %v1952 = vunpack.c.l.b16 %v1673
    %v1953 = vunpack.c.h.b16 %v1673
    %v1954 = vunpack.c.l.b16 %v1674
    %v1955 = vunpack.c.h.b16 %v1674
    %v1956 = vunpack.c.l.b16 %v1675
    %v1957 = vunpack.c.h.b16 %v1675
    %v1958 = vunpack.c.l.b16 %v1676
    %v1959 = vunpack.c.h.b16 %v1676
    %v1960 = vunpack.c.l.b16 %v1677
    %v1961 = vunpack.c.h.b16 %v1677
    %v1962 = vunpack.c.l.b16 %v1678
    %v1963 = vunpack.c.h.b16 %v1678
    %v1964 = vunpack.c.l.b16 %v1679
    %v1965 = vunpack.c.h.b16 %v1679
    %v1966 = vunpack.c.l.b16 %v1680
    %v1967 = vunpack.c.h.b16 %v1680
    %v1968 = vunpack.c.l.b16 %v1681
    %v1969 = vunpack.c.h.b16 %v1681
    %v1970 = vunpack.c.l.b16 %v1682
    %v1971 = vunpack.c.h.b16 %v1682
    %v1972 = vunpack.c.l.b16 %v1683
    %v1973 = vunpack.c.h.b16 %v1683
    %v1974 = vunpack.c.l.b16 %v1684
    %v1975 = vunpack.c.h.b16 %v1684
    %v1976 = vunpack.c.l.b16 %v1685
    %v1977 = vunpack.c.h.b16 %v1685
    %v1978 = vunpack.c.l.b16 %v1686
    %v1979 = vunpack.c.h.b16 %v1686
    %v1980 = vunpack.c.l.b16 %v1687
    %v1981 = vunpack.c.h.b16 %v1687
    %v1982 = vunpack.c.l.b16 %v1688
    %v1983 = vunpack.c.h.b16 %v1688
    %v1984 = vunpack.c.l.b16 %v1689
    %v1985 = vunpack.c.h.b16 %v1689
    %v1986 = vunpack.c.l.b16 %v1690
    %v1987 = vunpack.c.h.b16 %v1690
    %v1988 = vunpack.c.l.b16 %v1691
    %v1989 = vunpack.c.h.b16 %v1691
    %v1990 = vunpack.c.l.b16 %v1692
    %v1991 = vunpack.c.h.b16 %v1692
    %v1992 = vunpack.c.l.b16 %v1693
    %v1993 = vunpack.c.h.b16 %v1693
    %v1994 = vunpack.c.l.b16 %v1694
    %v1995 = vunpack.c.h.b16 %v1694
    %v1996 = vunpack.c.l.b16 %v1695
    %v1997 = vunpack.c.h.b16 %v1695
    %v1998 = vunpack.c.l.b16 %v1696
    %v1999 = vunpack.c.h.b16 %v1696
    %v2000 = vunpack.c.l.b16 %v1697
    %v2001 = vunpack.c.h.b16 %v1697
    %v2002 = vunpack.c.l.b16 %v1698
    %v2003 = vunpack.c.h.b16 %v1698
    %v2004 = vunpack.c.l.b16 %v1699
    %v2005 = vunpack.c.h.b16 %v1699
    %v2006 = vunpack.c.l.b16 %v1700
    %v2007 = vunpack.c.h.b16 %v1700
    %v2008 = vunpack.c.l.b16 %v1701
    %v2009 = vunpack.c.h.b16 %v1701
    %v2010 = vunpack.c.l.b16 %v1702
    %v2011 = vunpack.c.h.b16 %v1702
    %v2012 = vunpack.c.l.b16 %v1703
    %v2013 = vunpack.c.h.b16 %v1703
    %v2014 = vunpack.c.l.b16 %v1704
    %v2015 = vunpack.c.h.b16 %v1704
    %v2016 = vunpack.c.l.b16 %v1705
    %v2017 = vunpack.c.h.b16 %v1705
    %v2018 = vunpack.c.l.b16 %v1706
    %v2019 = vunpack.c.h.b16 %v1706
    %v2020 = vunpack.c.l.b16 %v1707
    %v2021 = vunpack.c.h.b16 %v1707
    %v2022 = vunpack.c.l.b16 %v1708
    %v2023 = vunpack.c.h.b16 %v1708
    %v2024 = vunpack.c.l.b16 %v1709
    %v2025 = vunpack.c.h.b16 %v1709
    %v2026 = vunpack.c.l.b16 %v1710
    %v2027 = vunpack.c.h.b16 %v1710
    %v2028 = vunpack.c.l.b16 %v1711
    %v2029 = vunpack.c.h.b16 %v1711
    %v2030 = vunpack.c.l.b16 %v1712
    %v2031 = vunpack.c.h.b16 %v1712
    %v2032 = vunpack.c.l.b16 %v1713
    %v2033 = vunpack.c.h.b16 %v1713
    %v2034 = vunpack.c.l.b16 %v1714
    %v2035 = vunpack.c.h.b16 %v1714
    %v2036 = vunpack.c.l.b16 %v1715
    %v2037 = vunpack.c.h.b16 %v1715
    %v2038 = vunpack.c.l.b16 %v1716
    %v2039 = vunpack.c.h.b16 %v1716
    %v2040 = vunpack.c.l.b16 %v1717
    %v2041 = vunpack.c.h.b16 %v1717
    %v2042 = vunpack.c.l.b16 %v1718
    %v2043 = vunpack.c.h.b16 %v1718
    %v2044 = vunpack.c.l.b16 %v1719
    %v2045 = vunpack.c.h.b16 %v1719
    %v2046 = vunpack.c.l.b16 %v1720
    %v2047 = vunpack.c.h.b16 %v1720
    %v2048 = vunpack.c.l.b16 %v1721
    %v2049 = vunpack.c.h.b16 %v1721
    %v2050 = vunpack.c.l.b16 %v1722
    %v2051 = vunpack.c.h.b16 %v1722
    %v2052 = vunpack.c.l.b16 %v1723
    %v2053 = vunpack.c.h.b16 %v1723
    %v2054 = vunpack.c.l.b16 %v1724
    %v2055 = vunpack.c.h.b16 %v1724
    %v2056 = vunpack.c.l.b16 %v1725
    %v2057 = vunpack.c.h.b16 %v1725
    %v2058 = vunpack.c.l.b16 %v1726
    %v2059 = vunpack.c.h.b16 %v1726
    %v2060 = vunpack.c.l.b16 %v1727
    %v2061 = vunpack.c.h.b16 %v1727
    %v2062 = vunpack.c.l.b16 %v1728
    %v2063 = vunpack.c.h.b16 %v1728
    %v2064 = vunpack.c.l.b16 %v1729
    %v2065 = vunpack.c.h.b16 %v1729
    %v2066 = vunpack.c.l.b16 %v1730
    %v2067 = vunpack.c.h.b16 %v1730
    %v2068 = vunpack.c.l.b16 %v1731
    %v2069 = vunpack.c.h.b16 %v1731
    %v2070 = vunpack.c.l.b16 %v1732
    %v2071 = vunpack.c.h.b16 %v1732
    %v2072 = vunpack.c.l.b16 %v1733
    %v2073 = vunpack.c.h.b16 %v1733
    %v2074 = vunpack.c.l.b16 %v1734
    %v2075 = vunpack.c.h.b16 %v1734
    %v2076 = vunpack.c.l.b16 %v1735
    %v2077 = vunpack.c.h.b16 %v1735
    %v2078 = vunpack.c.l.b16 %v1736
    %v2079 = vunpack.c.h.b16 %v1736
    %v2080 = vunpack.c.l.b16 %v1737
    %v2081 = vunpack.c.h.b16 %v1737
    %v2082 = vunpack.c.l.b16 %v1738
    %v2083 = vunpack.c.h.b16 %v1738
    %v2084 = vunpack.c.l.b16 %v1739
    %v2085 = vunpack.c.h.b16 %v1739
    %v2086 = vunpack.c.l.b16 %v1740
    %v2087 = vunpack.c.h.b16 %v1740
    %v2088 = vunpack.c.l.b16 %v1741
    %v2089 = vunpack.c.h.b16 %v1741
    %v2090 = vunpack.c.l.b16 %v1742
    %v2091 = vunpack.c.h.b16 %v1742
    %v2092 = vunpack.c.l.b16 %v1743
    %v2093 = vunpack.c.h.b16 %v1743
    %v2094 = vunpack.c.l.b16 %v1744
    %v2095 = vunpack.c.h.b16 %v1744
    %v2096 = vunpack.c.l.b16 %v1745
    %v2097 = vunpack.c.h.b16 %v1745
    %v2098 = vunpack.c.l.b16 %v1746
    %v2099 = vunpack.c.h.b16 %v1746
    %v2100 = vunpack.c.l.b16 %v1747
    %v2101 = vunpack.c.h.b16 %v1747
    %v2102 = vunpack.c.l.b16 %v1748
    %v2103 = vunpack.c.h.b16 %v1748
    %v2104 = vunpack.c.l.b16 %v1749
    %v2105 = vunpack.c.h.b16 %v1749
    %v2106 = vunpack.c.l.b16 %v1750
    %v2107 = vunpack.c.h.b16 %v1750
    %v2108 = vunpack.c.l.b16 %v1751
    %v2109 = vunpack.c.h.b16 %v1751
    %v2110 = vunpack.c.l.b16 %v1752
    %v2111 = vunpack.c.h.b16 %v1752
    %v2112 = vunpack.c.l.b16 %v1753
    %v2113 = vunpack.c.h.b16 %v1753
    %v2114 = vunpack.c.l.b16 %v1754
    %v2115 = vunpack.c.h.b16 %v1754
    %v2116 = vunpack.c.l.b16 %v1755
    %v2117 = vunpack.c.h.b16 %v1755
    %v2118 = vunpack.c.l.b16 %v1756
    %v2119 = vunpack.c.h.b16 %v1756
    %v2120 = vunpack.c.l.b16 %v1757
    %v2121 = vunpack.c.h.b16 %v1757
    %v2122 = vunpack.c.l.b16 %v1758
    %v2123 = vunpack.c.h.b16 %v1758
    %v2124 = vunpack.c.l.b16 %v1759
    %v2125 = vunpack.c.h.b16 %v1759
    %v2126 = vunpack.c.l.b16 %v1760
    %v2127 = vunpack.c.h.b16 %v1760
    %v2128 = vunpack.c.l.b16 %v1761
    %v2129 = vunpack.c.h.b16 %v1761
    %v2130 = vunpack.c.l.b16 %v1762
    %v2131 = vunpack.c.h.b16 %v1762
    %v2132 = vunpack.c.l.b16 %v1763
    %v2133 = vunpack.c.h.b16 %v1763
    %v2134 = vunpack.c.l.b16 %v1764
    %v2135 = vunpack.c.h.b16 %v1764
    %v2136 = vunpack.c.l.b16 %v1765
    %v2137 = vunpack.c.h.b16 %v1765
    %v2138 = vunpack.c.l.b16 %v1766
    %v2139 = vunpack.c.h.b16 %v1766
    %v2140 = vunpack.c.l.b16 %v1767
    %v2141 = vunpack.c.h.b16 %v1767
    %v2142 = vunpack.c.l.b16 %v1768
    %v2143 = vunpack.c.h.b16 %v1768
    %v2144 = vunpack.c.l.b16 %v1769
    %v2145 = vunpack.c.h.b16 %v1769
    %v2146 = vunpack.c.l.b16 %v1770
    %v2147 = vunpack.c.h.b16 %v1770
    %v2148 = vunpack.c.l.b16 %v1771
    %v2149 = vunpack.c.h.b16 %v1771
    %v2150 = vunpack.c.l.b16 %v1772
    %v2151 = vunpack.c.h.b16 %v1772
    %v2152 = vunpack.c.l.b16 %v1773
    %v2153 = vunpack.c.h.b16 %v1773
    %v2154 = vunpack.c.l.b16 %v1774
    %v2155 = vunpack.c.h.b16 %v1774
    %v2156 = vunpack.c.l.b16 %v1775
    %v2157 = vunpack.c.h.b16 %v1775
    %v2158 = vunpack.c.l.b16 %v1776
    %v2159 = vunpack.c.h.b16 %v1776
    %v2160 = vunpack.c.l.b16 %v1777
    %v2161 = vunpack.c.h.b16 %v1777
    %v2162 = vunpack.c.l.b16 %v1778
    %v2163 = vunpack.c.h.b16 %v1778
    %v2164 = vunpack.c.l.b16 %v1779
    %v2165 = vunpack.c.h.b16 %v1779
    %v2166 = vunpack.c.l.b16 %v1780
    %v2167 = vunpack.c.h.b16 %v1780
    %v2168 = vunpack.c.l.b16 %v1781
    %v2169 = vunpack.c.h.b16 %v1781
    %v2170 = vunpack.c.l.b16 %v1782
    %v2171 = vunpack.c.h.b16 %v1782
    %v2172 = vunpack.c.l.b16 %v1783
    %v2173 = vunpack.c.h.b16 %v1783
    %v2174 = vunpack.c.l.b16 %v1784
    %v2175 = vunpack.c.h.b16 %v1784
    %v2176 = vunpack.c.l.b16 %v1785
    %v2177 = vunpack.c.h.b16 %v1785
    %v2178 = vunpack.c.l.b16 %v1786
    %v2179 = vunpack.c.h.b16 %v1786
    %v2180 = vunpack.c.l.b16 %v1787
    %v2181 = vunpack.c.h.b16 %v1787
    %v2182 = vpack.c.b16 %v1930, %v1926
    %v2183 = vpack.c.b16 %v1931, %v1927
    %v2184 = vpack.c.b16 %v1932, %v1928
    %v2185 = vpack.c.b16 %v1933, %v1929
    %v2186 = vpack.c.b16 %v1938, %v1934
    %v2187 = vpack.c.b16 %v1939, %v1935
    %v2188 = vpack.c.b16 %v1940, %v1936
    %v2189 = vpack.c.b16 %v1941, %v1937
    %v2190 = vpack.c.b16 %v1946, %v1942
    %v2191 = vpack.c.b16 %v1947, %v1943
    %v2192 = vpack.c.b16 %v1948, %v1944
    %v2193 = vpack.c.b16 %v1949, %v1945
    %v2194 = vpack.c.b16 %v1954, %v1950
    %v2195 = vpack.c.b16 %v1955, %v1951
    %v2196 = vpack.c.b16 %v1956, %v1952
    %v2197 = vpack.c.b16 %v1957, %v1953
    %v2198 = vpack.c.b16 %v1962, %v1958
    %v2199 = vpack.c.b16 %v1963, %v1959
    %v2200 = vpack.c.b16 %v1964, %v1960
    %v2201 = vpack.c.b16 %v1965, %v1961
    %v2202 = vpack.c.b16 %v1970, %v1966
    %v2203 = vpack.c.b16 %v1971, %v1967
    %v2204 = vpack.c.b16 %v1972, %v1968
    %v2205 = vpack.c.b16 %v1973, %v1969
    %v2206 = vpack.c.b16 %v1978, %v1974
    %v2207 = vpack.c.b16 %v1979, %v1975
    %v2208 = vpack.c.b16 %v1980, %v1976
    %v2209 = vpack.c.b16 %v1981, %v1977
    %v2210 = vpack.c.b16 %v1986, %v1982
    %v2211 = vpack.c.b16 %v1987, %v1983
    %v2212 = vpack.c.b16 %v1988, %v1984
    %v2213 = vpack.c.b16 %v1989, %v1985
    %v2214 = vpack.c.b16 %v1994, %v1990
    %v2215 = vpack.c.b16 %v1995, %v1991
    %v2216 = vpack.c.b16 %v1996, %v1992
    %v2217 = vpack.c.b16 %v1997, %v1993
    %v2218 = vpack.c.b16 %v2002, %v1998
    %v2219 = vpack.c.b16 %v2003, %v1999
    %v2220 = vpack.c.b16 %v2004, %v2000
    %v2221 = vpack.c.b16 %v2005, %v2001
    %v2222 = vpack.c.b16 %v2010, %v2006
    %v2223 = vpack.c.b16 %v2011, %v2007
    %v2224 = vpack.c.b16 %v2012, %v2008
    %v2225 = vpack.c.b16 %v2013, %v2009
    %v2226 = vpack.c.b16 %v2018, %v2014
    %v2227 = vpack.c.b16 %v2019, %v2015
    %v2228 = vpack.c.b16 %v2020, %v2016
    %v2229 = vpack.c.b16 %v2021, %v2017
    %v2230 = vpack.c.b16 %v2026, %v2022
    %v2231 = vpack.c.b16 %v2027, %v2023
    %v2232 = vpack.c.b16 %v2028, %v2024
    %v2233 = vpack.c.b16 %v2029, %v2025
    %v2234 = vpack.c.b16 %v2034, %v2030
    %v2235 = vpack.c.b16 %v2035, %v2031
    %v2236 = vpack.c.b16 %v2036, %v2032
    %v2237 = vpack.c.b16 %v2037, %v2033
    %v2238 = vpack.c.b16 %v2042, %v2038
    %v2239 = vpack.c.b16 %v2043, %v2039
    %v2240 = vpack.c.b16 %v2044, %v2040
    %v2241 = vpack.c.b16 %v2045, %v2041
    %v2242 = vpack.c.b16 %v2050, %v2046
    %v2243 = vpack.c.b16 %v2051, %v2047
    %v2244 = vpack.c.b16 %v2052, %v2048
    %v2245 = vpack.c.b16 %v2053, %v2049
    %v2246 = vpack.c.b16 %v2058, %v2054
    %v2247 = vpack.c.b16 %v2059, %v2055
    %v2248 = vpack.c.b16 %v2060, %v2056
    %v2249 = vpack.c.b16 %v2061, %v2057
    %v2250 = vpack.c.b16 %v2066, %v2062
    %v2251 = vpack.c.b16 %v2067, %v2063
    %v2252 = vpack.c.b16 %v2068, %v2064
    %v2253 = vpack.c.b16 %v2069, %v2065
    %v2254 = vpack.c.b16 %v2074, %v2070
    %v2255 = vpack.c.b16 %v2075, %v2071
    %v2256 = vpack.c.b16 %v2076, %v2072
    %v2257 = vpack.c.b16 %v2077, %v2073
    %v2258 = vpack.c.b16 %v2082, %v2078
    %v2259 = vpack.c.b16 %v2083, %v2079
    %v2260 = vpack.c.b16 %v2084, %v2080
    %v2261 = vpack.c.b16 %v2085, %v2081
    %v2262 = vpack.c.b16 %v2090, %v2086
    %v2263 = vpack.c.b16 %v2091, %v2087
    %v2264 = vpack.c.b16 %v2092, %v2088
    %v2265 = vpack.c.b16 %v2093, %v2089
    %v2266 = vpack.c.b16 %v2098, %v2094
    %v2267 = vpack.c.b16 %v2099, %v2095
    %v2268 = vpack.c.b16 %v2100, %v2096
    %v2269 = vpack.c.b16 %v2101, %v2097
    %v2270 = vpack.c.b16 %v2106, %v2102
    %v2271 = vpack.c.b16 %v2107, %v2103
    %v2272 = vpack.c.b16 %v2108, %v2104
    %v2273 = vpack.c.b16 %v2109, %v2105
    %v2274 = vpack.c.b16 %v2114, %v2110
    %v2275 = vpack.c.b16 %v2115, %v2111
    %v2276 = vpack.c.b16 %v2116, %v2112
    %v2277 = vpack.c.b16 %v2117, %v2113
    %v2278 = vpack.c.b16 %v2122, %v2118
    %v2279 = vpack.c.b16 %v2123, %v2119
    %v2280 = vpack.c.b16 %v2124, %v2120
    %v2281 = vpack.c.b16 %v2125, %v2121
    %v2282 = vpack.c.b16 %v2130, %v2126
    %v2283 = vpack.c.b16 %v2131, %v2127
    %v2284 = vpack.c.b16 %v2132, %v2128
    %v2285 = vpack.c.b16 %v2133, %v2129
    %v2286 = vpack.c.b16 %v2138, %v2134
    %v2287 = vpack.c.b16 %v2139, %v2135
    %v2288 = vpack.c.b16 %v2140, %v2136
    %v2289 = vpack.c.b16 %v2141, %v2137
    %v2290 = vpack.c.b16 %v2146, %v2142
    %v2291 = vpack.c.b16 %v2147, %v2143
    %v2292 = vpack.c.b16 %v2148, %v2144
    %v2293 = vpack.c.b16 %v2149, %v2145
    %v2294 = vpack.c.b16 %v2154, %v2150
    %v2295 = vpack.c.b16 %v2155, %v2151
    %v2296 = vpack.c.b16 %v2156, %v2152
    %v2297 = vpack.c.b16 %v2157, %v2153
    %v2298 = vpack.c.b16 %v2162, %v2158
    %v2299 = vpack.c.b16 %v2163, %v2159
    %v2300 = vpack.c.b16 %v2164, %v2160
    %v2301 = vpack.c.b16 %v2165, %v2161
    %v2302 = vpack.c.b16 %v2170, %v2166
    %v2303 = vpack.c.b16 %v2171, %v2167
    %v2304 = vpack.c.b16 %v2172, %v2168
    %v2305 = vpack.c.b16 %v2173, %v2169
    %v2306 = vpack.c.b16 %v2178, %v2174
    %v2307 = vpack.c.b16 %v2179, %v2175
    %v2308 = vpack.c.b16 %v2180, %v2176
    %v2309 = vpack.c.b16 %v2181, %v2177
    %2438 = vmatpush.bf16.msra.mxu0 %v2210
    %2439 = vmatpush.bf16.msra.mxu0 %v2206
    %2440 = vmatpush.bf16.msra.mxu0 %v2202
    %2441 = vmatpush.bf16.msra.mxu0 %v2198
    %2442 = vmatpush.bf16.msra.mxu0 %v2194
    %2443 = vmatpush.bf16.msra.mxu0 %v2190
    %2444 = vmatpush.bf16.msra.mxu0 %v2186
    %2445 = vmatpush.bf16.msra.mxu0 %v2182
    %2446 = vmatmul.bf16.gmra.mxu0 %v1656
    %v2447 = vpop.f32.mrf.mxu0
    %v2448 = vadd.f32 %v1790, %v2447
    %v2449 = vpop.f32.mrf.mxu0
    %2450 = vdwg.mxu0
    %2451 = vmatpush.bf16.msra.mxu0 %v2242
    %2452 = vmatpush.bf16.msra.mxu0 %v2238
    %2453 = vmatpush.bf16.msra.mxu0 %v2234
    %2454 = vmatpush.bf16.msra.mxu0 %v2230
    %2455 = vmatpush.bf16.msra.mxu0 %v2226
    %2456 = vmatpush.bf16.msra.mxu0 %v2222
    %2457 = vmatpush.bf16.msra.mxu0 %v2218
    %2458 = vmatpush.bf16.msra.mxu0 %v2214
    %2459 = vmatmul.bf16.gmra.mxu0 %v1657
    %v2460 = vpop.f32.mrf.mxu0
    %v2461 = vadd.f32 %v2448, %v2460
    %v2462 = vpop.f32.mrf.mxu0
    %2463 = vdwg.mxu0
    %2464 = vmatpush.bf16.msra.mxu0 %v2274
    %2465 = vmatpush.bf16.msra.mxu0 %v2270
    %2466 = vmatpush.bf16.msra.mxu0 %v2266
    %2467 = vmatpush.bf16.msra.mxu0 %v2262
    %2468 = vmatpush.bf16.msra.mxu0 %v2258
    %2469 = vmatpush.bf16.msra.mxu0 %v2254
    %2470 = vmatpush.bf16.msra.mxu0 %v2250
    %2471 = vmatpush.bf16.msra.mxu0 %v2246
    %2472 = vmatmul.bf16.gmra.mxu0 %v1658
    %v2473 = vpop.f32.mrf.mxu0
    %v2474 = vadd.f32 %v2461, %v2473
    %v2475 = vpop.f32.mrf.mxu0
    %2476 = vdwg.mxu0
    %2477 = vmatpush.bf16.msra.mxu0 %v2306
    %2478 = vmatpush.bf16.msra.mxu0 %v2302
    %2479 = vmatpush.bf16.msra.mxu0 %v2298
    %2480 = vmatpush.bf16.msra.mxu0 %v2294
    %2481 = vmatpush.bf16.msra.mxu0 %v2290
    %2482 = vmatpush.bf16.msra.mxu0 %v2286
    %2483 = vmatpush.bf16.msra.mxu0 %v2282
    %2484 = vmatpush.bf16.msra.mxu0 %v2278
    %2485 = vmatmul.bf16.gmra.mxu0 %v1659
    %v2486 = vpop.f32.mrf.mxu0
    %v2487 = vadd.f32 %v2474, %v2486
    %v2488 = vpop.f32.mrf.mxu0
    %2489 = vdwg.mxu0
    %2490 = vmatpush.bf16.msra.mxu0 %v2211
    %2491 = vmatpush.bf16.msra.mxu0 %v2207
    %2492 = vmatpush.bf16.msra.mxu0 %v2203
    %2493 = vmatpush.bf16.msra.mxu0 %v2199
    %2494 = vmatpush.bf16.msra.mxu0 %v2195
    %2495 = vmatpush.bf16.msra.mxu0 %v2191
    %2496 = vmatpush.bf16.msra.mxu0 %v2187
    %2497 = vmatpush.bf16.msra.mxu0 %v2183
    %2498 = vmatmul.bf16.gmra.mxu0 %v1656
    %v2499 = vpop.f32.mrf.mxu0
    %v2500 = vadd.f32 %v1791, %v2499
    %v2501 = vpop.f32.mrf.mxu0
    %2502 = vdwg.mxu0
    %2503 = vmatpush.bf16.msra.mxu0 %v2243
    %2504 = vmatpush.bf16.msra.mxu0 %v2239
    %2505 = vmatpush.bf16.msra.mxu0 %v2235
    %2506 = vmatpush.bf16.msra.mxu0 %v2231
    %2507 = vmatpush.bf16.msra.mxu0 %v2227
    %2508 = vmatpush.bf16.msra.mxu0 %v2223
    %2509 = vmatpush.bf16.msra.mxu0 %v2219
    %2510 = vmatpush.bf16.msra.mxu0 %v2215
    %2511 = vmatmul.bf16.gmra.mxu0 %v1657
    %v2512 = vpop.f32.mrf.mxu0
    %v2513 = vadd.f32 %v2500, %v2512
    %v2514 = vpop.f32.mrf.mxu0
    %2515 = vdwg.mxu0
    %2516 = vmatpush.bf16.msra.mxu0 %v2275
    %2517 = vmatpush.bf16.msra.mxu0 %v2271
    %2518 = vmatpush.bf16.msra.mxu0 %v2267
    %2519 = vmatpush.bf16.msra.mxu0 %v2263
    %2520 = vmatpush.bf16.msra.mxu0 %v2259
    %2521 = vmatpush.bf16.msra.mxu0 %v2255
    %2522 = vmatpush.bf16.msra.mxu0 %v2251
    %2523 = vmatpush.bf16.msra.mxu0 %v2247
    %2524 = vmatmul.bf16.gmra.mxu0 %v1658
    %v2525 = vpop.f32.mrf.mxu0
    %v2526 = vadd.f32 %v2513, %v2525
    %v2527 = vpop.f32.mrf.mxu0
    %2528 = vdwg.mxu0
    %2529 = vmatpush.bf16.msra.mxu0 %v2307
    %2530 = vmatpush.bf16.msra.mxu0 %v2303
    %2531 = vmatpush.bf16.msra.mxu0 %v2299
    %2532 = vmatpush.bf16.msra.mxu0 %v2295
    %2533 = vmatpush.bf16.msra.mxu0 %v2291
    %2534 = vmatpush.bf16.msra.mxu0 %v2287
    %2535 = vmatpush.bf16.msra.mxu0 %v2283
    %2536 = vmatpush.bf16.msra.mxu0 %v2279
    %2537 = vmatmul.bf16.gmra.mxu0 %v1659
    %v2538 = vpop.f32.mrf.mxu0
    %v2539 = vadd.f32 %v2526, %v2538
    %v2540 = vpop.f32.mrf.mxu0
    %2541 = vdwg.mxu0
    %2542 = vmatpush.bf16.msra.mxu0 %v2212
    %2543 = vmatpush.bf16.msra.mxu0 %v2208
    %2544 = vmatpush.bf16.msra.mxu0 %v2204
    %2545 = vmatpush.bf16.msra.mxu0 %v2200
    %2546 = vmatpush.bf16.msra.mxu0 %v2196
    %2547 = vmatpush.bf16.msra.mxu0 %v2192
    %2548 = vmatpush.bf16.msra.mxu0 %v2188
    %2549 = vmatpush.bf16.msra.mxu0 %v2184
    %2550 = vmatmul.bf16.gmra.mxu0 %v1656
    %v2551 = vpop.f32.mrf.mxu0
    %v2552 = vadd.f32 %v1792, %v2551
    %v2553 = vpop.f32.mrf.mxu0
    %2554 = vdwg.mxu0
    %2555 = vmatpush.bf16.msra.mxu0 %v2244
    %2556 = vmatpush.bf16.msra.mxu0 %v2240
    %2557 = vmatpush.bf16.msra.mxu0 %v2236
    %2558 = vmatpush.bf16.msra.mxu0 %v2232
    %2559 = vmatpush.bf16.msra.mxu0 %v2228
    %2560 = vmatpush.bf16.msra.mxu0 %v2224
    %2561 = vmatpush.bf16.msra.mxu0 %v2220
    %2562 = vmatpush.bf16.msra.mxu0 %v2216
    %2563 = vmatmul.bf16.gmra.mxu0 %v1657
    %v2564 = vpop.f32.mrf.mxu0
    %v2565 = vadd.f32 %v2552, %v2564
    %v2566 = vpop.f32.mrf.mxu0
    %2567 = vdwg.mxu0
    %2568 = vmatpush.bf16.msra.mxu0 %v2276
    %2569 = vmatpush.bf16.msra.mxu0 %v2272
    %2570 = vmatpush.bf16.msra.mxu0 %v2268
    %2571 = vmatpush.bf16.msra.mxu0 %v2264
    %2572 = vmatpush.bf16.msra.mxu0 %v2260
    %2573 = vmatpush.bf16.msra.mxu0 %v2256
    %2574 = vmatpush.bf16.msra.mxu0 %v2252
    %2575 = vmatpush.bf16.msra.mxu0 %v2248
    %2576 = vmatmul.bf16.gmra.mxu0 %v1658
    %v2577 = vpop.f32.mrf.mxu0
    %v2578 = vadd.f32 %v2565, %v2577
    %v2579 = vpop.f32.mrf.mxu0
    %2580 = vdwg.mxu0
    %2581 = vmatpush.bf16.msra.mxu0 %v2308
    %2582 = vmatpush.bf16.msra.mxu0 %v2304
    %2583 = vmatpush.bf16.msra.mxu0 %v2300
    %2584 = vmatpush.bf16.msra.mxu0 %v2296
    %2585 = vmatpush.bf16.msra.mxu0 %v2292
    %2586 = vmatpush.bf16.msra.mxu0 %v2288
    %2587 = vmatpush.bf16.msra.mxu0 %v2284
    %2588 = vmatpush.bf16.msra.mxu0 %v2280
    %2589 = vmatmul.bf16.gmra.mxu0 %v1659
    %v2590 = vpop.f32.mrf.mxu0
    %v2591 = vadd.f32 %v2578, %v2590
    %v2592 = vpop.f32.mrf.mxu0
    %2593 = vdwg.mxu0
    %2594 = vmatpush.bf16.msra.mxu0 %v2213
    %2595 = vmatpush.bf16.msra.mxu0 %v2209
    %2596 = vmatpush.bf16.msra.mxu0 %v2205
    %2597 = vmatpush.bf16.msra.mxu0 %v2201
    %2598 = vmatpush.bf16.msra.mxu0 %v2197
    %2599 = vmatpush.bf16.msra.mxu0 %v2193
    %2600 = vmatpush.bf16.msra.mxu0 %v2189
    %2601 = vmatpush.bf16.msra.mxu0 %v2185
    %2602 = vmatmul.bf16.gmra.mxu0 %v1656
    %v2603 = vpop.f32.mrf.mxu0
    %v2604 = vadd.f32 %v1793, %v2603
    %v2605 = vpop.f32.mrf.mxu0
    %2606 = vdwg.mxu0
    %2607 = vmatpush.bf16.msra.mxu0 %v2245
    %2608 = vmatpush.bf16.msra.mxu0 %v2241
    %2609 = vmatpush.bf16.msra.mxu0 %v2237
    %2610 = vmatpush.bf16.msra.mxu0 %v2233
    %2611 = vmatpush.bf16.msra.mxu0 %v2229
    %2612 = vmatpush.bf16.msra.mxu0 %v2225
    %2613 = vmatpush.bf16.msra.mxu0 %v2221
    %2614 = vmatpush.bf16.msra.mxu0 %v2217
    %2615 = vmatmul.bf16.gmra.mxu0 %v1657
    %v2616 = vpop.f32.mrf.mxu0
    %v2617 = vadd.f32 %v2604, %v2616
    %v2618 = vpop.f32.mrf.mxu0
    %2619 = vdwg.mxu0
    %2620 = vmatpush.bf16.msra.mxu0 %v2277
    %2621 = vmatpush.bf16.msra.mxu0 %v2273
    %2622 = vmatpush.bf16.msra.mxu0 %v2269
    %2623 = vmatpush.bf16.msra.mxu0 %v2265
    %2624 = vmatpush.bf16.msra.mxu0 %v2261
    %2625 = vmatpush.bf16.msra.mxu0 %v2257
    %2626 = vmatpush.bf16.msra.mxu0 %v2253
    %2627 = vmatpush.bf16.msra.mxu0 %v2249
    %2628 = vmatmul.bf16.gmra.mxu0 %v1658
    %v2629 = vpop.f32.mrf.mxu0
    %v2630 = vadd.f32 %v2617, %v2629
    %v2631 = vpop.f32.mrf.mxu0
    %2632 = vdwg.mxu0
    %2633 = vmatpush.bf16.msra.mxu0 %v2309
    %2634 = vmatpush.bf16.msra.mxu0 %v2305
    %2635 = vmatpush.bf16.msra.mxu0 %v2301
    %2636 = vmatpush.bf16.msra.mxu0 %v2297
    %2637 = vmatpush.bf16.msra.mxu0 %v2293
    %2638 = vmatpush.bf16.msra.mxu0 %v2289
    %2639 = vmatpush.bf16.msra.mxu0 %v2285
    %2640 = vmatpush.bf16.msra.mxu0 %v2281
    %2641 = vmatmul.bf16.gmra.mxu0 %v1659
    %v2642 = vpop.f32.mrf.mxu0
    %v2643 = vadd.f32 %v2630, %v2642
    %v2644 = vpop.f32.mrf.mxu0
    %2645 = vdwg.mxu0
    %v2646 = vsub.f32 0.0, %v2487
    %v2647 = vsub.f32 0.0, %v2539
    %v2648 = vsub.f32 0.0, %v2591
    %v2649 = vsub.f32 0.0, %v2643
    %v2650 = vmul.f32 %v2646, 1.442695
    %v2651 = vpow.pop %v2650
    %v2652 = vmul.f32 %v2647, 1.442695
    %v2653 = vpow.pop %v2652
    %v2654 = vmul.f32 %v2648, 1.442695
    %v2655 = vpow.pop %v2654
    %v2656 = vmul.f32 %v2649, 1.442695
    %v2657 = vpow.pop %v2656
    %v2658 = vadd.f32 %v2651, 1.0
    %v2659 = vadd.f32 %v2653, 1.0
    %v2660 = vadd.f32 %v2655, 1.0
    %v2661 = vadd.f32 %v2657, 1.0
    %v2662 = vrcp.pop %v2658
    %v2663 = vrcp.pop %v2659
    %v2664 = vrcp.pop %v2660
    %v2665 = vrcp.pop %v2661
    %v2666 = vpack.c.bf16 %v2662, %v2662
    %v2667 = vpack.c.bf16 %v2663, %v2663
    %v2668 = vpack.c.bf16 %v2664, %v2664
    %v2669 = vpack.c.bf16 %v2665, %v2665
    %v2670 = vld [vmem:[%s13] sm:$0xf]
    %v2671 = vld [vmem:[%s13 + $0x4] sm:$0xf]
    %v2672 = vld [vmem:[%s13 + $0x8] sm:$0xf]
    %v2673 = vld [vmem:[%s13 + $0xc] sm:$0xf]
    %v2674 = vld [vmem:[%s13 + $0x10] sm:$0xf]
    %v2675 = vld [vmem:[%s13 + $0x14] sm:$0xf]
    %v2676 = vld [vmem:[%s13 + $0x18] sm:$0xf]
    %v2677 = vld [vmem:[%s13 + $0x1c] sm:$0xf]
    %v2678 = vld [vmem:[%s13 + $0x20] sm:$0xf]
    %v2679 = vld [vmem:[%s13 + $0x24] sm:$0xf]
    %v2680 = vld [vmem:[%s13 + $0x28] sm:$0xf]
    %v2681 = vld [vmem:[%s13 + $0x2c] sm:$0xf]
    %v2682 = vld [vmem:[%s13 + $0x30] sm:$0xf]
    %v2683 = vld [vmem:[%s13 + $0x34] sm:$0xf]
    %v2684 = vld [vmem:[%s13 + $0x38] sm:$0xf]
    %v2685 = vld [vmem:[%s13 + $0x3c] sm:$0xf]
    %v2686 = vld [vmem:[%s13 + $0x40] sm:$0xf]
    %v2687 = vld [vmem:[%s13 + $0x44] sm:$0xf]
    %v2688 = vld [vmem:[%s13 + $0x48] sm:$0xf]
    %v2689 = vld [vmem:[%s13 + $0x4c] sm:$0xf]
    %v2690 = vld [vmem:[%s13 + $0x50] sm:$0xf]
    %v2691 = vld [vmem:[%s13 + $0x54] sm:$0xf]
    %v2692 = vld [vmem:[%s13 + $0x58] sm:$0xf]
    %v2693 = vld [vmem:[%s13 + $0x5c] sm:$0xf]
    %v2694 = vld [vmem:[%s13 + $0x60] sm:$0xf]
    %v2695 = vld [vmem:[%s13 + $0x64] sm:$0xf]
    %v2696 = vld [vmem:[%s13 + $0x68] sm:$0xf]
    %v2697 = vld [vmem:[%s13 + $0x6c] sm:$0xf]
    %v2698 = vld [vmem:[%s13 + $0x70] sm:$0xf]
    %v2699 = vld [vmem:[%s13 + $0x74] sm:$0xf]
    %v2700 = vld [vmem:[%s13 + $0x78] sm:$0xf]
    %v2701 = vld [vmem:[%s13 + $0x7c] sm:$0xf]
    %v2702 = vld [vmem:[%s13 + $0x80] sm:$0xf]
    %v2703 = vld [vmem:[%s13 + $0x84] sm:$0xf]
    %v2704 = vld [vmem:[%s13 + $0x88] sm:$0xf]
    %v2705 = vld [vmem:[%s13 + $0x8c] sm:$0xf]
    %v2706 = vld [vmem:[%s13 + $0x90] sm:$0xf]
    %v2707 = vld [vmem:[%s13 + $0x94] sm:$0xf]
    %v2708 = vld [vmem:[%s13 + $0x98] sm:$0xf]
    %v2709 = vld [vmem:[%s13 + $0x9c] sm:$0xf]
    %v2710 = vld [vmem:[%s13 + $0xa0] sm:$0xf]
    %v2711 = vld [vmem:[%s13 + $0xa4] sm:$0xf]
    %v2712 = vld [vmem:[%s13 + $0xa8] sm:$0xf]
    %v2713 = vld [vmem:[%s13 + $0xac] sm:$0xf]
    %v2714 = vld [vmem:[%s13 + $0xb0] sm:$0xf]
    %v2715 = vld [vmem:[%s13 + $0xb4] sm:$0xf]
    %v2716 = vld [vmem:[%s13 + $0xb8] sm:$0xf]
    %v2717 = vld [vmem:[%s13 + $0xbc] sm:$0xf]
    %v2718 = vld [vmem:[%s13 + $0xc0] sm:$0xf]
    %v2719 = vld [vmem:[%s13 + $0xc4] sm:$0xf]
    %v2720 = vld [vmem:[%s13 + $0xc8] sm:$0xf]
    %v2721 = vld [vmem:[%s13 + $0xcc] sm:$0xf]
    %v2722 = vld [vmem:[%s13 + $0xd0] sm:$0xf]
    %v2723 = vld [vmem:[%s13 + $0xd4] sm:$0xf]
    %v2724 = vld [vmem:[%s13 + $0xd8] sm:$0xf]
    %v2725 = vld [vmem:[%s13 + $0xdc] sm:$0xf]
    %v2726 = vld [vmem:[%s13 + $0xe0] sm:$0xf]
    %v2727 = vld [vmem:[%s13 + $0xe4] sm:$0xf]
    %v2728 = vld [vmem:[%s13 + $0xe8] sm:$0xf]
    %v2729 = vld [vmem:[%s13 + $0xec] sm:$0xf]
    %v2730 = vld [vmem:[%s13 + $0xf0] sm:$0xf]
    %v2731 = vld [vmem:[%s13 + $0xf4] sm:$0xf]
    %v2732 = vld [vmem:[%s13 + $0xf8] sm:$0xf]
    %v2733 = vld [vmem:[%s13 + $0xfc] sm:$0xf]
    %v2734 = vld [vmem:[%s14] sm:$0x1]
    %v2736 = vperm.slane %v2734, 0
    %v2802 = vunpack.c.l.b16 %v2670
    %v2803 = vunpack.c.l.b16 %v2671
    %v2804 = vunpack.c.l.b16 %v2672
    %v2805 = vunpack.c.l.b16 %v2673
    %v2806 = vunpack.c.l.b16 %v2674
    %v2807 = vunpack.c.l.b16 %v2675
    %v2808 = vunpack.c.l.b16 %v2676
    %v2809 = vunpack.c.l.b16 %v2677
    %v2810 = vunpack.c.l.b16 %v2678
    %v2811 = vunpack.c.l.b16 %v2679
    %v2812 = vunpack.c.l.b16 %v2680
    %v2813 = vunpack.c.l.b16 %v2681
    %v2814 = vunpack.c.l.b16 %v2682
    %v2815 = vunpack.c.l.b16 %v2683
    %v2816 = vunpack.c.l.b16 %v2684
    %v2817 = vunpack.c.l.b16 %v2685
    %v2818 = vunpack.c.l.b16 %v2686
    %v2819 = vunpack.c.l.b16 %v2687
    %v2820 = vunpack.c.l.b16 %v2688
    %v2821 = vunpack.c.l.b16 %v2689
    %v2822 = vunpack.c.l.b16 %v2690
    %v2823 = vunpack.c.l.b16 %v2691
    %v2824 = vunpack.c.l.b16 %v2692
    %v2825 = vunpack.c.l.b16 %v2693
    %v2826 = vunpack.c.l.b16 %v2694
    %v2827 = vunpack.c.l.b16 %v2695
    %v2828 = vunpack.c.l.b16 %v2696
    %v2829 = vunpack.c.l.b16 %v2697
    %v2830 = vunpack.c.l.b16 %v2698
    %v2831 = vunpack.c.l.b16 %v2699
    %v2832 = vunpack.c.l.b16 %v2700
    %v2833 = vunpack.c.l.b16 %v2701
    %v2834 = vunpack.c.l.b16 %v2702
    %v2835 = vunpack.c.l.b16 %v2703
    %v2836 = vunpack.c.l.b16 %v2704
    %v2837 = vunpack.c.l.b16 %v2705
    %v2838 = vunpack.c.l.b16 %v2706
    %v2839 = vunpack.c.l.b16 %v2707
    %v2840 = vunpack.c.l.b16 %v2708
    %v2841 = vunpack.c.l.b16 %v2709
    %v2842 = vunpack.c.l.b16 %v2710
    %v2843 = vunpack.c.l.b16 %v2711
    %v2844 = vunpack.c.l.b16 %v2712
    %v2845 = vunpack.c.l.b16 %v2713
    %v2846 = vunpack.c.l.b16 %v2714
    %v2847 = vunpack.c.l.b16 %v2715
    %v2848 = vunpack.c.l.b16 %v2716
    %v2849 = vunpack.c.l.b16 %v2717
    %v2850 = vunpack.c.l.b16 %v2718
    %v2851 = vunpack.c.l.b16 %v2719
    %v2852 = vunpack.c.l.b16 %v2720
    %v2853 = vunpack.c.l.b16 %v2721
    %v2854 = vunpack.c.l.b16 %v2722
    %v2855 = vunpack.c.l.b16 %v2723
    %v2856 = vunpack.c.l.b16 %v2724
    %v2857 = vunpack.c.l.b16 %v2725
    %v2858 = vunpack.c.l.b16 %v2726
    %v2859 = vunpack.c.l.b16 %v2727
    %v2860 = vunpack.c.l.b16 %v2728
    %v2861 = vunpack.c.l.b16 %v2729
    %v2862 = vunpack.c.l.b16 %v2730
    %v2863 = vunpack.c.l.b16 %v2731
    %v2864 = vunpack.c.l.b16 %v2732
    %v2865 = vunpack.c.l.b16 %v2733
    %v2866 = vpack.c.b16 %v2803, %v2802
    %v2867 = vpack.c.b16 %v2805, %v2804
    %v2868 = vpack.c.b16 %v2807, %v2806
    %v2869 = vpack.c.b16 %v2809, %v2808
    %v2870 = vpack.c.b16 %v2811, %v2810
    %v2871 = vpack.c.b16 %v2813, %v2812
    %v2872 = vpack.c.b16 %v2815, %v2814
    %v2873 = vpack.c.b16 %v2817, %v2816
    %v2874 = vpack.c.b16 %v2819, %v2818
    %v2875 = vpack.c.b16 %v2821, %v2820
    %v2876 = vpack.c.b16 %v2823, %v2822
    %v2877 = vpack.c.b16 %v2825, %v2824
    %v2878 = vpack.c.b16 %v2827, %v2826
    %v2879 = vpack.c.b16 %v2829, %v2828
    %v2880 = vpack.c.b16 %v2831, %v2830
    %v2881 = vpack.c.b16 %v2833, %v2832
    %v2882 = vpack.c.b16 %v2835, %v2834
    %v2883 = vpack.c.b16 %v2837, %v2836
    %v2884 = vpack.c.b16 %v2839, %v2838
    %v2885 = vpack.c.b16 %v2841, %v2840
    %v2886 = vpack.c.b16 %v2843, %v2842
    %v2887 = vpack.c.b16 %v2845, %v2844
    %v2888 = vpack.c.b16 %v2847, %v2846
    %v2889 = vpack.c.b16 %v2849, %v2848
    %v2890 = vpack.c.b16 %v2851, %v2850
    %v2891 = vpack.c.b16 %v2853, %v2852
    %v2892 = vpack.c.b16 %v2855, %v2854
    %v2893 = vpack.c.b16 %v2857, %v2856
    %v2894 = vpack.c.b16 %v2859, %v2858
    %v2895 = vpack.c.b16 %v2861, %v2860
    %v2896 = vpack.c.b16 %v2863, %v2862
    %v2897 = vpack.c.b16 %v2865, %v2864
    %2930 = vmatpush.bf16.msra.mxu0 %v2873
    %2931 = vmatpush.bf16.msra.mxu0 %v2872
    %2932 = vmatpush.bf16.msra.mxu0 %v2871
    %2933 = vmatpush.bf16.msra.mxu0 %v2870
    %2934 = vmatpush.bf16.msra.mxu0 %v2869
    %2935 = vmatpush.bf16.msra.mxu0 %v2868
    %2936 = vmatpush.bf16.msra.mxu0 %v2867
    %2937 = vmatpush.bf16.msra.mxu0 %v2866
    %2938 = vmatmul.bf16.gmra.mxu0 %v2666
    %v2939 = vpop.f32.mrf.mxu0
    %v2940 = vadd.f32 %v2736, %v2939
    %v2941 = vpop.f32.mrf.mxu0
    %2942 = vdwg.mxu0
    %2943 = vmatpush.bf16.msra.mxu0 %v2881
    %2944 = vmatpush.bf16.msra.mxu0 %v2880
    %2945 = vmatpush.bf16.msra.mxu0 %v2879
    %2946 = vmatpush.bf16.msra.mxu0 %v2878
    %2947 = vmatpush.bf16.msra.mxu0 %v2877
    %2948 = vmatpush.bf16.msra.mxu0 %v2876
    %2949 = vmatpush.bf16.msra.mxu0 %v2875
    %2950 = vmatpush.bf16.msra.mxu0 %v2874
    %2951 = vmatmul.bf16.gmra.mxu0 %v2667
    %v2952 = vpop.f32.mrf.mxu0
    %v2953 = vadd.f32 %v2940, %v2952
    %v2954 = vpop.f32.mrf.mxu0
    %2955 = vdwg.mxu0
    %2956 = vmatpush.bf16.msra.mxu0 %v2889
    %2957 = vmatpush.bf16.msra.mxu0 %v2888
    %2958 = vmatpush.bf16.msra.mxu0 %v2887
    %2959 = vmatpush.bf16.msra.mxu0 %v2886
    %2960 = vmatpush.bf16.msra.mxu0 %v2885
    %2961 = vmatpush.bf16.msra.mxu0 %v2884
    %2962 = vmatpush.bf16.msra.mxu0 %v2883
    %2963 = vmatpush.bf16.msra.mxu0 %v2882
    %2964 = vmatmul.bf16.gmra.mxu0 %v2668
    %v2965 = vpop.f32.mrf.mxu0
    %v2966 = vadd.f32 %v2953, %v2965
    %v2967 = vpop.f32.mrf.mxu0
    %2968 = vdwg.mxu0
    %2969 = vmatpush.bf16.msra.mxu0 %v2897
    %2970 = vmatpush.bf16.msra.mxu0 %v2896
    %2971 = vmatpush.bf16.msra.mxu0 %v2895
    %2972 = vmatpush.bf16.msra.mxu0 %v2894
    %2973 = vmatpush.bf16.msra.mxu0 %v2893
    %2974 = vmatpush.bf16.msra.mxu0 %v2892
    %2975 = vmatpush.bf16.msra.mxu0 %v2891
    %2976 = vmatpush.bf16.msra.mxu0 %v2890
    %2977 = vmatmul.bf16.gmra.mxu0 %v2669
    %v2978 = vpop.f32.mrf.mxu0
    %v2979 = vadd.f32 %v2966, %v2978
    %v2980 = vpop.f32.mrf.mxu0
    %2981 = vdwg.mxu0
    %v2982 = vpack.c.bf16 %v1640, %v1628
    %v2983 = vpack.c.bf16 %v1641, %v1629
    %v2984 = vpack.c.bf16 %v1642, %v1630
    %v2985 = vpack.c.bf16 %v1643, %v1631
    %v2986 = vpack.c.bf16 %v1648, %v1644
    %v2987 = vpack.c.bf16 %v1649, %v1645
    %v2988 = vpack.c.bf16 %v1650, %v1646
    %v2989 = vpack.c.bf16 %v1651, %v1647
    %v2990 = vpack.c.bf16 %v1652, %v1652
    %v2991 = vpack.c.bf16 %v1653, %v1653
    %v2992 = vpack.c.bf16 %v1654, %v1654
    %v2993 = vpack.c.bf16 %v1655, %v1655
    %v2994 = vld [vmem:[#allocation4] sm:$0xff]
    %v2995 = vld [vmem:[#allocation4 + $0x8] sm:$0xff]
    %v2996 = vld [vmem:[#allocation4 + $0x10] sm:$0xff]
    %v2997 = vld [vmem:[#allocation4 + $0x18] sm:$0xff]
    %v2998 = vld [vmem:[#allocation4 + $0x20] sm:$0xff]
    %v2999 = vld [vmem:[#allocation4 + $0x28] sm:$0xff]
    %v3000 = vld [vmem:[#allocation4 + $0x30] sm:$0xff]
    %v3001 = vld [vmem:[#allocation4 + $0x38] sm:$0xff]
    %v3002 = vld [vmem:[#allocation4 + $0x40] sm:$0xff]
    %v3003 = vld [vmem:[#allocation4 + $0x48] sm:$0xff]
    %v3004 = vld [vmem:[#allocation4 + $0x50] sm:$0xff]
    %v3005 = vld [vmem:[#allocation4 + $0x58] sm:$0xff]
    %v3006 = vld [vmem:[#allocation4 + $0x60] sm:$0xff]
    %v3007 = vld [vmem:[#allocation4 + $0x68] sm:$0xff]
    %v3008 = vld [vmem:[#allocation4 + $0x70] sm:$0xff]
    %v3009 = vld [vmem:[#allocation4 + $0x78] sm:$0xff]
    %v3010 = vld [vmem:[#allocation4 + $0x80] sm:$0xff]
    %v3011 = vld [vmem:[#allocation4 + $0x88] sm:$0xff]
    %v3012 = vld [vmem:[#allocation4 + $0x90] sm:$0xff]
    %v3013 = vld [vmem:[#allocation4 + $0x98] sm:$0xff]
    %v3014 = vld [vmem:[#allocation4 + $0xa0] sm:$0xff]
    %v3015 = vld [vmem:[#allocation4 + $0xa8] sm:$0xff]
    %v3016 = vld [vmem:[#allocation4 + $0xb0] sm:$0xff]
    %v3017 = vld [vmem:[#allocation4 + $0xb8] sm:$0xff]
    %v3018 = vld [vmem:[#allocation4 + $0xc0] sm:$0xff]
    %v3019 = vld [vmem:[#allocation4 + $0xc8] sm:$0xff]
    %v3020 = vld [vmem:[#allocation4 + $0xd0] sm:$0xff]
    %v3021 = vld [vmem:[#allocation4 + $0xd8] sm:$0xff]
    %v3022 = vld [vmem:[#allocation4 + $0xe0] sm:$0xff]
    %v3023 = vld [vmem:[#allocation4 + $0xe8] sm:$0xff]
    %v3024 = vld [vmem:[#allocation4 + $0xf0] sm:$0xff]
    %v3025 = vld [vmem:[#allocation4 + $0xf8] sm:$0xff]
    %v3026 = vld [vmem:[#allocation4 + $0x100] sm:$0xff]
    %v3027 = vld [vmem:[#allocation4 + $0x108] sm:$0xff]
    %v3028 = vld [vmem:[#allocation4 + $0x110] sm:$0xff]
    %v3029 = vld [vmem:[#allocation4 + $0x118] sm:$0xff]
    %v3030 = vld [vmem:[#allocation4 + $0x120] sm:$0xff]
    %v3031 = vld [vmem:[#allocation4 + $0x128] sm:$0xff]
    %v3032 = vld [vmem:[#allocation4 + $0x130] sm:$0xff]
    %v3033 = vld [vmem:[#allocation4 + $0x138] sm:$0xff]
    %v3034 = vld [vmem:[#allocation4 + $0x140] sm:$0xff]
    %v3035 = vld [vmem:[#allocation4 + $0x148] sm:$0xff]
    %v3036 = vld [vmem:[#allocation4 + $0x150] sm:$0xff]
    %v3037 = vld [vmem:[#allocation4 + $0x158] sm:$0xff]
    %v3038 = vld [vmem:[#allocation4 + $0x160] sm:$0xff]
    %v3039 = vld [vmem:[#allocation4 + $0x168] sm:$0xff]
    %v3040 = vld [vmem:[#allocation4 + $0x170] sm:$0xff]
    %v3041 = vld [vmem:[#allocation4 + $0x178] sm:$0xff]
    %v3042 = vld [vmem:[#allocation4 + $0x180] sm:$0xff]
    %v3043 = vld [vmem:[#allocation4 + $0x188] sm:$0xff]
    %v3044 = vld [vmem:[#allocation4 + $0x190] sm:$0xff]
    %v3045 = vld [vmem:[#allocation4 + $0x198] sm:$0xff]
    %v3046 = vld [vmem:[#allocation4 + $0x1a0] sm:$0xff]
    %v3047 = vld [vmem:[#allocation4 + $0x1a8] sm:$0xff]
    %v3048 = vld [vmem:[#allocation4 + $0x1b0] sm:$0xff]
    %v3049 = vld [vmem:[#allocation4 + $0x1b8] sm:$0xff]
    %v3050 = vld [vmem:[#allocation4 + $0x1c0] sm:$0xff]
    %v3051 = vld [vmem:[#allocation4 + $0x1c8] sm:$0xff]
    %v3052 = vld [vmem:[#allocation4 + $0x1d0] sm:$0xff]
    %v3053 = vld [vmem:[#allocation4 + $0x1d8] sm:$0xff]
    %v3054 = vld [vmem:[#allocation4 + $0x1e0] sm:$0xff]
    %v3055 = vld [vmem:[#allocation4 + $0x1e8] sm:$0xff]
    %v3056 = vld [vmem:[#allocation4 + $0x1f0] sm:$0xff]
    %v3057 = vld [vmem:[#allocation4 + $0x1f8] sm:$0xff]
    %v3058 = vld [vmem:[#allocation4 + $0x200] sm:$0xff]
    %v3059 = vld [vmem:[#allocation4 + $0x208] sm:$0xff]
    %v3060 = vld [vmem:[#allocation4 + $0x210] sm:$0xff]
    %v3061 = vld [vmem:[#allocation4 + $0x218] sm:$0xff]
    %v3062 = vld [vmem:[#allocation4 + $0x220] sm:$0xff]
    %v3063 = vld [vmem:[#allocation4 + $0x228] sm:$0xff]
    %v3064 = vld [vmem:[#allocation4 + $0x230] sm:$0xff]
    %v3065 = vld [vmem:[#allocation4 + $0x238] sm:$0xff]
    %v3066 = vld [vmem:[#allocation4 + $0x240] sm:$0xff]
    %v3067 = vld [vmem:[#allocation4 + $0x248] sm:$0xff]
    %v3068 = vld [vmem:[#allocation4 + $0x250] sm:$0xff]
    %v3069 = vld [vmem:[#allocation4 + $0x258] sm:$0xff]
    %v3070 = vld [vmem:[#allocation4 + $0x260] sm:$0xff]
    %v3071 = vld [vmem:[#allocation4 + $0x268] sm:$0xff]
    %v3072 = vld [vmem:[#allocation4 + $0x270] sm:$0xff]
    %v3073 = vld [vmem:[#allocation4 + $0x278] sm:$0xff]
    %v3074 = vld [vmem:[#allocation4 + $0x280] sm:$0xff]
    %v3075 = vld [vmem:[#allocation4 + $0x288] sm:$0xff]
    %v3076 = vld [vmem:[#allocation4 + $0x290] sm:$0xff]
    %v3077 = vld [vmem:[#allocation4 + $0x298] sm:$0xff]
    %v3078 = vld [vmem:[#allocation4 + $0x2a0] sm:$0xff]
    %v3079 = vld [vmem:[#allocation4 + $0x2a8] sm:$0xff]
    %v3080 = vld [vmem:[#allocation4 + $0x2b0] sm:$0xff]
    %v3081 = vld [vmem:[#allocation4 + $0x2b8] sm:$0xff]
    %v3082 = vld [vmem:[#allocation4 + $0x2c0] sm:$0xff]
    %v3083 = vld [vmem:[#allocation4 + $0x2c8] sm:$0xff]
    %v3084 = vld [vmem:[#allocation4 + $0x2d0] sm:$0xff]
    %v3085 = vld [vmem:[#allocation4 + $0x2d8] sm:$0xff]
    %v3086 = vld [vmem:[#allocation4 + $0x2e0] sm:$0xff]
    %v3087 = vld [vmem:[#allocation4 + $0x2e8] sm:$0xff]
    %v3088 = vld [vmem:[#allocation4 + $0x2f0] sm:$0xff]
    %v3089 = vld [vmem:[#allocation4 + $0x2f8] sm:$0xff]
    %v3090 = vld [vmem:[#allocation4 + $0x300] sm:$0xff]
    %v3091 = vld [vmem:[#allocation4 + $0x308] sm:$0xff]
    %v3092 = vld [vmem:[#allocation4 + $0x310] sm:$0xff]
    %v3093 = vld [vmem:[#allocation4 + $0x318] sm:$0xff]
    %v3094 = vld [vmem:[#allocation4 + $0x320] sm:$0xff]
    %v3095 = vld [vmem:[#allocation4 + $0x328] sm:$0xff]
    %v3096 = vld [vmem:[#allocation4 + $0x330] sm:$0xff]
    %v3097 = vld [vmem:[#allocation4 + $0x338] sm:$0xff]
    %v3098 = vld [vmem:[#allocation4 + $0x340] sm:$0xff]
    %v3099 = vld [vmem:[#allocation4 + $0x348] sm:$0xff]
    %v3100 = vld [vmem:[#allocation4 + $0x350] sm:$0xff]
    %v3101 = vld [vmem:[#allocation4 + $0x358] sm:$0xff]
    %v3102 = vld [vmem:[#allocation4 + $0x360] sm:$0xff]
    %v3103 = vld [vmem:[#allocation4 + $0x368] sm:$0xff]
    %v3104 = vld [vmem:[#allocation4 + $0x370] sm:$0xff]
    %v3105 = vld [vmem:[#allocation4 + $0x378] sm:$0xff]
    %v3106 = vld [vmem:[#allocation4 + $0x380] sm:$0xff]
    %v3107 = vld [vmem:[#allocation4 + $0x388] sm:$0xff]
    %v3108 = vld [vmem:[#allocation4 + $0x390] sm:$0xff]
    %v3109 = vld [vmem:[#allocation4 + $0x398] sm:$0xff]
    %v3110 = vld [vmem:[#allocation4 + $0x3a0] sm:$0xff]
    %v3111 = vld [vmem:[#allocation4 + $0x3a8] sm:$0xff]
    %v3112 = vld [vmem:[#allocation4 + $0x3b0] sm:$0xff]
    %v3113 = vld [vmem:[#allocation4 + $0x3b8] sm:$0xff]
    %v3114 = vld [vmem:[#allocation4 + $0x3c0] sm:$0xff]
    %v3115 = vld [vmem:[#allocation4 + $0x3c8] sm:$0xff]
    %v3116 = vld [vmem:[#allocation4 + $0x3d0] sm:$0xff]
    %v3117 = vld [vmem:[#allocation4 + $0x3d8] sm:$0xff]
    %v3118 = vld [vmem:[#allocation4 + $0x3e0] sm:$0xff]
    %v3119 = vld [vmem:[#allocation4 + $0x3e8] sm:$0xff]
    %v3120 = vld [vmem:[#allocation4 + $0x3f0] sm:$0xff]
    %v3121 = vld [vmem:[#allocation4 + $0x3f8] sm:$0xff]
    %v3250 = vunpack.c.l.b16 %v2994
    %v3251 = vunpack.c.h.b16 %v2994
    %v3252 = vunpack.c.l.b16 %v2995
    %v3253 = vunpack.c.h.b16 %v2995
    %v3254 = vunpack.c.l.b16 %v2996
    %v3255 = vunpack.c.h.b16 %v2996
    %v3256 = vunpack.c.l.b16 %v2997
    %v3257 = vunpack.c.h.b16 %v2997
    %v3258 = vunpack.c.l.b16 %v2998
    %v3259 = vunpack.c.h.b16 %v2998
    %v3260 = vunpack.c.l.b16 %v2999
    %v3261 = vunpack.c.h.b16 %v2999
    %v3262 = vunpack.c.l.b16 %v3000
    %v3263 = vunpack.c.h.b16 %v3000
    %v3264 = vunpack.c.l.b16 %v3001
    %v3265 = vunpack.c.h.b16 %v3001
    %v3266 = vunpack.c.l.b16 %v3002
    %v3267 = vunpack.c.h.b16 %v3002
    %v3268 = vunpack.c.l.b16 %v3003
    %v3269 = vunpack.c.h.b16 %v3003
    %v3270 = vunpack.c.l.b16 %v3004
    %v3271 = vunpack.c.h.b16 %v3004
    %v3272 = vunpack.c.l.b16 %v3005
    %v3273 = vunpack.c.h.b16 %v3005
    %v3274 = vunpack.c.l.b16 %v3006
    %v3275 = vunpack.c.h.b16 %v3006
    %v3276 = vunpack.c.l.b16 %v3007
    %v3277 = vunpack.c.h.b16 %v3007
    %v3278 = vunpack.c.l.b16 %v3008
    %v3279 = vunpack.c.h.b16 %v3008
    %v3280 = vunpack.c.l.b16 %v3009
    %v3281 = vunpack.c.h.b16 %v3009
    %v3282 = vunpack.c.l.b16 %v3010
    %v3283 = vunpack.c.h.b16 %v3010
    %v3284 = vunpack.c.l.b16 %v3011
    %v3285 = vunpack.c.h.b16 %v3011
    %v3286 = vunpack.c.l.b16 %v3012
    %v3287 = vunpack.c.h.b16 %v3012
    %v3288 = vunpack.c.l.b16 %v3013
    %v3289 = vunpack.c.h.b16 %v3013
    %v3290 = vunpack.c.l.b16 %v3014
    %v3291 = vunpack.c.h.b16 %v3014
    %v3292 = vunpack.c.l.b16 %v3015
    %v3293 = vunpack.c.h.b16 %v3015
    %v3294 = vunpack.c.l.b16 %v3016
    %v3295 = vunpack.c.h.b16 %v3016
    %v3296 = vunpack.c.l.b16 %v3017
    %v3297 = vunpack.c.h.b16 %v3017
    %v3298 = vunpack.c.l.b16 %v3018
    %v3299 = vunpack.c.h.b16 %v3018
    %v3300 = vunpack.c.l.b16 %v3019
    %v3301 = vunpack.c.h.b16 %v3019
    %v3302 = vunpack.c.l.b16 %v3020
    %v3303 = vunpack.c.h.b16 %v3020
    %v3304 = vunpack.c.l.b16 %v3021
    %v3305 = vunpack.c.h.b16 %v3021
    %v3306 = vunpack.c.l.b16 %v3022
    %v3307 = vunpack.c.h.b16 %v3022
    %v3308 = vunpack.c.l.b16 %v3023
    %v3309 = vunpack.c.h.b16 %v3023
    %v3310 = vunpack.c.l.b16 %v3024
    %v3311 = vunpack.c.h.b16 %v3024
    %v3312 = vunpack.c.l.b16 %v3025
    %v3313 = vunpack.c.h.b16 %v3025
    %v3314 = vunpack.c.l.b16 %v3026
    %v3315 = vunpack.c.h.b16 %v3026
    %v3316 = vunpack.c.l.b16 %v3027
    %v3317 = vunpack.c.h.b16 %v3027
    %v3318 = vunpack.c.l.b16 %v3028
    %v3319 = vunpack.c.h.b16 %v3028
    %v3320 = vunpack.c.l.b16 %v3029
    %v3321 = vunpack.c.h.b16 %v3029
    %v3322 = vunpack.c.l.b16 %v3030
    %v3323 = vunpack.c.h.b16 %v3030
    %v3324 = vunpack.c.l.b16 %v3031
    %v3325 = vunpack.c.h.b16 %v3031
    %v3326 = vunpack.c.l.b16 %v3032
    %v3327 = vunpack.c.h.b16 %v3032
    %v3328 = vunpack.c.l.b16 %v3033
    %v3329 = vunpack.c.h.b16 %v3033
    %v3330 = vunpack.c.l.b16 %v3034
    %v3331 = vunpack.c.h.b16 %v3034
    %v3332 = vunpack.c.l.b16 %v3035
    %v3333 = vunpack.c.h.b16 %v3035
    %v3334 = vunpack.c.l.b16 %v3036
    %v3335 = vunpack.c.h.b16 %v3036
    %v3336 = vunpack.c.l.b16 %v3037
    %v3337 = vunpack.c.h.b16 %v3037
    %v3338 = vunpack.c.l.b16 %v3038
    %v3339 = vunpack.c.h.b16 %v3038
    %v3340 = vunpack.c.l.b16 %v3039
    %v3341 = vunpack.c.h.b16 %v3039
    %v3342 = vunpack.c.l.b16 %v3040
    %v3343 = vunpack.c.h.b16 %v3040
    %v3344 = vunpack.c.l.b16 %v3041
    %v3345 = vunpack.c.h.b16 %v3041
    %v3346 = vunpack.c.l.b16 %v3042
    %v3347 = vunpack.c.h.b16 %v3042
    %v3348 = vunpack.c.l.b16 %v3043
    %v3349 = vunpack.c.h.b16 %v3043
    %v3350 = vunpack.c.l.b16 %v3044
    %v3351 = vunpack.c.h.b16 %v3044
    %v3352 = vunpack.c.l.b16 %v3045
    %v3353 = vunpack.c.h.b16 %v3045
    %v3354 = vunpack.c.l.b16 %v3046
    %v3355 = vunpack.c.h.b16 %v3046
    %v3356 = vunpack.c.l.b16 %v3047
    %v3357 = vunpack.c.h.b16 %v3047
    %v3358 = vunpack.c.l.b16 %v3048
    %v3359 = vunpack.c.h.b16 %v3048
    %v3360 = vunpack.c.l.b16 %v3049
    %v3361 = vunpack.c.h.b16 %v3049
    %v3362 = vunpack.c.l.b16 %v3050
    %v3363 = vunpack.c.h.b16 %v3050
    %v3364 = vunpack.c.l.b16 %v3051
    %v3365 = vunpack.c.h.b16 %v3051
    %v3366 = vunpack.c.l.b16 %v3052
    %v3367 = vunpack.c.h.b16 %v3052
    %v3368 = vunpack.c.l.b16 %v3053
    %v3369 = vunpack.c.h.b16 %v3053
    %v3370 = vunpack.c.l.b16 %v3054
    %v3371 = vunpack.c.h.b16 %v3054
    %v3372 = vunpack.c.l.b16 %v3055
    %v3373 = vunpack.c.h.b16 %v3055
    %v3374 = vunpack.c.l.b16 %v3056
    %v3375 = vunpack.c.h.b16 %v3056
    %v3376 = vunpack.c.l.b16 %v3057
    %v3377 = vunpack.c.h.b16 %v3057
    %v3378 = vunpack.c.l.b16 %v3058
    %v3379 = vunpack.c.h.b16 %v3058
    %v3380 = vunpack.c.l.b16 %v3059
    %v3381 = vunpack.c.h.b16 %v3059
    %v3382 = vunpack.c.l.b16 %v3060
    %v3383 = vunpack.c.h.b16 %v3060
    %v3384 = vunpack.c.l.b16 %v3061
    %v3385 = vunpack.c.h.b16 %v3061
    %v3386 = vunpack.c.l.b16 %v3062
    %v3387 = vunpack.c.h.b16 %v3062
    %v3388 = vunpack.c.l.b16 %v3063
    %v3389 = vunpack.c.h.b16 %v3063
    %v3390 = vunpack.c.l.b16 %v3064
    %v3391 = vunpack.c.h.b16 %v3064
    %v3392 = vunpack.c.l.b16 %v3065
    %v3393 = vunpack.c.h.b16 %v3065
    %v3394 = vunpack.c.l.b16 %v3066
    %v3395 = vunpack.c.h.b16 %v3066
    %v3396 = vunpack.c.l.b16 %v3067
    %v3397 = vunpack.c.h.b16 %v3067
    %v3398 = vunpack.c.l.b16 %v3068
    %v3399 = vunpack.c.h.b16 %v3068
    %v3400 = vunpack.c.l.b16 %v3069
    %v3401 = vunpack.c.h.b16 %v3069
    %v3402 = vunpack.c.l.b16 %v3070
    %v3403 = vunpack.c.h.b16 %v3070
    %v3404 = vunpack.c.l.b16 %v3071
    %v3405 = vunpack.c.h.b16 %v3071
    %v3406 = vunpack.c.l.b16 %v3072
    %v3407 = vunpack.c.h.b16 %v3072
    %v3408 = vunpack.c.l.b16 %v3073
    %v3409 = vunpack.c.h.b16 %v3073
    %v3410 = vunpack.c.l.b16 %v3074
    %v3411 = vunpack.c.h.b16 %v3074
    %v3412 = vunpack.c.l.b16 %v3075
    %v3413 = vunpack.c.h.b16 %v3075
    %v3414 = vunpack.c.l.b16 %v3076
    %v3415 = vunpack.c.h.b16 %v3076
    %v3416 = vunpack.c.l.b16 %v3077
    %v3417 = vunpack.c.h.b16 %v3077
    %v3418 = vunpack.c.l.b16 %v3078
    %v3419 = vunpack.c.h.b16 %v3078
    %v3420 = vunpack.c.l.b16 %v3079
    %v3421 = vunpack.c.h.b16 %v3079
    %v3422 = vunpack.c.l.b16 %v3080
    %v3423 = vunpack.c.h.b16 %v3080
    %v3424 = vunpack.c.l.b16 %v3081
    %v3425 = vunpack.c.h.b16 %v3081
    %v3426 = vunpack.c.l.b16 %v3082
    %v3427 = vunpack.c.h.b16 %v3082
    %v3428 = vunpack.c.l.b16 %v3083
    %v3429 = vunpack.c.h.b16 %v3083
    %v3430 = vunpack.c.l.b16 %v3084
    %v3431 = vunpack.c.h.b16 %v3084
    %v3432 = vunpack.c.l.b16 %v3085
    %v3433 = vunpack.c.h.b16 %v3085
    %v3434 = vunpack.c.l.b16 %v3086
    %v3435 = vunpack.c.h.b16 %v3086
    %v3436 = vunpack.c.l.b16 %v3087
    %v3437 = vunpack.c.h.b16 %v3087
    %v3438 = vunpack.c.l.b16 %v3088
    %v3439 = vunpack.c.h.b16 %v3088
    %v3440 = vunpack.c.l.b16 %v3089
    %v3441 = vunpack.c.h.b16 %v3089
    %v3442 = vunpack.c.l.b16 %v3090
    %v3443 = vunpack.c.h.b16 %v3090
    %v3444 = vunpack.c.l.b16 %v3091
    %v3445 = vunpack.c.h.b16 %v3091
    %v3446 = vunpack.c.l.b16 %v3092
    %v3447 = vunpack.c.h.b16 %v3092
    %v3448 = vunpack.c.l.b16 %v3093
    %v3449 = vunpack.c.h.b16 %v3093
    %v3450 = vunpack.c.l.b16 %v3094
    %v3451 = vunpack.c.h.b16 %v3094
    %v3452 = vunpack.c.l.b16 %v3095
    %v3453 = vunpack.c.h.b16 %v3095
    %v3454 = vunpack.c.l.b16 %v3096
    %v3455 = vunpack.c.h.b16 %v3096
    %v3456 = vunpack.c.l.b16 %v3097
    %v3457 = vunpack.c.h.b16 %v3097
    %v3458 = vunpack.c.l.b16 %v3098
    %v3459 = vunpack.c.h.b16 %v3098
    %v3460 = vunpack.c.l.b16 %v3099
    %v3461 = vunpack.c.h.b16 %v3099
    %v3462 = vunpack.c.l.b16 %v3100
    %v3463 = vunpack.c.h.b16 %v3100
    %v3464 = vunpack.c.l.b16 %v3101
    %v3465 = vunpack.c.h.b16 %v3101
    %v3466 = vunpack.c.l.b16 %v3102
    %v3467 = vunpack.c.h.b16 %v3102
    %v3468 = vunpack.c.l.b16 %v3103
    %v3469 = vunpack.c.h.b16 %v3103
    %v3470 = vunpack.c.l.b16 %v3104
    %v3471 = vunpack.c.h.b16 %v3104
    %v3472 = vunpack.c.l.b16 %v3105
    %v3473 = vunpack.c.h.b16 %v3105
    %v3474 = vunpack.c.l.b16 %v3106
    %v3475 = vunpack.c.h.b16 %v3106
    %v3476 = vunpack.c.l.b16 %v3107
    %v3477 = vunpack.c.h.b16 %v3107
    %v3478 = vunpack.c.l.b16 %v3108
    %v3479 = vunpack.c.h.b16 %v3108
    %v3480 = vunpack.c.l.b16 %v3109
    %v3481 = vunpack.c.h.b16 %v3109
    %v3482 = vunpack.c.l.b16 %v3110
    %v3483 = vunpack.c.h.b16 %v3110
    %v3484 = vunpack.c.l.b16 %v3111
    %v3485 = vunpack.c.h.b16 %v3111
    %v3486 = vunpack.c.l.b16 %v3112
    %v3487 = vunpack.c.h.b16 %v3112
    %v3488 = vunpack.c.l.b16 %v3113
    %v3489 = vunpack.c.h.b16 %v3113
    %v3490 = vunpack.c.l.b16 %v3114
    %v3491 = vunpack.c.h.b16 %v3114
    %v3492 = vunpack.c.l.b16 %v3115
    %v3493 = vunpack.c.h.b16 %v3115
    %v3494 = vunpack.c.l.b16 %v3116
    %v3495 = vunpack.c.h.b16 %v3116
    %v3496 = vunpack.c.l.b16 %v3117
    %v3497 = vunpack.c.h.b16 %v3117
    %v3498 = vunpack.c.l.b16 %v3118
    %v3499 = vunpack.c.h.b16 %v3118
    %v3500 = vunpack.c.l.b16 %v3119
    %v3501 = vunpack.c.h.b16 %v3119
    %v3502 = vunpack.c.l.b16 %v3120
    %v3503 = vunpack.c.h.b16 %v3120
    %v3504 = vunpack.c.l.b16 %v3121
    %v3505 = vunpack.c.h.b16 %v3121
    %v3506 = vpack.c.b16 %v3254, %v3250
    %v3507 = vpack.c.b16 %v3255, %v3251
    %v3508 = vpack.c.b16 %v3256, %v3252
    %v3509 = vpack.c.b16 %v3257, %v3253
    %v3510 = vpack.c.b16 %v3262, %v3258
    %v3511 = vpack.c.b16 %v3263, %v3259
    %v3512 = vpack.c.b16 %v3264, %v3260
    %v3513 = vpack.c.b16 %v3265, %v3261
    %v3514 = vpack.c.b16 %v3270, %v3266
    %v3515 = vpack.c.b16 %v3271, %v3267
    %v3516 = vpack.c.b16 %v3272, %v3268
    %v3517 = vpack.c.b16 %v3273, %v3269
    %v3518 = vpack.c.b16 %v3278, %v3274
    %v3519 = vpack.c.b16 %v3279, %v3275
    %v3520 = vpack.c.b16 %v3280, %v3276
    %v3521 = vpack.c.b16 %v3281, %v3277
    %v3522 = vpack.c.b16 %v3286, %v3282
    %v3523 = vpack.c.b16 %v3287, %v3283
    %v3524 = vpack.c.b16 %v3288, %v3284
    %v3525 = vpack.c.b16 %v3289, %v3285
    %v3526 = vpack.c.b16 %v3294, %v3290
    %v3527 = vpack.c.b16 %v3295, %v3291
    %v3528 = vpack.c.b16 %v3296, %v3292
    %v3529 = vpack.c.b16 %v3297, %v3293
    %v3530 = vpack.c.b16 %v3302, %v3298
    %v3531 = vpack.c.b16 %v3303, %v3299
    %v3532 = vpack.c.b16 %v3304, %v3300
    %v3533 = vpack.c.b16 %v3305, %v3301
    %v3534 = vpack.c.b16 %v3310, %v3306
    %v3535 = vpack.c.b16 %v3311, %v3307
    %v3536 = vpack.c.b16 %v3312, %v3308
    %v3537 = vpack.c.b16 %v3313, %v3309
    %v3538 = vpack.c.b16 %v3318, %v3314
    %v3539 = vpack.c.b16 %v3319, %v3315
    %v3540 = vpack.c.b16 %v3320, %v3316
    %v3541 = vpack.c.b16 %v3321, %v3317
    %v3542 = vpack.c.b16 %v3326, %v3322
    %v3543 = vpack.c.b16 %v3327, %v3323
    %v3544 = vpack.c.b16 %v3328, %v3324
    %v3545 = vpack.c.b16 %v3329, %v3325
    %v3546 = vpack.c.b16 %v3334, %v3330
    %v3547 = vpack.c.b16 %v3335, %v3331
    %v3548 = vpack.c.b16 %v3336, %v3332
    %v3549 = vpack.c.b16 %v3337, %v3333
    %v3550 = vpack.c.b16 %v3342, %v3338
    %v3551 = vpack.c.b16 %v3343, %v3339
    %v3552 = vpack.c.b16 %v3344, %v3340
    %v3553 = vpack.c.b16 %v3345, %v3341
    %v3554 = vpack.c.b16 %v3350, %v3346
    %v3555 = vpack.c.b16 %v3351, %v3347
    %v3556 = vpack.c.b16 %v3352, %v3348
    %v3557 = vpack.c.b16 %v3353, %v3349
    %v3558 = vpack.c.b16 %v3358, %v3354
    %v3559 = vpack.c.b16 %v3359, %v3355
    %v3560 = vpack.c.b16 %v3360, %v3356
    %v3561 = vpack.c.b16 %v3361, %v3357
    %v3562 = vpack.c.b16 %v3366, %v3362
    %v3563 = vpack.c.b16 %v3367, %v3363
    %v3564 = vpack.c.b16 %v3368, %v3364
    %v3565 = vpack.c.b16 %v3369, %v3365
    %v3566 = vpack.c.b16 %v3374, %v3370
    %v3567 = vpack.c.b16 %v3375, %v3371
    %v3568 = vpack.c.b16 %v3376, %v3372
    %v3569 = vpack.c.b16 %v3377, %v3373
    %v3570 = vpack.c.b16 %v3382, %v3378
    %v3571 = vpack.c.b16 %v3383, %v3379
    %v3572 = vpack.c.b16 %v3384, %v3380
    %v3573 = vpack.c.b16 %v3385, %v3381
    %v3574 = vpack.c.b16 %v3390, %v3386
    %v3575 = vpack.c.b16 %v3391, %v3387
    %v3576 = vpack.c.b16 %v3392, %v3388
    %v3577 = vpack.c.b16 %v3393, %v3389
    %v3578 = vpack.c.b16 %v3398, %v3394
    %v3579 = vpack.c.b16 %v3399, %v3395
    %v3580 = vpack.c.b16 %v3400, %v3396
    %v3581 = vpack.c.b16 %v3401, %v3397
    %v3582 = vpack.c.b16 %v3406, %v3402
    %v3583 = vpack.c.b16 %v3407, %v3403
    %v3584 = vpack.c.b16 %v3408, %v3404
    %v3585 = vpack.c.b16 %v3409, %v3405
    %v3586 = vpack.c.b16 %v3414, %v3410
    %v3587 = vpack.c.b16 %v3415, %v3411
    %v3588 = vpack.c.b16 %v3416, %v3412
    %v3589 = vpack.c.b16 %v3417, %v3413
    %v3590 = vpack.c.b16 %v3422, %v3418
    %v3591 = vpack.c.b16 %v3423, %v3419
    %v3592 = vpack.c.b16 %v3424, %v3420
    %v3593 = vpack.c.b16 %v3425, %v3421
    %v3594 = vpack.c.b16 %v3430, %v3426
    %v3595 = vpack.c.b16 %v3431, %v3427
    %v3596 = vpack.c.b16 %v3432, %v3428
    %v3597 = vpack.c.b16 %v3433, %v3429
    %v3598 = vpack.c.b16 %v3438, %v3434
    %v3599 = vpack.c.b16 %v3439, %v3435
    %v3600 = vpack.c.b16 %v3440, %v3436
    %v3601 = vpack.c.b16 %v3441, %v3437
    %v3602 = vpack.c.b16 %v3446, %v3442
    %v3603 = vpack.c.b16 %v3447, %v3443
    %v3604 = vpack.c.b16 %v3448, %v3444
    %v3605 = vpack.c.b16 %v3449, %v3445
    %v3606 = vpack.c.b16 %v3454, %v3450
    %v3607 = vpack.c.b16 %v3455, %v3451
    %v3608 = vpack.c.b16 %v3456, %v3452
    %v3609 = vpack.c.b16 %v3457, %v3453
    %v3610 = vpack.c.b16 %v3462, %v3458
    %v3611 = vpack.c.b16 %v3463, %v3459
    %v3612 = vpack.c.b16 %v3464, %v3460
    %v3613 = vpack.c.b16 %v3465, %v3461
    %v3614 = vpack.c.b16 %v3470, %v3466
    %v3615 = vpack.c.b16 %v3471, %v3467
    %v3616 = vpack.c.b16 %v3472, %v3468
    %v3617 = vpack.c.b16 %v3473, %v3469
    %v3618 = vpack.c.b16 %v3478, %v3474
    %v3619 = vpack.c.b16 %v3479, %v3475
    %v3620 = vpack.c.b16 %v3480, %v3476
    %v3621 = vpack.c.b16 %v3481, %v3477
    %v3622 = vpack.c.b16 %v3486, %v3482
    %v3623 = vpack.c.b16 %v3487, %v3483
    %v3624 = vpack.c.b16 %v3488, %v3484
    %v3625 = vpack.c.b16 %v3489, %v3485
    %v3626 = vpack.c.b16 %v3494, %v3490
    %v3627 = vpack.c.b16 %v3495, %v3491
    %v3628 = vpack.c.b16 %v3496, %v3492
    %v3629 = vpack.c.b16 %v3497, %v3493
    %v3630 = vpack.c.b16 %v3502, %v3498
    %v3631 = vpack.c.b16 %v3503, %v3499
    %v3632 = vpack.c.b16 %v3504, %v3500
    %v3633 = vpack.c.b16 %v3505, %v3501
    %3762 = vmatpush.bf16.msra.mxu0 %v3534
    %3763 = vmatpush.bf16.msra.mxu0 %v3530
    %3764 = vmatpush.bf16.msra.mxu0 %v3526
    %3765 = vmatpush.bf16.msra.mxu0 %v3522
    %3766 = vmatpush.bf16.msra.mxu0 %v3518
    %3767 = vmatpush.bf16.msra.mxu0 %v3514
    %3768 = vmatpush.bf16.msra.mxu0 %v3510
    %3769 = vmatpush.bf16.msra.mxu0 %v3506
    %3770 = vmatmul.bf16.gmra.mxu0 %v2982
    %v3771 = vpop.f32.mrf.mxu0
    %v3772 = vadd.f32 0.0, %v3771
    %v3773 = vpop.f32.mrf.mxu0
    %v3774 = vadd.f32 0.0, %v3773
    %3775 = vmatmul.bf16.gmra.mxu0 %v2986
    %v3776 = vpop.f32.mrf.mxu0
    %v3777 = vadd.f32 0.0, %v3776
    %v3778 = vpop.f32.mrf.mxu0
    %v3779 = vadd.f32 0.0, %v3778
    %3780 = vmatmul.bf16.gmra.mxu0 %v2990
    %v3781 = vpop.f32.mrf.mxu0
    %v3782 = vadd.f32 0.0, %v3781
    %v3783 = vpop.f32.mrf.mxu0
    %3784 = vdwg.mxu0
    %3785 = vmatpush.bf16.msra.mxu0 %v3566
    %3786 = vmatpush.bf16.msra.mxu0 %v3562
    %3787 = vmatpush.bf16.msra.mxu0 %v3558
    %3788 = vmatpush.bf16.msra.mxu0 %v3554
    %3789 = vmatpush.bf16.msra.mxu0 %v3550
    %3790 = vmatpush.bf16.msra.mxu0 %v3546
    %3791 = vmatpush.bf16.msra.mxu0 %v3542
    %3792 = vmatpush.bf16.msra.mxu0 %v3538
    %3793 = vmatmul.bf16.gmra.mxu0 %v2983
    %v3794 = vpop.f32.mrf.mxu0
    %v3795 = vadd.f32 %v3772, %v3794
    %v3796 = vpop.f32.mrf.mxu0
    %v3797 = vadd.f32 %v3774, %v3796
    %3798 = vmatmul.bf16.gmra.mxu0 %v2987
    %v3799 = vpop.f32.mrf.mxu0
    %v3800 = vadd.f32 %v3777, %v3799
    %v3801 = vpop.f32.mrf.mxu0
    %v3802 = vadd.f32 %v3779, %v3801
    %3803 = vmatmul.bf16.gmra.mxu0 %v2991
    %v3804 = vpop.f32.mrf.mxu0
    %v3805 = vadd.f32 %v3782, %v3804
    %v3806 = vpop.f32.mrf.mxu0
    %3807 = vdwg.mxu0
    %3808 = vmatpush.bf16.msra.mxu0 %v3598
    %3809 = vmatpush.bf16.msra.mxu0 %v3594
    %3810 = vmatpush.bf16.msra.mxu0 %v3590
    %3811 = vmatpush.bf16.msra.mxu0 %v3586
    %3812 = vmatpush.bf16.msra.mxu0 %v3582
    %3813 = vmatpush.bf16.msra.mxu0 %v3578
    %3814 = vmatpush.bf16.msra.mxu0 %v3574
    %3815 = vmatpush.bf16.msra.mxu0 %v3570
    %3816 = vmatmul.bf16.gmra.mxu0 %v2984
    %v3817 = vpop.f32.mrf.mxu0
    %v3818 = vadd.f32 %v3795, %v3817
    %v3819 = vpop.f32.mrf.mxu0
    %v3820 = vadd.f32 %v3797, %v3819
    %3821 = vmatmul.bf16.gmra.mxu0 %v2988
    %v3822 = vpop.f32.mrf.mxu0
    %v3823 = vadd.f32 %v3800, %v3822
    %v3824 = vpop.f32.mrf.mxu0
    %v3825 = vadd.f32 %v3802, %v3824
    %3826 = vmatmul.bf16.gmra.mxu0 %v2992
    %v3827 = vpop.f32.mrf.mxu0
    %v3828 = vadd.f32 %v3805, %v3827
    %v3829 = vpop.f32.mrf.mxu0
    %3830 = vdwg.mxu0
    %3831 = vmatpush.bf16.msra.mxu0 %v3630
    %3832 = vmatpush.bf16.msra.mxu0 %v3626
    %3833 = vmatpush.bf16.msra.mxu0 %v3622
    %3834 = vmatpush.bf16.msra.mxu0 %v3618
    %3835 = vmatpush.bf16.msra.mxu0 %v3614
    %3836 = vmatpush.bf16.msra.mxu0 %v3610
    %3837 = vmatpush.bf16.msra.mxu0 %v3606
    %3838 = vmatpush.bf16.msra.mxu0 %v3602
    %3839 = vmatmul.bf16.gmra.mxu0 %v2985
    %v3840 = vpop.f32.mrf.mxu0
    %v3841 = vadd.f32 %v3818, %v3840
    %v3842 = vpop.f32.mrf.mxu0
    %v3843 = vadd.f32 %v3820, %v3842
    %3844 = vmatmul.bf16.gmra.mxu0 %v2989
    %v3845 = vpop.f32.mrf.mxu0
    %v3846 = vadd.f32 %v3823, %v3845
    %v3847 = vpop.f32.mrf.mxu0
    %v3848 = vadd.f32 %v3825, %v3847
    %3849 = vmatmul.bf16.gmra.mxu0 %v2993
    %v3850 = vpop.f32.mrf.mxu0
    %v3851 = vadd.f32 %v3828, %v3850
    %v3852 = vpop.f32.mrf.mxu0
    %3853 = vdwg.mxu0
    %3854 = vmatpush.bf16.msra.mxu0 %v3535
    %3855 = vmatpush.bf16.msra.mxu0 %v3531
    %3856 = vmatpush.bf16.msra.mxu0 %v3527
    %3857 = vmatpush.bf16.msra.mxu0 %v3523
    %3858 = vmatpush.bf16.msra.mxu0 %v3519
    %3859 = vmatpush.bf16.msra.mxu0 %v3515
    %3860 = vmatpush.bf16.msra.mxu0 %v3511
    %3861 = vmatpush.bf16.msra.mxu0 %v3507
    %3862 = vmatmul.bf16.gmra.mxu0 %v2982
    %v3863 = vpop.f32.mrf.mxu0
    %v3864 = vadd.f32 0.0, %v3863
    %v3865 = vpop.f32.mrf.mxu0
    %v3866 = vadd.f32 0.0, %v3865
    %3867 = vmatmul.bf16.gmra.mxu0 %v2986
    %v3868 = vpop.f32.mrf.mxu0
    %v3869 = vadd.f32 0.0, %v3868
    %v3870 = vpop.f32.mrf.mxu0
    %v3871 = vadd.f32 0.0, %v3870
    %3872 = vmatmul.bf16.gmra.mxu0 %v2990
    %v3873 = vpop.f32.mrf.mxu0
    %v3874 = vadd.f32 0.0, %v3873
    %v3875 = vpop.f32.mrf.mxu0
    %3876 = vdwg.mxu0
    %3877 = vmatpush.bf16.msra.mxu0 %v3567
    %3878 = vmatpush.bf16.msra.mxu0 %v3563
    %3879 = vmatpush.bf16.msra.mxu0 %v3559
    %3880 = vmatpush.bf16.msra.mxu0 %v3555
    %3881 = vmatpush.bf16.msra.mxu0 %v3551
    %3882 = vmatpush.bf16.msra.mxu0 %v3547
    %3883 = vmatpush.bf16.msra.mxu0 %v3543
    %3884 = vmatpush.bf16.msra.mxu0 %v3539
    %3885 = vmatmul.bf16.gmra.mxu0 %v2983
    %v3886 = vpop.f32.mrf.mxu0
    %v3887 = vadd.f32 %v3864, %v3886
    %v3888 = vpop.f32.mrf.mxu0
    %v3889 = vadd.f32 %v3866, %v3888
    %3890 = vmatmul.bf16.gmra.mxu0 %v2987
    %v3891 = vpop.f32.mrf.mxu0
    %v3892 = vadd.f32 %v3869, %v3891
    %v3893 = vpop.f32.mrf.mxu0
    %v3894 = vadd.f32 %v3871, %v3893
    %3895 = vmatmul.bf16.gmra.mxu0 %v2991
    %v3896 = vpop.f32.mrf.mxu0
    %v3897 = vadd.f32 %v3874, %v3896
    %v3898 = vpop.f32.mrf.mxu0
    %3899 = vdwg.mxu0
    %3900 = vmatpush.bf16.msra.mxu0 %v3599
    %3901 = vmatpush.bf16.msra.mxu0 %v3595
    %3902 = vmatpush.bf16.msra.mxu0 %v3591
    %3903 = vmatpush.bf16.msra.mxu0 %v3587
    %3904 = vmatpush.bf16.msra.mxu0 %v3583
    %3905 = vmatpush.bf16.msra.mxu0 %v3579
    %3906 = vmatpush.bf16.msra.mxu0 %v3575
    %3907 = vmatpush.bf16.msra.mxu0 %v3571
    %3908 = vmatmul.bf16.gmra.mxu0 %v2984
    %v3909 = vpop.f32.mrf.mxu0
    %v3910 = vadd.f32 %v3887, %v3909
    %v3911 = vpop.f32.mrf.mxu0
    %v3912 = vadd.f32 %v3889, %v3911
    %3913 = vmatmul.bf16.gmra.mxu0 %v2988
    %v3914 = vpop.f32.mrf.mxu0
    %v3915 = vadd.f32 %v3892, %v3914
    %v3916 = vpop.f32.mrf.mxu0
    %v3917 = vadd.f32 %v3894, %v3916
    %3918 = vmatmul.bf16.gmra.mxu0 %v2992
    %v3919 = vpop.f32.mrf.mxu0
    %v3920 = vadd.f32 %v3897, %v3919
    %v3921 = vpop.f32.mrf.mxu0
    %3922 = vdwg.mxu0
    %3923 = vmatpush.bf16.msra.mxu0 %v3631
    %3924 = vmatpush.bf16.msra.mxu0 %v3627
    %3925 = vmatpush.bf16.msra.mxu0 %v3623
    %3926 = vmatpush.bf16.msra.mxu0 %v3619
    %3927 = vmatpush.bf16.msra.mxu0 %v3615
    %3928 = vmatpush.bf16.msra.mxu0 %v3611
    %3929 = vmatpush.bf16.msra.mxu0 %v3607
    %3930 = vmatpush.bf16.msra.mxu0 %v3603
    %3931 = vmatmul.bf16.gmra.mxu0 %v2985
    %v3932 = vpop.f32.mrf.mxu0
    %v3933 = vadd.f32 %v3910, %v3932
    %v3934 = vpop.f32.mrf.mxu0
    %v3935 = vadd.f32 %v3912, %v3934
    %3936 = vmatmul.bf16.gmra.mxu0 %v2989
    %v3937 = vpop.f32.mrf.mxu0
    %v3938 = vadd.f32 %v3915, %v3937
    %v3939 = vpop.f32.mrf.mxu0
    %v3940 = vadd.f32 %v3917, %v3939
    %3941 = vmatmul.bf16.gmra.mxu0 %v2993
    %v3942 = vpop.f32.mrf.mxu0
    %v3943 = vadd.f32 %v3920, %v3942
    %v3944 = vpop.f32.mrf.mxu0
    %3945 = vdwg.mxu0
    %3946 = vmatpush.bf16.msra.mxu0 %v3536
    %3947 = vmatpush.bf16.msra.mxu0 %v3532
    %3948 = vmatpush.bf16.msra.mxu0 %v3528
    %3949 = vmatpush.bf16.msra.mxu0 %v3524
    %3950 = vmatpush.bf16.msra.mxu0 %v3520
    %3951 = vmatpush.bf16.msra.mxu0 %v3516
    %3952 = vmatpush.bf16.msra.mxu0 %v3512
    %3953 = vmatpush.bf16.msra.mxu0 %v3508
    %3954 = vmatmul.bf16.gmra.mxu0 %v2982
    %v3955 = vpop.f32.mrf.mxu0
    %v3956 = vadd.f32 0.0, %v3955
    %v3957 = vpop.f32.mrf.mxu0
    %v3958 = vadd.f32 0.0, %v3957
    %3959 = vmatmul.bf16.gmra.mxu0 %v2986
    %v3960 = vpop.f32.mrf.mxu0
    %v3961 = vadd.f32 0.0, %v3960
    %v3962 = vpop.f32.mrf.mxu0
    %v3963 = vadd.f32 0.0, %v3962
    %3964 = vmatmul.bf16.gmra.mxu0 %v2990
    %v3965 = vpop.f32.mrf.mxu0
    %v3966 = vadd.f32 0.0, %v3965
    %v3967 = vpop.f32.mrf.mxu0
    %3968 = vdwg.mxu0
    %3969 = vmatpush.bf16.msra.mxu0 %v3568
    %3970 = vmatpush.bf16.msra.mxu0 %v3564
    %3971 = vmatpush.bf16.msra.mxu0 %v3560
    %3972 = vmatpush.bf16.msra.mxu0 %v3556
    %3973 = vmatpush.bf16.msra.mxu0 %v3552
    %3974 = vmatpush.bf16.msra.mxu0 %v3548
    %3975 = vmatpush.bf16.msra.mxu0 %v3544
    %3976 = vmatpush.bf16.msra.mxu0 %v3540
    %3977 = vmatmul.bf16.gmra.mxu0 %v2983
    %v3978 = vpop.f32.mrf.mxu0
    %v3979 = vadd.f32 %v3956, %v3978
    %v3980 = vpop.f32.mrf.mxu0
    %v3981 = vadd.f32 %v3958, %v3980
    %3982 = vmatmul.bf16.gmra.mxu0 %v2987
    %v3983 = vpop.f32.mrf.mxu0
    %v3984 = vadd.f32 %v3961, %v3983
    %v3985 = vpop.f32.mrf.mxu0
    %v3986 = vadd.f32 %v3963, %v3985
    %3987 = vmatmul.bf16.gmra.mxu0 %v2991
    %v3988 = vpop.f32.mrf.mxu0
    %v3989 = vadd.f32 %v3966, %v3988
    %v3990 = vpop.f32.mrf.mxu0
    %3991 = vdwg.mxu0
    %3992 = vmatpush.bf16.msra.mxu0 %v3600
    %3993 = vmatpush.bf16.msra.mxu0 %v3596
    %3994 = vmatpush.bf16.msra.mxu0 %v3592
    %3995 = vmatpush.bf16.msra.mxu0 %v3588
    %3996 = vmatpush.bf16.msra.mxu0 %v3584
    %3997 = vmatpush.bf16.msra.mxu0 %v3580
    %3998 = vmatpush.bf16.msra.mxu0 %v3576
    %3999 = vmatpush.bf16.msra.mxu0 %v3572
    %4000 = vmatmul.bf16.gmra.mxu0 %v2984
    %v4001 = vpop.f32.mrf.mxu0
    %v4002 = vadd.f32 %v3979, %v4001
    %v4003 = vpop.f32.mrf.mxu0
    %v4004 = vadd.f32 %v3981, %v4003
    %4005 = vmatmul.bf16.gmra.mxu0 %v2988
    %v4006 = vpop.f32.mrf.mxu0
    %v4007 = vadd.f32 %v3984, %v4006
    %v4008 = vpop.f32.mrf.mxu0
    %v4009 = vadd.f32 %v3986, %v4008
    %4010 = vmatmul.bf16.gmra.mxu0 %v2992
    %v4011 = vpop.f32.mrf.mxu0
    %v4012 = vadd.f32 %v3989, %v4011
    %v4013 = vpop.f32.mrf.mxu0
    %4014 = vdwg.mxu0
    %4015 = vmatpush.bf16.msra.mxu0 %v3632
    %4016 = vmatpush.bf16.msra.mxu0 %v3628
    %4017 = vmatpush.bf16.msra.mxu0 %v3624
    %4018 = vmatpush.bf16.msra.mxu0 %v3620
    %4019 = vmatpush.bf16.msra.mxu0 %v3616
    %4020 = vmatpush.bf16.msra.mxu0 %v3612
    %4021 = vmatpush.bf16.msra.mxu0 %v3608
    %4022 = vmatpush.bf16.msra.mxu0 %v3604
    %4023 = vmatmul.bf16.gmra.mxu0 %v2985
    %v4024 = vpop.f32.mrf.mxu0
    %v4025 = vadd.f32 %v4002, %v4024
    %v4026 = vpop.f32.mrf.mxu0
    %v4027 = vadd.f32 %v4004, %v4026
    %4028 = vmatmul.bf16.gmra.mxu0 %v2989
    %v4029 = vpop.f32.mrf.mxu0
    %v4030 = vadd.f32 %v4007, %v4029
    %v4031 = vpop.f32.mrf.mxu0
    %v4032 = vadd.f32 %v4009, %v4031
    %4033 = vmatmul.bf16.gmra.mxu0 %v2993
    %v4034 = vpop.f32.mrf.mxu0
    %v4035 = vadd.f32 %v4012, %v4034
    %v4036 = vpop.f32.mrf.mxu0
    %4037 = vdwg.mxu0
    %4038 = vmatpush.bf16.msra.mxu0 %v3537
    %4039 = vmatpush.bf16.msra.mxu0 %v3533
    %4040 = vmatpush.bf16.msra.mxu0 %v3529
    %4041 = vmatpush.bf16.msra.mxu0 %v3525
    %4042 = vmatpush.bf16.msra.mxu0 %v3521
    %4043 = vmatpush.bf16.msra.mxu0 %v3517
    %4044 = vmatpush.bf16.msra.mxu0 %v3513
    %4045 = vmatpush.bf16.msra.mxu0 %v3509
    %4046 = vmatmul.bf16.gmra.mxu0 %v2982
    %v4047 = vpop.f32.mrf.mxu0
    %v4048 = vadd.f32 0.0, %v4047
    %v4049 = vpop.f32.mrf.mxu0
    %v4050 = vadd.f32 0.0, %v4049
    %4051 = vmatmul.bf16.gmra.mxu0 %v2986
    %v4052 = vpop.f32.mrf.mxu0
    %v4053 = vadd.f32 0.0, %v4052
    %v4054 = vpop.f32.mrf.mxu0
    %v4055 = vadd.f32 0.0, %v4054
    %4056 = vmatmul.bf16.gmra.mxu0 %v2990
    %v4057 = vpop.f32.mrf.mxu0
    %v4058 = vadd.f32 0.0, %v4057
    %v4059 = vpop.f32.mrf.mxu0
    %4060 = vdwg.mxu0
    %4061 = vmatpush.bf16.msra.mxu0 %v3569
    %4062 = vmatpush.bf16.msra.mxu0 %v3565
    %4063 = vmatpush.bf16.msra.mxu0 %v3561
    %4064 = vmatpush.bf16.msra.mxu0 %v3557
    %4065 = vmatpush.bf16.msra.mxu0 %v3553
    %4066 = vmatpush.bf16.msra.mxu0 %v3549
    %4067 = vmatpush.bf16.msra.mxu0 %v3545
    %4068 = vmatpush.bf16.msra.mxu0 %v3541
    %4069 = vmatmul.bf16.gmra.mxu0 %v2983
    %v4070 = vpop.f32.mrf.mxu0
    %v4071 = vadd.f32 %v4048, %v4070
    %v4072 = vpop.f32.mrf.mxu0
    %v4073 = vadd.f32 %v4050, %v4072
    %4074 = vmatmul.bf16.gmra.mxu0 %v2987
    %v4075 = vpop.f32.mrf.mxu0
    %v4076 = vadd.f32 %v4053, %v4075
    %v4077 = vpop.f32.mrf.mxu0
    %v4078 = vadd.f32 %v4055, %v4077
    %4079 = vmatmul.bf16.gmra.mxu0 %v2991
    %v4080 = vpop.f32.mrf.mxu0
    %v4081 = vadd.f32 %v4058, %v4080
    %v4082 = vpop.f32.mrf.mxu0
    %4083 = vdwg.mxu0
    %4084 = vmatpush.bf16.msra.mxu0 %v3601
    %4085 = vmatpush.bf16.msra.mxu0 %v3597
    %4086 = vmatpush.bf16.msra.mxu0 %v3593
    %4087 = vmatpush.bf16.msra.mxu0 %v3589
    %4088 = vmatpush.bf16.msra.mxu0 %v3585
    %4089 = vmatpush.bf16.msra.mxu0 %v3581
    %4090 = vmatpush.bf16.msra.mxu0 %v3577
    %4091 = vmatpush.bf16.msra.mxu0 %v3573
    %4092 = vmatmul.bf16.gmra.mxu0 %v2984
    %v4093 = vpop.f32.mrf.mxu0
    %v4094 = vadd.f32 %v4071, %v4093
    %v4095 = vpop.f32.mrf.mxu0
    %v4096 = vadd.f32 %v4073, %v4095
    %4097 = vmatmul.bf16.gmra.mxu0 %v2988
    %v4098 = vpop.f32.mrf.mxu0
    %v4099 = vadd.f32 %v4076, %v4098
    %v4100 = vpop.f32.mrf.mxu0
    %v4101 = vadd.f32 %v4078, %v4100
    %4102 = vmatmul.bf16.gmra.mxu0 %v2992
    %v4103 = vpop.f32.mrf.mxu0
    %v4104 = vadd.f32 %v4081, %v4103
    %v4105 = vpop.f32.mrf.mxu0
    %4106 = vdwg.mxu0
    %4107 = vmatpush.bf16.msra.mxu0 %v3633
    %4108 = vmatpush.bf16.msra.mxu0 %v3629
    %4109 = vmatpush.bf16.msra.mxu0 %v3625
    %4110 = vmatpush.bf16.msra.mxu0 %v3621
    %4111 = vmatpush.bf16.msra.mxu0 %v3617
    %4112 = vmatpush.bf16.msra.mxu0 %v3613
    %4113 = vmatpush.bf16.msra.mxu0 %v3609
    %4114 = vmatpush.bf16.msra.mxu0 %v3605
    %4115 = vmatmul.bf16.gmra.mxu0 %v2985
    %v4116 = vpop.f32.mrf.mxu0
    %v4117 = vadd.f32 %v4094, %v4116
    %v4118 = vpop.f32.mrf.mxu0
    %v4119 = vadd.f32 %v4096, %v4118
    %4120 = vmatmul.bf16.gmra.mxu0 %v2989
    %v4121 = vpop.f32.mrf.mxu0
    %v4122 = vadd.f32 %v4099, %v4121
    %v4123 = vpop.f32.mrf.mxu0
    %v4124 = vadd.f32 %v4101, %v4123
    %4125 = vmatmul.bf16.gmra.mxu0 %v2993
    %v4126 = vpop.f32.mrf.mxu0
    %v4127 = vadd.f32 %v4104, %v4126
    %v4128 = vpop.f32.mrf.mxu0
    %4129 = vdwg.mxu0
    %v4130 = vld [vmem:[%s8] sm:$0xf]
    %v4132 = vperm.slane %v4130, 0
    %v4133 = vperm.slane %v4130, 1
    %v4134 = vperm.slane %v4130, 2
    %v4135 = vperm.slane %v4130, 3
    %v4140 = vadd.f32 %v3841, %v4132
    %v4141 = vadd.f32 %v3933, %v4133
    %v4142 = vadd.f32 %v4025, %v4134
    %v4143 = vadd.f32 %v4117, %v4135
    %v4144 = vsub.f32 0.0, %v4140
    %v4145 = vsub.f32 0.0, %v4141
    %v4146 = vsub.f32 0.0, %v4142
    %v4147 = vsub.f32 0.0, %v4143
    %v4148 = vmul.f32 %v4144, 1.442695
    %v4149 = vpow.pop %v4148
    %v4150 = vmul.f32 %v4145, 1.442695
    %v4151 = vpow.pop %v4150
    %v4152 = vmul.f32 %v4146, 1.442695
    %v4153 = vpow.pop %v4152
    %v4154 = vmul.f32 %v4147, 1.442695
    %v4155 = vpow.pop %v4154
    %v4156 = vadd.f32 %v4149, 1.0
    %v4157 = vadd.f32 %v4151, 1.0
    %v4158 = vadd.f32 %v4153, 1.0
    %v4159 = vadd.f32 %v4155, 1.0
    %v4160 = vrcp.pop %v4156
    %v4161 = vrcp.pop %v4157
    %v4162 = vrcp.pop %v4158
    %v4163 = vrcp.pop %v4159
    %v4164 = vsub.f32 1.0, %v4160
    %v4165 = vsub.f32 1.0, %v4161
    %v4166 = vsub.f32 1.0, %v4162
    %v4167 = vsub.f32 1.0, %v4163
    %v4168 = vmul.f32 %v4160, %v4164
    %v4169 = vmul.f32 %v4161, %v4165
    %v4170 = vmul.f32 %v4162, %v4166
    %v4171 = vmul.f32 %v4163, %v4167
    %v4172 = vmul.f32 %v3843, %v4168
    %v4173 = vmul.f32 %v3935, %v4169
    %v4174 = vmul.f32 %v4027, %v4170
    %v4175 = vmul.f32 %v4119, %v4171
    %v4176 = vmul.f32 %v3846, %v4168
    %v4177 = vmul.f32 %v3938, %v4169
    %v4178 = vmul.f32 %v4030, %v4170
    %v4179 = vmul.f32 %v4122, %v4171
    %v4180 = vmul.f32 %v3848, %v4168
    %v4181 = vmul.f32 %v3940, %v4169
    %v4182 = vmul.f32 %v4032, %v4170
    %v4183 = vmul.f32 %v4124, %v4171
    %v4184 = vmul.f32 %v3851, %v4168
    %v4185 = vmul.f32 %v3943, %v4169
    %v4186 = vmul.f32 %v4035, %v4170
    %v4187 = vmul.f32 %v4127, %v4171
    %v4188 = vpack.c.bf16 %v4172, %v4160
    %v4189 = vpack.c.bf16 %v4173, %v4161
    %v4190 = vpack.c.bf16 %v4174, %v4162
    %v4191 = vpack.c.bf16 %v4175, %v4163
    %v4192 = vpack.c.bf16 %v4180, %v4176
    %v4193 = vpack.c.bf16 %v4181, %v4177
    %v4194 = vpack.c.bf16 %v4182, %v4178
    %v4195 = vpack.c.bf16 %v4183, %v4179
    %v4196 = vpack.c.bf16 %v4184, %v4184
    %v4197 = vpack.c.bf16 %v4185, %v4185
    %v4198 = vpack.c.bf16 %v4186, %v4186
    %v4199 = vpack.c.bf16 %v4187, %v4187
    %v4200 = vld [vmem:[%s9] sm:$0xf]
    %v4201 = vld [vmem:[%s9 + $0x4] sm:$0xf]
    %v4202 = vld [vmem:[%s9 + $0x8] sm:$0xf]
    %v4203 = vld [vmem:[%s9 + $0xc] sm:$0xf]
    %v4204 = vld [vmem:[%s9 + $0x10] sm:$0xf]
    %v4205 = vld [vmem:[%s9 + $0x14] sm:$0xf]
    %v4206 = vld [vmem:[%s9 + $0x18] sm:$0xf]
    %v4207 = vld [vmem:[%s9 + $0x1c] sm:$0xf]
    %v4208 = vld [vmem:[%s9 + $0x20] sm:$0xf]
    %v4209 = vld [vmem:[%s9 + $0x24] sm:$0xf]
    %v4210 = vld [vmem:[%s9 + $0x28] sm:$0xf]
    %v4211 = vld [vmem:[%s9 + $0x2c] sm:$0xf]
    %v4212 = vld [vmem:[%s9 + $0x30] sm:$0xf]
    %v4213 = vld [vmem:[%s9 + $0x34] sm:$0xf]
    %v4214 = vld [vmem:[%s9 + $0x38] sm:$0xf]
    %v4215 = vld [vmem:[%s9 + $0x3c] sm:$0xf]
    %v4216 = vld [vmem:[%s9 + $0x40] sm:$0xf]
    %v4217 = vld [vmem:[%s9 + $0x44] sm:$0xf]
    %v4218 = vld [vmem:[%s9 + $0x48] sm:$0xf]
    %v4219 = vld [vmem:[%s9 + $0x4c] sm:$0xf]
    %v4220 = vld [vmem:[%s9 + $0x50] sm:$0xf]
    %v4221 = vld [vmem:[%s9 + $0x54] sm:$0xf]
    %v4222 = vld [vmem:[%s9 + $0x58] sm:$0xf]
    %v4223 = vld [vmem:[%s9 + $0x5c] sm:$0xf]
    %v4224 = vld [vmem:[%s9 + $0x60] sm:$0xf]
    %v4225 = vld [vmem:[%s9 + $0x64] sm:$0xf]
    %v4226 = vld [vmem:[%s9 + $0x68] sm:$0xf]
    %v4227 = vld [vmem:[%s9 + $0x6c] sm:$0xf]
    %v4228 = vld [vmem:[%s9 + $0x70] sm:$0xf]
    %v4229 = vld [vmem:[%s9 + $0x74] sm:$0xf]
    %v4230 = vld [vmem:[%s9 + $0x78] sm:$0xf]
    %v4231 = vld [vmem:[%s9 + $0x7c] sm:$0xf]
    %v4232 = vld [vmem:[%s9 + $0x80] sm:$0xf]
    %v4233 = vld [vmem:[%s9 + $0x84] sm:$0xf]
    %v4234 = vld [vmem:[%s9 + $0x88] sm:$0xf]
    %v4235 = vld [vmem:[%s9 + $0x8c] sm:$0xf]
    %v4236 = vld [vmem:[%s9 + $0x90] sm:$0xf]
    %v4237 = vld [vmem:[%s9 + $0x94] sm:$0xf]
    %v4238 = vld [vmem:[%s9 + $0x98] sm:$0xf]
    %v4239 = vld [vmem:[%s9 + $0x9c] sm:$0xf]
    %v4240 = vld [vmem:[%s9 + $0xa0] sm:$0xf]
    %v4241 = vld [vmem:[%s9 + $0xa4] sm:$0xf]
    %v4242 = vld [vmem:[%s9 + $0xa8] sm:$0xf]
    %v4243 = vld [vmem:[%s9 + $0xac] sm:$0xf]
    %v4244 = vld [vmem:[%s9 + $0xb0] sm:$0xf]
    %v4245 = vld [vmem:[%s9 + $0xb4] sm:$0xf]
    %v4246 = vld [vmem:[%s9 + $0xb8] sm:$0xf]
    %v4247 = vld [vmem:[%s9 + $0xbc] sm:$0xf]
    %v4248 = vld [vmem:[%s9 + $0xc0] sm:$0xf]
    %v4249 = vld [vmem:[%s9 + $0xc4] sm:$0xf]
    %v4250 = vld [vmem:[%s9 + $0xc8] sm:$0xf]
    %v4251 = vld [vmem:[%s9 + $0xcc] sm:$0xf]
    %v4252 = vld [vmem:[%s9 + $0xd0] sm:$0xf]
    %v4253 = vld [vmem:[%s9 + $0xd4] sm:$0xf]
    %v4254 = vld [vmem:[%s9 + $0xd8] sm:$0xf]
    %v4255 = vld [vmem:[%s9 + $0xdc] sm:$0xf]
    %v4256 = vld [vmem:[%s9 + $0xe0] sm:$0xf]
    %v4257 = vld [vmem:[%s9 + $0xe4] sm:$0xf]
    %v4258 = vld [vmem:[%s9 + $0xe8] sm:$0xf]
    %v4259 = vld [vmem:[%s9 + $0xec] sm:$0xf]
    %v4260 = vld [vmem:[%s9 + $0xf0] sm:$0xf]
    %v4261 = vld [vmem:[%s9 + $0xf4] sm:$0xf]
    %v4262 = vld [vmem:[%s9 + $0xf8] sm:$0xf]
    %v4263 = vld [vmem:[%s9 + $0xfc] sm:$0xf]
    %v4328 = vunpack.c.l.b16 %v4200
    %v4329 = vunpack.c.l.b16 %v4201
    %v4330 = vunpack.c.l.b16 %v4202
    %v4331 = vunpack.c.l.b16 %v4203
    %v4332 = vunpack.c.l.b16 %v4204
    %v4333 = vunpack.c.l.b16 %v4205
    %v4334 = vunpack.c.l.b16 %v4206
    %v4335 = vunpack.c.l.b16 %v4207
    %v4336 = vunpack.c.l.b16 %v4208
    %v4337 = vunpack.c.l.b16 %v4209
    %v4338 = vunpack.c.l.b16 %v4210
    %v4339 = vunpack.c.l.b16 %v4211
    %v4340 = vunpack.c.l.b16 %v4212
    %v4341 = vunpack.c.l.b16 %v4213
    %v4342 = vunpack.c.l.b16 %v4214
    %v4343 = vunpack.c.l.b16 %v4215
    %v4344 = vunpack.c.l.b16 %v4216
    %v4345 = vunpack.c.l.b16 %v4217
    %v4346 = vunpack.c.l.b16 %v4218
    %v4347 = vunpack.c.l.b16 %v4219
    %v4348 = vunpack.c.l.b16 %v4220
    %v4349 = vunpack.c.l.b16 %v4221
    %v4350 = vunpack.c.l.b16 %v4222
    %v4351 = vunpack.c.l.b16 %v4223
    %v4352 = vunpack.c.l.b16 %v4224
    %v4353 = vunpack.c.l.b16 %v4225
    %v4354 = vunpack.c.l.b16 %v4226
    %v4355 = vunpack.c.l.b16 %v4227
    %v4356 = vunpack.c.l.b16 %v4228
    %v4357 = vunpack.c.l.b16 %v4229
    %v4358 = vunpack.c.l.b16 %v4230
    %v4359 = vunpack.c.l.b16 %v4231
    %v4360 = vunpack.c.l.b16 %v4232
    %v4361 = vunpack.c.l.b16 %v4233
    %v4362 = vunpack.c.l.b16 %v4234
    %v4363 = vunpack.c.l.b16 %v4235
    %v4364 = vunpack.c.l.b16 %v4236
    %v4365 = vunpack.c.l.b16 %v4237
    %v4366 = vunpack.c.l.b16 %v4238
    %v4367 = vunpack.c.l.b16 %v4239
    %v4368 = vunpack.c.l.b16 %v4240
    %v4369 = vunpack.c.l.b16 %v4241
    %v4370 = vunpack.c.l.b16 %v4242
    %v4371 = vunpack.c.l.b16 %v4243
    %v4372 = vunpack.c.l.b16 %v4244
    %v4373 = vunpack.c.l.b16 %v4245
    %v4374 = vunpack.c.l.b16 %v4246
    %v4375 = vunpack.c.l.b16 %v4247
    %v4376 = vunpack.c.l.b16 %v4248
    %v4377 = vunpack.c.l.b16 %v4249
    %v4378 = vunpack.c.l.b16 %v4250
    %v4379 = vunpack.c.l.b16 %v4251
    %v4380 = vunpack.c.l.b16 %v4252
    %v4381 = vunpack.c.l.b16 %v4253
    %v4382 = vunpack.c.l.b16 %v4254
    %v4383 = vunpack.c.l.b16 %v4255
    %v4384 = vunpack.c.l.b16 %v4256
    %v4385 = vunpack.c.l.b16 %v4257
    %v4386 = vunpack.c.l.b16 %v4258
    %v4387 = vunpack.c.l.b16 %v4259
    %v4388 = vunpack.c.l.b16 %v4260
    %v4389 = vunpack.c.l.b16 %v4261
    %v4390 = vunpack.c.l.b16 %v4262
    %v4391 = vunpack.c.l.b16 %v4263
    %v4392 = vpack.c.b16 %v4329, %v4328
    %v4393 = vpack.c.b16 %v4331, %v4330
    %v4394 = vpack.c.b16 %v4333, %v4332
    %v4395 = vpack.c.b16 %v4335, %v4334
    %v4396 = vpack.c.b16 %v4337, %v4336
    %v4397 = vpack.c.b16 %v4339, %v4338
    %v4398 = vpack.c.b16 %v4341, %v4340
    %v4399 = vpack.c.b16 %v4343, %v4342
    %v4400 = vpack.c.b16 %v4345, %v4344
    %v4401 = vpack.c.b16 %v4347, %v4346
    %v4402 = vpack.c.b16 %v4349, %v4348
    %v4403 = vpack.c.b16 %v4351, %v4350
    %v4404 = vpack.c.b16 %v4353, %v4352
    %v4405 = vpack.c.b16 %v4355, %v4354
    %v4406 = vpack.c.b16 %v4357, %v4356
    %v4407 = vpack.c.b16 %v4359, %v4358
    %v4408 = vpack.c.b16 %v4361, %v4360
    %v4409 = vpack.c.b16 %v4363, %v4362
    %v4410 = vpack.c.b16 %v4365, %v4364
    %v4411 = vpack.c.b16 %v4367, %v4366
    %v4412 = vpack.c.b16 %v4369, %v4368
    %v4413 = vpack.c.b16 %v4371, %v4370
    %v4414 = vpack.c.b16 %v4373, %v4372
    %v4415 = vpack.c.b16 %v4375, %v4374
    %v4416 = vpack.c.b16 %v4377, %v4376
    %v4417 = vpack.c.b16 %v4379, %v4378
    %v4418 = vpack.c.b16 %v4381, %v4380
    %v4419 = vpack.c.b16 %v4383, %v4382
    %v4420 = vpack.c.b16 %v4385, %v4384
    %v4421 = vpack.c.b16 %v4387, %v4386
    %v4422 = vpack.c.b16 %v4389, %v4388
    %v4423 = vpack.c.b16 %v4391, %v4390
    %4456 = vmatpush.bf16.msra.mxu0 %v4399
    %4457 = vmatpush.bf16.msra.mxu0 %v4398
    %4458 = vmatpush.bf16.msra.mxu0 %v4397
    %4459 = vmatpush.bf16.msra.mxu0 %v4396
    %4460 = vmatpush.bf16.msra.mxu0 %v4395
    %4461 = vmatpush.bf16.msra.mxu0 %v4394
    %4462 = vmatpush.bf16.msra.mxu0 %v4393
    %4463 = vmatpush.bf16.msra.mxu0 %v4392
    %4464 = vmatmul.bf16.gmra.mxu0 %v4188
    %v4465 = vpop.f32.mrf.mxu0
    %v4466 = vadd.f32 0.0, %v4465
    %v4467 = vpop.f32.mrf.mxu0
    %v4468 = vadd.f32 0.0, %v4467
    %4469 = vmatmul.bf16.gmra.mxu0 %v4192
    %v4470 = vpop.f32.mrf.mxu0
    %v4471 = vadd.f32 0.0, %v4470
    %v4472 = vpop.f32.mrf.mxu0
    %v4473 = vadd.f32 0.0, %v4472
    %4474 = vmatmul.bf16.gmra.mxu0 %v4196
    %v4475 = vpop.f32.mrf.mxu0
    %v4476 = vadd.f32 0.0, %v4475
    %v4477 = vpop.f32.mrf.mxu0
    %4478 = vdwg.mxu0
    %4479 = vmatpush.bf16.msra.mxu0 %v4407
    %4480 = vmatpush.bf16.msra.mxu0 %v4406
    %4481 = vmatpush.bf16.msra.mxu0 %v4405
    %4482 = vmatpush.bf16.msra.mxu0 %v4404
    %4483 = vmatpush.bf16.msra.mxu0 %v4403
    %4484 = vmatpush.bf16.msra.mxu0 %v4402
    %4485 = vmatpush.bf16.msra.mxu0 %v4401
    %4486 = vmatpush.bf16.msra.mxu0 %v4400
    %4487 = vmatmul.bf16.gmra.mxu0 %v4189
    %v4488 = vpop.f32.mrf.mxu0
    %v4489 = vadd.f32 %v4466, %v4488
    %v4490 = vpop.f32.mrf.mxu0
    %v4491 = vadd.f32 %v4468, %v4490
    %4492 = vmatmul.bf16.gmra.mxu0 %v4193
    %v4493 = vpop.f32.mrf.mxu0
    %v4494 = vadd.f32 %v4471, %v4493
    %v4495 = vpop.f32.mrf.mxu0
    %v4496 = vadd.f32 %v4473, %v4495
    %4497 = vmatmul.bf16.gmra.mxu0 %v4197
    %v4498 = vpop.f32.mrf.mxu0
    %v4499 = vadd.f32 %v4476, %v4498
    %v4500 = vpop.f32.mrf.mxu0
    %4501 = vdwg.mxu0
    %4502 = vmatpush.bf16.msra.mxu0 %v4415
    %4503 = vmatpush.bf16.msra.mxu0 %v4414
    %4504 = vmatpush.bf16.msra.mxu0 %v4413
    %4505 = vmatpush.bf16.msra.mxu0 %v4412
    %4506 = vmatpush.bf16.msra.mxu0 %v4411
    %4507 = vmatpush.bf16.msra.mxu0 %v4410
    %4508 = vmatpush.bf16.msra.mxu0 %v4409
    %4509 = vmatpush.bf16.msra.mxu0 %v4408
    %4510 = vmatmul.bf16.gmra.mxu0 %v4190
    %v4511 = vpop.f32.mrf.mxu0
    %v4512 = vadd.f32 %v4489, %v4511
    %v4513 = vpop.f32.mrf.mxu0
    %v4514 = vadd.f32 %v4491, %v4513
    %4515 = vmatmul.bf16.gmra.mxu0 %v4194
    %v4516 = vpop.f32.mrf.mxu0
    %v4517 = vadd.f32 %v4494, %v4516
    %v4518 = vpop.f32.mrf.mxu0
    %v4519 = vadd.f32 %v4496, %v4518
    %4520 = vmatmul.bf16.gmra.mxu0 %v4198
    %v4521 = vpop.f32.mrf.mxu0
    %v4522 = vadd.f32 %v4499, %v4521
    %v4523 = vpop.f32.mrf.mxu0
    %4524 = vdwg.mxu0
    %4525 = vmatpush.bf16.msra.mxu0 %v4423
    %4526 = vmatpush.bf16.msra.mxu0 %v4422
    %4527 = vmatpush.bf16.msra.mxu0 %v4421
    %4528 = vmatpush.bf16.msra.mxu0 %v4420
    %4529 = vmatpush.bf16.msra.mxu0 %v4419
    %4530 = vmatpush.bf16.msra.mxu0 %v4418
    %4531 = vmatpush.bf16.msra.mxu0 %v4417
    %4532 = vmatpush.bf16.msra.mxu0 %v4416
    %4533 = vmatmul.bf16.gmra.mxu0 %v4191
    %v4534 = vpop.f32.mrf.mxu0
    %v4535 = vadd.f32 %v4512, %v4534
    %v4536 = vpop.f32.mrf.mxu0
    %v4537 = vadd.f32 %v4514, %v4536
    %4538 = vmatmul.bf16.gmra.mxu0 %v4195
    %v4539 = vpop.f32.mrf.mxu0
    %v4540 = vadd.f32 %v4517, %v4539
    %v4541 = vpop.f32.mrf.mxu0
    %v4542 = vadd.f32 %v4519, %v4541
    %4543 = vmatmul.bf16.gmra.mxu0 %v4199
    %v4544 = vpop.f32.mrf.mxu0
    %v4545 = vadd.f32 %v4522, %v4544
    %v4546 = vpop.f32.mrf.mxu0
    %4547 = vdwg.mxu0
    %v4548 = vld [vmem:[%s10] sm:$0x1]
    %v4550 = vperm.slane %v4548, 0
    %v4552 = vadd.f32 %v4535, %v4550
    %v4553 = vlaneseq
    %v4554 = vand.u32 %v4553, 127
    %vm4555 = vcmp.lt.s32.totalorder %v4554, 4
    %v4556 = vsel %vm4555, %v4552, 0.0
    %v4557 = vmul.f32 %v4556, 1.442695
    %v4558 = vpow.pop %v4557
    %v4559 = vsel %vm4555, %v4558, %v4552
    %v4560 = vsel %vm4555, %v4558, 1.0
    %v4561 = vmul.f32 %v4537, %v4560
    %v4562 = vmul.f32 %v4540, %v4560
    %v4563 = vmul.f32 %v4542, %v4560
    %v4564 = vmul.f32 %v4545, %v4560
    %v4565 = vld [vmem:[%s15] sm:$0xf]
    %v4566 = vld [vmem:[%s16] sm:$0xff]
    %v4567 = vld [vmem:[%s16 + $0x8] sm:$0x3]
    %v4568 = vld [vmem:[%s17] sm:$0xff]
    %v4569 = vld [vmem:[%s17 + $0x8] sm:$0x3]
    %v4570 = vld [vmem:[%s18] sm:$0xf]
    %v4572 = vsel %vm153, %v110, 0
    %v4575 = vsel %vm153, %v111, 0
    %v4578 = vsel %vm157, %v4565, 0
    %4580 = vmatpush.msra.mxu0 0.0
    %4581 = vmatpush.msra.mxu0 0.0
    %4582 = vmatpush.msra.mxu0 0.0
    %4583 = vmatpush.msra.mxu0 0.0
    %4584 = vmatpush.msra.mxu0 0.0
    %4585 = vmatpush.msra.mxu0 0.0
    %4586 = vmatpush.msra.mxu0 0.0
    %4587 = vmatpush.msra.mxu0 0.0
    %4588 = vmatpush.msra.mxu0 0.0
    %4589 = vmatpush.msra.mxu0 0.0
    %4590 = vmatpush.msra.mxu0 0.0
    %4591 = vmatpush.msra.mxu0 0.0
    %4592 = vmatpush.msra.mxu0 0.0
    %4593 = vmatpush.msra.mxu0 0.0
    %4594 = vmatpush.msra.mxu0 0.0
    %4595 = vmatpush.msra.mxu0 %v4578
    %4596 = vmatmul.f32.gmra.mxu0 %v4572
    %v4597 = vpop.f32.mrf.mxu0
    %v4598 = vadd.f32 0.0, %v4597
    %4599 = vmatmul.f32.gmra.mxu0 %v4575
    %v4600 = vpop.f32.mrf.mxu0
    %v4601 = vadd.f32 0.0, %v4600
    %4602 = vdwg.mxu0
    %4603 = vset.pattern.permute.xlu0 0
    %4604 = vperm.xlu0 %4603, %v110
    %v4605 = vpop.permute.xlu0 %4604
    %v4607 = vmul.f32 %v4605, %v4561
    %4608 = vset.pattern.permute.xlu0 1
    %4609 = vperm.xlu0 %4608, %v110
    %v4610 = vpop.permute.xlu0 %4609
    %v4612 = vmul.f32 %v4610, %v4562
    %v4613 = vadd.f32 %v4607, %v4612
    %4614 = vset.pattern.permute.xlu0 2
    %4615 = vperm.xlu0 %4614, %v110
    %v4616 = vpop.permute.xlu0 %4615
    %v4618 = vmul.f32 %v4616, %v4563
    %v4619 = vadd.f32 %v4613, %v4618
    %4620 = vset.pattern.permute.xlu0 3
    %4621 = vperm.xlu0 %4620, %v110
    %v4622 = vpop.permute.xlu0 %4621
    %v4624 = vmul.f32 %v4622, %v4564
    %v4625 = vadd.f32 %v4619, %v4624
    %v4626 = vmul.f32 %v4598, %v4559
    %v4627 = vmul.f32 %v4598, %v4625
    %v4628 = vmul.f32 %v4601, %v4559
    %vm4629 = vcmask 80896
    %v4631 = vsel %vm4629, %v4626, 0
    %v4634 = vsel %vm4629, %v4627, 0
    %v4637 = vsel %vm4629, %v4628, 0
    %vm4639 = vcmask 1041408
    %v4641 = vsel %vm4639, %v4567, 0
    %4643 = vmatpush.msra.mxu0 0.0
    %4644 = vmatpush.msra.mxu0 0.0
    %4645 = vmatpush.msra.mxu0 0.0
    %4646 = vmatpush.msra.mxu0 0.0
    %4647 = vmatpush.msra.mxu0 0.0
    %4648 = vmatpush.msra.mxu0 0.0
    %4649 = vmatpush.msra.mxu0 0.0
    %4650 = vmatpush.msra.mxu0 0.0
    %4651 = vmatpush.msra.mxu0 0.0
    %4652 = vmatpush.msra.mxu0 0.0
    %4653 = vmatpush.msra.mxu0 0.0
    %4654 = vmatpush.msra.mxu0 0.0
    %4655 = vmatpush.msra.mxu0 0.0
    %4656 = vmatpush.msra.mxu0 0.0
    %4657 = vmatpush.msra.mxu0 %v4641
    %4658 = vmatpush.msra.mxu0 %v4566
    %4659 = vmatmul.f32.gmra.mxu0 %v4631
    %v4660 = vpop.f32.mrf.mxu0
    %v4661 = vadd.f32 0.0, %v4660
    %4662 = vmatmul.f32.gmra.mxu0 %v4634
    %v4663 = vpop.f32.mrf.mxu0
    %v4664 = vadd.f32 0.0, %v4663
    %4665 = vmatmul.f32.gmra.mxu0 %v4637
    %v4666 = vpop.f32.mrf.mxu0
    %v4667 = vadd.f32 0.0, %v4666
    %4668 = vdwg.mxu0
    %4670 = vset.pattern.permute.xlu0 0
    %4671 = vperm.xlu0 %4670, %v4661
    %v4672 = vpop.permute.xlu0 %4671
    %v4674 = vmul.f32 %v4672, %v4561
    %4675 = vset.pattern.permute.xlu0 1
    %4676 = vperm.xlu0 %4675, %v4661
    %v4677 = vpop.permute.xlu0 %4676
    %v4679 = vmul.f32 %v4677, %v4562
    %v4680 = vadd.f32 %v4674, %v4679
    %4681 = vset.pattern.permute.xlu0 2
    %4682 = vperm.xlu0 %4681, %v4661
    %v4683 = vpop.permute.xlu0 %4682
    %v4685 = vmul.f32 %v4683, %v4563
    %v4686 = vadd.f32 %v4680, %v4685
    %4687 = vset.pattern.permute.xlu0 3
    %4688 = vperm.xlu0 %4687, %v4661
    %v4689 = vpop.permute.xlu0 %4688
    %v4691 = vmul.f32 %v4689, %v4564
    %v4692 = vadd.f32 %v4686, %v4691
    %v4693 = vmul.f32 %v4692, %v4598
    %v4695 = vsel %vm4629, %v4693, 0
    %4697 = vmatpush.msra.mxu0 0.0
    %4698 = vmatpush.msra.mxu0 0.0
    %4699 = vmatpush.msra.mxu0 0.0
    %4700 = vmatpush.msra.mxu0 0.0
    %4701 = vmatpush.msra.mxu0 0.0
    %4702 = vmatpush.msra.mxu0 0.0
    %4703 = vmatpush.msra.mxu0 0.0
    %4704 = vmatpush.msra.mxu0 0.0
    %4705 = vmatpush.msra.mxu0 0.0
    %4706 = vmatpush.msra.mxu0 0.0
    %4707 = vmatpush.msra.mxu0 0.0
    %4708 = vmatpush.msra.mxu0 0.0
    %4709 = vmatpush.msra.mxu0 0.0
    %4710 = vmatpush.msra.mxu0 0.0
    %4711 = vmatpush.msra.mxu0 %v4641
    %4712 = vmatpush.msra.mxu0 %v4566
    %4713 = vmatmul.f32.gmra.mxu0 %v4695
    %v4714 = vpop.f32.mrf.mxu0
    %v4715 = vadd.f32 0.0, %v4714
    %4716 = vdwg.mxu0
    %v4718 = vsel %vm153, %v4667, 0
    %v4721 = vsel %vm153, %v4664, 0
    %v4723 = vsel %vm153, %v4661, 0
    %v4726 = vsel %vm157, %v4570, 0
    %4728 = vmatpush.msra.mxu0 0.0
    %4729 = vmatpush.msra.mxu0 0.0
    %4730 = vmatpush.msra.mxu0 0.0
    %4731 = vmatpush.msra.mxu0 0.0
    %4732 = vmatpush.msra.mxu0 0.0
    %4733 = vmatpush.msra.mxu0 0.0
    %4734 = vmatpush.msra.mxu0 0.0
    %4735 = vmatpush.msra.mxu0 0.0
    %4736 = vmatpush.msra.mxu0 0.0
    %4737 = vmatpush.msra.mxu0 0.0
    %4738 = vmatpush.msra.mxu0 0.0
    %4739 = vmatpush.msra.mxu0 0.0
    %4740 = vmatpush.msra.mxu0 0.0
    %4741 = vmatpush.msra.mxu0 0.0
    %4742 = vmatpush.msra.mxu0 0.0
    %4743 = vmatpush.msra.mxu0 %v4726
    %4744 = vmatmul.f32.gmra.mxu0 %v4718
    %v4745 = vpop.f32.mrf.mxu0
    %v4746 = vadd.f32 0.0, %v4745
    %4747 = vmatmul.f32.gmra.mxu0 %v4721
    %v4748 = vpop.f32.mrf.mxu0
    %v4749 = vadd.f32 0.0, %v4748
    %4750 = vmatmul.f32.gmra.mxu0 %v4723
    %v4751 = vpop.f32.mrf.mxu0
    %v4752 = vadd.f32 0.0, %v4751
    %4753 = vdwg.mxu0
    %v4754 = vmul.f32 %v4746, %v4559
    %v4755 = vmul.f32 %v4749, %v4559
    %v4756 = vmul.f32 %v4752, %v4625
    %v4758 = vsel %vm4629, %v4754, 0
    %v4761 = vsel %vm4629, %v4755, 0
    %v4764 = vsel %vm4629, %v4756, 0
    %v4767 = vsel %vm4639, %v4569, 0
    %4769 = vmatpush.msra.mxu0 0.0
    %4770 = vmatpush.msra.mxu0 0.0
    %4771 = vmatpush.msra.mxu0 0.0
    %4772 = vmatpush.msra.mxu0 0.0
    %4773 = vmatpush.msra.mxu0 0.0
    %4774 = vmatpush.msra.mxu0 0.0
    %4775 = vmatpush.msra.mxu0 0.0
    %4776 = vmatpush.msra.mxu0 0.0
    %4777 = vmatpush.msra.mxu0 0.0
    %4778 = vmatpush.msra.mxu0 0.0
    %4779 = vmatpush.msra.mxu0 0.0
    %4780 = vmatpush.msra.mxu0 0.0
    %4781 = vmatpush.msra.mxu0 0.0
    %4782 = vmatpush.msra.mxu0 0.0
    %4783 = vmatpush.msra.mxu0 %v4767
    %4784 = vmatpush.msra.mxu0 %v4568
    %4785 = vmatmul.f32.gmra.mxu0 %v4758
    %v4786 = vpop.f32.mrf.mxu0
    %v4787 = vadd.f32 0.0, %v4786
    %4788 = vmatmul.f32.gmra.mxu0 %v4761
    %v4789 = vpop.f32.mrf.mxu0
    %v4790 = vadd.f32 0.0, %v4789
    %4791 = vmatmul.f32.gmra.mxu0 %v4764
    %v4792 = vpop.f32.mrf.mxu0
    %v4793 = vadd.f32 0.0, %v4792
    %4794 = vdwg.mxu0
    %v4795 = vadd.f32 %v4787, %v4790
    %v4796 = vadd.f32 %v4795, %v4793
    %v4797 = vmul.f32 %v4715, 0.5
    %v4798 = vsub.f32 %v4796, %v4797
    %v4799 = vmul.f32 %v4793, 0.5
    %v4800 = vsub.f32 %v4798, %v4799
    %v4801 = vadd.f32 %v4800, %v2979
    %4802 = vst.msk [vmem:[%s19] sm:$0xff] %vm153, %v4801
    // Predicated region
    $region90: #{lagnet_forward.1} parent=1 // pred_check
      _
    $region91: #{lagnet_forward.1} parent=1 // pred_check_branch
      %4804 = sbr.rel (0) target = $region93
    $region92: #{lagnet_forward.1} parent=1 // pred_region
      _
    $region93: #{lagnet_forward.1} parent=1 // pred_fallthru
      _
    // Predicated region
    $region94: #{lagnet_forward.1} parent=1 // pred_check
      _
    $region95: #{lagnet_forward.1} parent=1 // pred_check_branch
      %4806 = sbr.rel (0) target = $region97
    $region96: #{lagnet_forward.1} parent=1 // pred_region
      _
    $region97: #{lagnet_forward.1} parent=1 // pred_fallthru
      _
    %4807 = vsyncpa [#allocation3], 1
    %4808 = vsyncpa [#allocation5], 1

</llo_original>
